<compile_context>
chip_gen: v6e
topology: v6e:2x2x1
jax: 0.10.0
libtpu: 0.0.40
codegen_flags: <defaults>
</compile_context>

<pallas_src>
import numpy as np
import jax
import jax.numpy as jnp
from jax import lax
from jax.experimental import pallas as pl
from jax.experimental.pallas import tpu as pltpu

F32 = jnp.float32
BF16 = jnp.bfloat16
BN_EPS = 1e-5
LANE = 128

# Above v5e/v6e default scoped-VMEM limits, below v7x's 64 MiB physical VMEM.
VMEM_LIMIT = 48 * 1024 * 1024

# Tap pairing (K=128 -> K=256) used when GWp == 128; taps indexed kh*3 + kw.
_PAIRS = ((0, 2), (3, 5), (6, 8), (1, 4))
_SINGLE = 7


# ---------------------------------------------------------------------------
# small helpers
# ---------------------------------------------------------------------------
def _round_up(x, m):
    return (x + m - 1) // m * m


def _pick_tile(total, target):
    """Largest divisor of `total` that is a multiple of 8 and <= target."""
    best = None
    for d in range(1, total + 1):
        if total % d == 0 and d <= target and d % 8 == 0:
            best = d
    return best if best is not None else total   # full-dim block is always legal


def _pick_h_tile(H, W, target_rows):
    """Pick TH | H so the (TH*W, GWp) blocks satisfy the sublane constraint.

    TH >= 2 is required whenever more than one tile is used so the W+1 halo
    rows fit inside a single neighbouring block.  Falls back to one tile per
    image (full trailing dims -> always legal) when no aligned TH exists."""
    ok = [th for th in range(1, H + 1)
          if H % th == 0 and (th * W) % 8 == 0 and (th >= 2 or th == H)]
    if not ok:
        return H
    within = [th for th in ok if th * W <= target_rows]
    return max(within) if within else min(ok)


def _pick_halo(rows, W):
    """Smallest 8-aligned divisor of `rows` that covers the W+1 halo rows."""
    cands = [d for d in range(8, rows + 1, 8) if rows % d == 0 and d >= W + 1]
    return min(cands) if cands else rows


def _pad2(m, rows, cols):
    out = jnp.zeros((rows, cols), m.dtype)
    return out.at[:m.shape[0], :m.shape[1]].set(m)


def _pad_row(v, cols):
    out = jnp.zeros((1, cols), F32)
    return out.at[0, :v.shape[0]].set(v.astype(F32))


def fold_bn(gamma, beta, mean, var):
    scale = gamma / jnp.sqrt(var + BN_EPS)
    bias = beta - mean * scale
    return scale.astype(F32), bias.astype(F32)


# ---------------------------------------------------------------------------
# Kernel 1: conv1 (1x1 matmul, bf16) + folded bn1 + ReLU, tiled over M
# ---------------------------------------------------------------------------
def stage1(x_bf, w_bf, s, b, tm):
    M, Cp = x_bf.shape
    GWp = w_bf.shape[1]

    def kernel(x_ref, w_ref, s_ref, b_ref, o_ref):
        y = jnp.dot(x_ref[...], w_ref[...], preferred_element_type=jnp.float32)
        o_ref[...] = jnp.maximum(y * s_ref[...] + b_ref[...], 0.0).astype(o_ref.dtype)

    return pl.pallas_call(
        kernel,
        grid=(M // tm,),
        in_specs=[
            pl.BlockSpec((tm, Cp), lambda i: (i, 0)),
            pl.BlockSpec((Cp, GWp), lambda i: (0, 0)),   # weights stay resident
            pl.BlockSpec((1, GWp), lambda i: (0, 0)),
            pl.BlockSpec((1, GWp), lambda i: (0, 0)),
        ],
        out_specs=pl.BlockSpec((tm, GWp), lambda i: (i, 0)),
        out_shape=jax.ShapeDtypeStruct((M, GWp), BF16),
        compiler_params=pltpu.CompilerParams(
            dimension_semantics=("parallel",),
            vmem_limit_bytes=VMEM_LIMIT),
    )(x_bf, w_bf, s, b)


# ---------------------------------------------------------------------------
# Kernel 2a: 3x3 conv (pad=1) as shifted bf16 matmuls on a VMEM-assembled
#            halo'd row slab + folded bn0 + ReLU + GAP partial channel sums.
# ---------------------------------------------------------------------------
def stage2a(act, w2k, s0, b0, *, B, HW, W, rows, n_ht, hW, pair_k):
    GWp = act.shape[-1]
    Wp1 = W + 1
    slab_rows = rows + 2 * Wp1
    r_hb = rows // hW                    # halo blocks per body block
    n_hb = HW // hW                      # halo blocks per image
    kop_shape = (rows, 2 * GWp) if pair_k else (8, LANE)   # K-packed operand

    def kernel(body_ref, top_ref, bot_ref, w_ref, s_ref, b_ref,
               u_ref, sum_ref, slab_ref, kop_ref):
        h = pl.program_id(1)

        # ---- assemble the halo'd flattened slab in VMEM --------------------
        # slab row p  <->  flattened image row (h*rows + p - (W+1)); rows that
        # fall outside the image are zero (pad-1 conv semantics).
        slab_ref[Wp1:Wp1 + rows, :] = body_ref[...]
        if n_ht > 1:
            @pl.when(h > 0)
            def _():
                slab_ref[0:Wp1, :] = top_ref[hW - Wp1:hW, :]

            @pl.when(h == 0)
            def _():
                slab_ref[0:Wp1, :] = jnp.zeros((Wp1, GWp), BF16)

            @pl.when(h < n_ht - 1)
            def _():
                slab_ref[Wp1 + rows:slab_rows, :] = bot_ref[0:Wp1, :]

            @pl.when(h == n_ht - 1)
            def _():
                slab_ref[Wp1 + rows:slab_rows, :] = jnp.zeros((Wp1, GWp), BF16)
        else:
            slab_ref[0:Wp1, :] = jnp.zeros((Wp1, GWp), BF16)
            slab_ref[Wp1 + rows:slab_rows, :] = jnp.zeros((Wp1, GWp), BF16)

        # horizontal-wrap masks for the flattened layout (kw=0 taps need
        # col >= 1, kw=2 taps need col <= W-2).  Two cheap VPU multiplies per
        # masked tap; far below the MXU cost of the 3x3 stage.
        col = lax.broadcasted_iota(jnp.int32, (rows, 1), 0) % W
        left_ok = (col >= 1).astype(BF16)
        right_ok = (col <= W - 2).astype(BF16)

        def tap(t):
            kh, kw = t // 3, t % 3
            off = kh * W + kw
            win = slab_ref[off:off + rows, :]
            if kw == 0:
                return win * left_ok
            if kw == 2:
                return win * right_ok
            return win

        acc = jnp.zeros((rows, GWp), jnp.float32)
        if pair_k:
            # GWp == 128: pack two taps along K so each MXU pass sees K=256
            # (fills the 256-deep MXU on v6e/v7x; neutral on v5e).
            for i, (ta, tb) in enumerate(_PAIRS):
                kop_ref[:, 0:GWp] = tap(ta)
                kop_ref[:, GWp:2 * GWp] = tap(tb)
                acc += jnp.dot(kop_ref[...], w_ref[i],
                               preferred_element_type=jnp.float32)
            acc += jnp.dot(tap(_SINGLE), w_ref[4, 0:GWp, :],
                           preferred_element_type=jnp.float32)
        else:
            for t in range(9):
                acc += jnp.dot(tap(t), w_ref[t],
                               preferred_element_type=jnp.float32)

        u = jnp.maximum(acc * s_ref[...] + b_ref[...], 0.0)   # f32
        u_ref[...] = u.astype(u_ref.dtype)
        # per-(image, row-block) partial channel sums for the global-average
        # pool; the tiny (B, n_ht) reduction finishes in plain JAX.
        sum_ref[...] = jnp.broadcast_to(
            jnp.sum(u, axis=0, keepdims=True), (8, GWp))

    return pl.pallas_call(
        kernel,
        grid=(B, n_ht),
        in_specs=[
            pl.BlockSpec((None, rows, GWp), lambda b, h: (b, h, 0)),       # body
            pl.BlockSpec((None, hW, GWp),                                   # top halo
                         lambda b, h: (b, jnp.maximum(h * r_hb - 1, 0), 0)),
            pl.BlockSpec((None, hW, GWp),                                   # bottom halo
                         lambda b, h: (b, jnp.minimum((h + 1) * r_hb, n_hb - 1), 0)),
            pl.BlockSpec(w2k.shape, lambda b, h: (0, 0, 0)),                # resident
            pl.BlockSpec((1, GWp), lambda b, h: (0, 0)),
            pl.BlockSpec((1, GWp), lambda b, h: (0, 0)),
        ],
        out_specs=[
            pl.BlockSpec((None, rows, GWp), lambda b, h: (b, h, 0)),
            pl.BlockSpec((8, GWp), lambda b, h: (b * n_ht + h, 0)),
        ],
        out_shape=[
            jax.ShapeDtypeStruct((B, HW, GWp), BF16),
            jax.ShapeDtypeStruct((B * n_ht * 8, GWp), jnp.float32),
        ],
        scratch_shapes=[pltpu.VMEM((slab_rows, GWp), BF16),
                        pltpu.VMEM(kop_shape, BF16)],
        compiler_params=pltpu.CompilerParams(
            dimension_semantics=("parallel", "parallel"),
            vmem_limit_bytes=VMEM_LIMIT),
    )(act, act, act, w2k, s0, b0)


# ---------------------------------------------------------------------------
# Kernel 2c: bf16 attention gate + conv3 (1x1 matmul, bf16) + folded bn3
#            + bf16 residual + ReLU; bf16 output aliased onto the residual.
# ---------------------------------------------------------------------------
def stage2c(u, a_bf, res, w3_bf, s3, b3, *, B, HW, tm):
    GWp = u.shape[-1]
    Coutp = w3_bf.shape[1]
    n_mt = HW // tm

    def kernel(u_ref, a_ref, res_ref, w_ref, s_ref, b_ref, o_ref):
        v = u_ref[...] * a_ref[...]                       # bf16 gate
        y = jnp.dot(v, w_ref[...], preferred_element_type=jnp.float32)
        y = y * s_ref[...] + b_ref[...] + res_ref[...].astype(jnp.float32)
        o_ref[...] = jnp.maximum(y, 0.0).astype(o_ref.dtype)

    return pl.pallas_call(
        kernel,
        grid=(B, n_mt),
        in_specs=[
            pl.BlockSpec((None, tm, GWp), lambda b, m: (b, m, 0)),
            pl.BlockSpec((None, 1, GWp), lambda b, m: (b, 0, 0)),
            pl.BlockSpec((None, tm, Coutp), lambda b, m: (b, m, 0)),
            pl.BlockSpec((GWp, Coutp), lambda b, m: (0, 0)),     # resident
            pl.BlockSpec((1, Coutp), lambda b, m: (0, 0)),
            pl.BlockSpec((1, Coutp), lambda b, m: (0, 0)),
        ],
        out_specs=pl.BlockSpec((None, tm, Coutp), lambda b, m: (b, m, 0)),
        out_shape=jax.ShapeDtypeStruct((B, HW, Coutp), BF16),
        input_output_aliases={2: 0},                              # res -> out
        compiler_params=pltpu.CompilerParams(
            dimension_semantics=("parallel", "parallel"),
            vmem_limit_bytes=VMEM_LIMIT),
    )(u, a_bf, res, w3_bf, s3, b3)


# ---------------------------------------------------------------------------
# Parameter init (deterministic random, inference-mode BN stats)
# ---------------------------------------------------------------------------
def init_params(key, inplanes, planes, cardinality=1, bottleneck_width=64):
    GW = int(planes * (bottleneck_width / 64.0)) * cardinality      # group_width
    Cout = planes * 4
    IC = max(GW * 1 // 4, 32)                                       # radix=1, reduction=4
    ks = jax.random.split(key, 12)

    def w(k, shape, fan_in):
        return (jax.random.normal(k, shape, F32) / np.sqrt(fan_in)).astype(F32)

    def bnp(k, c):
        k1, k2, k3, k4 = jax.random.split(k, 4)
        gamma = jax.random.uniform(k1, (c,), F32, 0.5, 1.5)
        beta = 0.1 * jax.random.normal(k2, (c,), F32)
        mean = 0.1 * jax.random.normal(k3, (c,), F32)
        var = jax.random.uniform(k4, (c,), F32, 0.5, 1.5)
        return gamma, beta, mean, var

    P = {
        'conv1_w': w(ks[0], (GW, inplanes, 1, 1), inplanes),
        'bn1': bnp(ks[1], GW),
        'conv2_w': w(ks[2], (GW, GW, 3, 3), GW * 9),
        'bn0': bnp(ks[3], GW),
        'fc1_w': w(ks[4], (IC, GW, 1, 1), GW),
        'fc1_b': 0.1 * jax.random.normal(ks[5], (IC,), F32),
        'bn1s': bnp(ks[6], IC),
        'fc2_w': w(ks[7], (GW, IC, 1, 1), IC),
        'fc2_b': 0.1 * jax.random.normal(ks[8], (GW,), F32),
        'conv3_w': w(ks[9], (Cout, GW, 1, 1), GW),
        'bn3': bnp(ks[10], Cout),
    }
    return P, GW, Cout, IC


# ---------------------------------------------------------------------------
# Forward pass (wrapper: NCHW<->NHWC plumbing, lane padding, tile selection)
# ---------------------------------------------------------------------------
def bottleneck_forward(x_nchw, P, row_tile=1024):
    B, Cin, H, W = x_nchw.shape
    GW = P['conv1_w'].shape[0]
    Cout = P['conv3_w'].shape[0]
    assert Cin == Cout, "downsample is None => inplanes must equal planes*4"
    HW, M = H * W, B * H * W
    Cp = _round_up(Cin, LANE)
    GWp = _round_up(GW, LANE)
    Coutp = _round_up(Cout, LANE)          # == Cp

    # NCHW -> NHWC -> (M, C) bf16, lane-padded; this also IS the residual.
    x_bf = _pad2(jnp.transpose(x_nchw, (0, 2, 3, 1)).reshape(M, Cin),
                 M, Coutp).astype(BF16)

    # ---- stage 1: conv1 (1x1) + bn1 + ReLU --------------------------------
    w1 = _pad2(P['conv1_w'][:, :, 0, 0].T, Cp, GWp).astype(BF16)
    s1, b1 = fold_bn(*P['bn1'])
    tm1 = _pick_tile(M, row_tile)
    out1 = stage1(x_bf, w1, _pad_row(s1, GWp), _pad_row(b1, GWp), tm1)  # (M,GWp) bf16

    # ---- stage 2a: 3x3 conv + bn0 + ReLU (+ GAP partial sums) -------------
    TH = _pick_h_tile(H, W, row_tile)
    n_ht = H // TH
    rows = TH * W
    hW = _pick_halo(rows, W) if n_ht > 1 else rows
    pair_k = (GWp == 128)                  # narrow stages: pack taps along K

    w2 = jnp.transpose(P['conv2_w'], (2, 3, 1, 0)).reshape(9, GW, GW)
    w2_bf = jnp.zeros((9, GWp, GWp), BF16).at[:, :GW, :GW].set(w2.astype(BF16))
    if pair_k:
        w2k = jnp.zeros((5, 2 * GWp, GWp), BF16)
        for i, (ta, tb) in enumerate(_PAIRS):
            w2k = w2k.at[i, :GWp, :].set(w2_bf[ta])
            w2k = w2k.at[i, GWp:, :].set(w2_bf[tb])
        w2k = w2k.at[4, :GWp, :].set(w2_bf[_SINGLE])
    else:
        w2k = w2_bf
    s0, b0 = fold_bn(*P['bn0'])
    u, sums = stage2a(out1.reshape(B, HW, GWp), w2k,
                      _pad_row(s0, GWp), _pad_row(b0, GWp),
                      B=B, HW=HW, W=W, rows=rows, n_ht=n_ht, hW=hW,
                      pair_k=pair_k)

    # ---- split-attention gate (radix=1): GAP -> fc1 -> bn -> ReLU -> fc2 -> sigmoid
    # tiny (B, GW) problem; intentionally plain JAX.
    gap = sums.reshape(B, n_ht, 8, GWp)[:, :, 0, :GW].sum(axis=1) / float(HW)
    sb1, bb1 = fold_bn(*P['bn1s'])
    t = gap @ P['fc1_w'][:, :, 0, 0].T + P['fc1_b'][None, :]
    t = jnp.maximum(t * sb1[None, :] + bb1[None, :], 0.0)
    a = jax.nn.sigmoid(t @ P['fc2_w'][:, :, 0, 0].T + P['fc2_b'][None, :])   # (B, GW)
    a_bf = jnp.zeros((B, 1, GWp), BF16).at[:, 0, :GW].set(a.astype(BF16))

    # ---- stage 2c: gate + conv3 (1x1) + bn3 + residual + ReLU -------------
    w3 = _pad2(P['conv3_w'][:, :, 0, 0].T, GWp, Coutp).astype(BF16)
    s3, b3 = fold_bn(*P['bn3'])
    tm2 = _pick_tile(HW, row_tile)
    out = stage2c(u, a_bf, x_bf.reshape(B, HW, Coutp), w3,
                  _pad_row(s3, Coutp), _pad_row(b3, Coutp),
                  B=B, HW=HW, tm=tm2)                            # (B,HW,Coutp) bf16

    out = out[:, :, :Cout].astype(F32).reshape(B, H, W, Cout)
    return jnp.transpose(out, (0, 3, 1, 2))                      # back to NCHW


# ---------------------------------------------------------------------------
# Pure-JAX reference (same inference-mode BN semantics) for validation
# ---------------------------------------------------------------------------
def reference_forward(x, P):
    def conv(z, w, pad=0):
        return lax.conv_general_dilated(z, w, (1, 1), ((pad, pad), (pad, pad)),
                                        dimension_numbers=('NCHW', 'OIHW', 'NCHW'))

    def bn(z, prm):
        g, b, m, v = prm
        sh = (1, -1, 1, 1)
        return ((z - m.reshape(sh)) / jnp.sqrt(v.reshape(sh) + BN_EPS)
                * g.reshape(sh) + b.reshape(sh))

    out = jax.nn.relu(bn(conv(x, P['conv1_w']), P['bn1']))
    u = jax.nn.relu(bn(conv(out, P['conv2_w'], pad=1), P['bn0']))
    gap = jnp.mean(u, axis=(2, 3), keepdims=True)
    t = conv(gap, P['fc1_w']) + P['fc1_b'].reshape(1, -1, 1, 1)
    t = jax.nn.relu(bn(t, P['bn1s']))
    a = jax.nn.sigmoid(conv(t, P['fc2_w']) + P['fc2_b'].reshape(1, -1, 1, 1))
    v = a * u
    y = bn(conv(v, P['conv3_w']), P['bn3'])
    return jax.nn.relu(y + x)


if __name__ == "__main__":
    key = jax.random.PRNGKey(0)
    kx, kp = jax.random.split(key)
    B, inplanes, planes, H, W = 2, 16, 4, 8, 8   # planes*4 == inplanes => no downsample
    x = jax.random.normal(kx, (B, inplanes, H, W), F32)
    P, GW, Cout, IC = init_params(kp, inplanes, planes)

    fwd = jax.jit(bottleneck_forward, static_argnames=("row_tile",))
    # Small row_tile so the toy shapes still exercise multi-step grids, the
    # neighbour-block halo assembly, the K-paired MXU path and the pipeline.
    out = jax.block_until_ready(fwd(x, P, row_tile=32))

    ref = reference_forward(x, P)
    # bf16 MXU matmuls + bf16 gate/residual/output vs. f32 reference:
    # rtol tightened vs. the previous 1e-1; atol kept a bit looser to cover
    # post-ReLU near-zero cancellation points.
    np.testing.assert_allclose(np.asarray(out), np.asarray(ref),
                               rtol=5e-2, atol=7.5e-2)
    print("KERNEL_OK")
</pallas_src>

<mosaic_0001>
module attributes {stable_mosaic.version = 11 : i64} {
  func.func @kernel(%arg0: i32, %arg1: memref<32x128xbf16, #tpu.memory_space<vmem>>, %arg2: memref<128x128xbf16, #tpu.memory_space<vmem>>, %arg3: memref<1x128xf32, #tpu.memory_space<vmem>>, %arg4: memref<1x128xf32, #tpu.memory_space<vmem>>, %arg5: memref<32x128xbf16, #tpu.memory_space<vmem>>) attributes {dimension_semantics = [#tpu.dimension_semantics<parallel>], iteration_bounds = array<i64: 4>, scalar_prefetch = 0 : i64, scratch_operands = 0 : i64, tpu.core_type = #tpu.core_type<tc>, window_params = [{transform_indices = @transform_0, window_bounds = array<i64: 32, 128>}, {pipeline_mode = #tpu.pipeline_mode<synchronous>, transform_indices = @transform_1, window_bounds = array<i64: 128, 128>}, {pipeline_mode = #tpu.pipeline_mode<synchronous>, transform_indices = @transform_2, window_bounds = array<i64: 1, 128>}, {pipeline_mode = #tpu.pipeline_mode<synchronous>, transform_indices = @transform_3, window_bounds = array<i64: 1, 128>}, {transform_indices = @transform_4, window_bounds = array<i64: 32, 128>}]} {
    %c0 = arith.constant 0 : index
    %c0_0 = arith.constant 0 : index
    %0 = vector.load %arg1[%c0, %c0_0] : memref<32x128xbf16, #tpu.memory_space<vmem>>, vector<32x128xbf16>
    %c0_1 = arith.constant 0 : index
    %c0_2 = arith.constant 0 : index
    %1 = vector.load %arg2[%c0_1, %c0_2] : memref<128x128xbf16, #tpu.memory_space<vmem>>, vector<128x128xbf16>
    %cst = arith.constant dense<0.000000e+00> : vector<32x128xf32>
    %2 = tpu.matmul %0, %1, %cst {dimension_numbers = #tpu.dot_dimension_numbers<[1], [0], [0], [1], [0, 0, 1, 1], [], []>} : vector<32x128xbf16>, vector<128x128xbf16>, vector<32x128xf32> -> vector<32x128xf32>
    %c0_3 = arith.constant 0 : index
    %c0_4 = arith.constant 0 : index
    %3 = vector.load %arg3[%c0_3, %c0_4] : memref<1x128xf32, #tpu.memory_space<vmem>>, vector<1x128xf32>
    %4 = vector.broadcast %3 : vector<1x128xf32> to vector<32x128xf32>
    %5 = arith.mulf %2, %4 : vector<32x128xf32>
    %c0_5 = arith.constant 0 : index
    %c0_6 = arith.constant 0 : index
    %6 = vector.load %arg4[%c0_5, %c0_6] : memref<1x128xf32, #tpu.memory_space<vmem>>, vector<1x128xf32>
    %7 = vector.broadcast %6 : vector<1x128xf32> to vector<32x128xf32>
    %8 = arith.addf %5, %7 : vector<32x128xf32>
    %cst_7 = arith.constant 0.000000e+00 : f32
    %9 = vector.broadcast %cst_7 : f32 to vector<32x128xf32>
    %10 = arith.maximumf %8, %9 : vector<32x128xf32>
    %11 = arith.truncf %10 : vector<32x128xf32> to vector<32x128xbf16>
    %c0_8 = arith.constant 0 : index
    %c0_9 = arith.constant 0 : index
    %12 = vector.load %arg5[%c0_8, %c0_9] : memref<32x128xbf16, #tpu.memory_space<vmem>>, vector<32x128xbf16>
    tpu.vector_store %arg5[%c0_8, %c0_9], %11 {strides = array<i32>} : memref<32x128xbf16, #tpu.memory_space<vmem>>, vector<32x128xbf16>,
    return
  }
  func.func @transform_0(%arg0: i32) -> (i32, i32) {
    %c0_i32 = arith.constant 0 : i32
    %c0_i32_0 = arith.constant 0 : i32
    return %arg0, %c0_i32 : i32, i32
  }
  func.func @transform_1(%arg0: i32) -> (i32, i32) {
    %c0_i32 = arith.constant 0 : i32
    %c0_i32_0 = arith.constant 0 : i32
    %c0_i32_1 = arith.constant 0 : i32
    return %c0_i32, %c0_i32_0 : i32, i32
  }
  func.func @transform_2(%arg0: i32) -> (i32, i32) {
    %c0_i32 = arith.constant 0 : i32
    %c0_i32_0 = arith.constant 0 : i32
    %c0_i32_1 = arith.constant 0 : i32
    return %c0_i32, %c0_i32_0 : i32, i32
  }
  func.func @transform_3(%arg0: i32) -> (i32, i32) {
    %c0_i32 = arith.constant 0 : i32
    %c0_i32_0 = arith.constant 0 : i32
    %c0_i32_1 = arith.constant 0 : i32
    return %c0_i32, %c0_i32_0 : i32, i32
  }
  func.func @transform_4(%arg0: i32) -> (i32, i32) {
    %c0_i32 = arith.constant 0 : i32
    %c0_i32_0 = arith.constant 0 : i32
    return %arg0, %c0_i32 : i32, i32
  }
}

module attributes {stable_mosaic.version = 11 : i64} {
  func.func @kernel(%arg0: i32, %arg1: i32, %arg2: memref<1x32x128xbf16, #tpu.memory_space<vmem>>, %arg3: memref<1x16x128xbf16, #tpu.memory_space<vmem>>, %arg4: memref<1x16x128xbf16, #tpu.memory_space<vmem>>, %arg5: memref<5x256x128xbf16, #tpu.memory_space<vmem>>, %arg6: memref<1x128xf32, #tpu.memory_space<vmem>>, %arg7: memref<1x128xf32, #tpu.memory_space<vmem>>, %arg8: memref<1x32x128xbf16, #tpu.memory_space<vmem>>, %arg9: memref<8x128xf32, #tpu.memory_space<vmem>>, %arg10: memref<50x128xbf16, #tpu.memory_space<vmem>>, %arg11: memref<32x256xbf16, #tpu.memory_space<vmem>>) attributes {dimension_semantics = [#tpu.dimension_semantics<parallel>, #tpu.dimension_semantics<parallel>], iteration_bounds = array<i64: 2, 2>, scalar_prefetch = 0 : i64, scratch_operands = 2 : i64, tpu.core_type = #tpu.core_type<tc>, window_params = [{transform_indices = @transform_0, window_bounds = array<i64: 1, 32, 128>}, {transform_indices = @transform_1, window_bounds = array<i64: 1, 16, 128>}, {transform_indices = @transform_2, window_bounds = array<i64: 1, 16, 128>}, {pipeline_mode = #tpu.pipeline_mode<synchronous>, transform_indices = @transform_3, window_bounds = array<i64: 5, 256, 128>}, {pipeline_mode = #tpu.pipeline_mode<synchronous>, transform_indices = @transform_4, window_bounds = array<i64: 1, 128>}, {pipeline_mode = #tpu.pipeline_mode<synchronous>, transform_indices = @transform_5, window_bounds = array<i64: 1, 128>}, {transform_indices = @transform_6, window_bounds = array<i64: 1, 32, 128>}, {transform_indices = @transform_7, window_bounds = array<i64: 8, 128>}]} {
    %c0 = arith.constant 0 : index
    %c0_0 = arith.constant 0 : index
    %c0_1 = arith.constant 0 : index
    %0 = vector.load %arg2[%c0, %c0_0, %c0_1] : memref<1x32x128xbf16, #tpu.memory_space<vmem>>, vector<1x32x128xbf16>
    %1 = vector.shape_cast %0 : vector<1x32x128xbf16> to vector<32x128xbf16>
    %c9 = arith.constant 9 : index
    %c0_2 = arith.constant 0 : index
    %2 = vector.load %arg10[%c9, %c0_2] : memref<50x128xbf16, #tpu.memory_space<vmem>>, vector<32x128xbf16>
    tpu.vector_store %arg10[%c9, %c0_2], %1 {strides = array<i32>} : memref<50x128xbf16, #tpu.memory_space<vmem>>, vector<32x128xbf16>,
    %c0_i32 = arith.constant 0 : i32
    %3 = arith.cmpi sgt, %arg1, %c0_i32 : i32
    %4 = arith.extui %3 : i1 to i32
    %c0_i32_3 = arith.constant 0 : i32
    %5 = arith.cmpi ne, %4, %c0_i32_3 : i32
    scf.if %5 {
      %c0_78 = arith.constant 0 : index
      %c7 = arith.constant 7 : index
      %c0_79 = arith.constant 0 : index
      %113 = vector.load %arg3[%c0_78, %c7, %c0_79] : memref<1x16x128xbf16, #tpu.memory_space<vmem>>, vector<1x9x128xbf16>
      %114 = vector.shape_cast %113 : vector<1x9x128xbf16> to vector<9x128xbf16>
      %c0_80 = arith.constant 0 : index
      %c0_81 = arith.constant 0 : index
      %115 = vector.load %arg10[%c0_80, %c0_81] : memref<50x128xbf16, #tpu.memory_space<vmem>>, vector<9x128xbf16>
      tpu.vector_store %arg10[%c0_80, %c0_81], %114 {strides = array<i32>} : memref<50x128xbf16, #tpu.memory_space<vmem>>, vector<9x128xbf16>,
    } else {
    }
    %c0_i32_4 = arith.constant 0 : i32
    %6 = arith.cmpi eq, %arg1, %c0_i32_4 : i32
    %7 = arith.extui %6 : i1 to i32
    %c0_i32_5 = arith.constant 0 : i32
    %8 = arith.cmpi ne, %7, %c0_i32_5 : i32
    scf.if %8 {
      %cst_78 = arith.constant 0.000000e+00 : bf16
      %113 = vector.broadcast %cst_78 : bf16 to vector<9x128xbf16>
      %c0_79 = arith.constant 0 : index
      %c0_80 = arith.constant 0 : index
      %114 = vector.load %arg10[%c0_79, %c0_80] : memref<50x128xbf16, #tpu.memory_space<vmem>>, vector<9x128xbf16>
      tpu.vector_store %arg10[%c0_79, %c0_80], %113 {strides = array<i32>} : memref<50x128xbf16, #tpu.memory_space<vmem>>, vector<9x128xbf16>,
    } else {
    }
    %c1_i32 = arith.constant 1 : i32
    %9 = arith.cmpi slt, %arg1, %c1_i32 : i32
    %10 = arith.extui %9 : i1 to i32
    %c0_i32_6 = arith.constant 0 : i32
    %11 = arith.cmpi ne, %10, %c0_i32_6 : i32
    scf.if %11 {
      %c0_78 = arith.constant 0 : index
      %c0_79 = arith.constant 0 : index
      %c0_80 = arith.constant 0 : index
      %113 = vector.load %arg4[%c0_78, %c0_79, %c0_80] : memref<1x16x128xbf16, #tpu.memory_space<vmem>>, vector<1x9x128xbf16>
      %114 = vector.shape_cast %113 : vector<1x9x128xbf16> to vector<9x128xbf16>
      %c41 = arith.constant 41 : index
      %c0_81 = arith.constant 0 : index
      %115 = vector.load %arg10[%c41, %c0_81] : memref<50x128xbf16, #tpu.memory_space<vmem>>, vector<9x128xbf16>
      tpu.vector_store %arg10[%c41, %c0_81], %114 {strides = array<i32>} : memref<50x128xbf16, #tpu.memory_space<vmem>>, vector<9x128xbf16>,
    } else {
    }
    %c1_i32_7 = arith.constant 1 : i32
    %12 = arith.cmpi eq, %arg1, %c1_i32_7 : i32
    %13 = arith.extui %12 : i1 to i32
    %c0_i32_8 = arith.constant 0 : i32
    %14 = arith.cmpi ne, %13, %c0_i32_8 : i32
    scf.if %14 {
      %cst_78 = arith.constant 0.000000e+00 : bf16
      %113 = vector.broadcast %cst_78 : bf16 to vector<9x128xbf16>
      %c41 = arith.constant 41 : index
      %c0_79 = arith.constant 0 : index
      %114 = vector.load %arg10[%c41, %c0_79] : memref<50x128xbf16, #tpu.memory_space<vmem>>, vector<9x128xbf16>
      tpu.vector_store %arg10[%c41, %c0_79], %113 {strides = array<i32>} : memref<50x128xbf16, #tpu.memory_space<vmem>>, vector<9x128xbf16>,
    } else {
    }
    %15 = tpu.iota {dimensions = array<i32: 0>} : vector<32x1xi32>
    %c8_i32 = arith.constant 8 : i32
    %c0_i32_9 = arith.constant 0 : i32
    %16 = arith.cmpi eq, %c8_i32, %c0_i32_9 : i32
    %c1_i32_10 = arith.constant 1 : i32
    %17 = arith.select %16, %c1_i32_10, %c8_i32 : i32
    %18 = vector.broadcast %17 : i32 to vector<32x1xi32>
    %19 = arith.remsi %15, %18 : vector<32x1xi32>
    %c0_i32_11 = arith.constant 0 : i32
    %20 = vector.broadcast %c0_i32_11 : i32 to vector<32x1xi32>
    %21 = arith.cmpi ne, %19, %20 : vector<32x1xi32>
    %c0_i32_12 = arith.constant 0 : i32
    %22 = vector.broadcast %c0_i32_12 : i32 to vector<32x1xi32>
    %23 = arith.cmpi slt, %19, %22 : vector<32x1xi32>
    %c0_i32_13 = arith.constant 0 : i32
    %24 = arith.cmpi slt, %17, %c0_i32_13 : i32
    %25 = vector.broadcast %24 : i1 to vector<32x1xi1>
    %26 = vector.broadcast %25 : vector<32x1xi1> to vector<32x1xi1>
    %27 = arith.xori %23, %26 : vector<32x1xi1>
    %28 = arith.andi %27, %21 : vector<32x1xi1>
    %29 = vector.broadcast %17 : i32 to vector<32x1xi32>
    %30 = arith.addi %19, %29 : vector<32x1xi32>
    %31 = arith.select %28, %30, %19 : vector<32x1xi1>, vector<32x1xi32>
    %c1_i32_14 = arith.constant 1 : i32
    %32 = vector.broadcast %c1_i32_14 : i32 to vector<32x1xi32>
    %33 = arith.cmpi sge, %31, %32 : vector<32x1xi32>
    %34 = arith.extui %33 : vector<32x1xi1> to vector<32x1xi32>
    %35 = arith.sitofp %34 : vector<32x1xi32> to vector<32x1xf32>
    %36 = arith.truncf %35 : vector<32x1xf32> to vector<32x1xbf16>
    %c6_i32 = arith.constant 6 : i32
    %37 = vector.broadcast %c6_i32 : i32 to vector<32x1xi32>
    %38 = arith.cmpi sle, %31, %37 : vector<32x1xi32>
    %39 = arith.extui %38 : vector<32x1xi1> to vector<32x1xi32>
    %40 = arith.sitofp %39 : vector<32x1xi32> to vector<32x1xf32>
    %41 = arith.truncf %40 : vector<32x1xf32> to vector<32x1xbf16>
    %cst = arith.constant 0.000000e+00 : f32
    %42 = vector.broadcast %cst : f32 to vector<32x128xf32>
    %c0_15 = arith.constant 0 : index
    %c0_16 = arith.constant 0 : index
    %43 = vector.load %arg10[%c0_15, %c0_16] : memref<50x128xbf16, #tpu.memory_space<vmem>>, vector<32x128xbf16>
    %44 = vector.broadcast %36 : vector<32x1xbf16> to vector<32x128xbf16>
    %45 = arith.mulf %43, %44 : vector<32x128xbf16>
    %c0_17 = arith.constant 0 : index
    %c0_18 = arith.constant 0 : index
    %46 = vector.load %arg11[%c0_17, %c0_18] : memref<32x256xbf16, #tpu.memory_space<vmem>>, vector<32x128xbf16>
    tpu.vector_store %arg11[%c0_17, %c0_18], %45 {strides = array<i32>} : memref<32x256xbf16, #tpu.memory_space<vmem>>, vector<32x128xbf16>,
    %c2 = arith.constant 2 : index
    %c0_19 = arith.constant 0 : index
    %47 = vector.load %arg10[%c2, %c0_19] : memref<50x128xbf16, #tpu.memory_space<vmem>>, vector<32x128xbf16>
    %48 = vector.broadcast %41 : vector<32x1xbf16> to vector<32x128xbf16>
    %49 = arith.mulf %47, %48 : vector<32x128xbf16>
    %c0_20 = arith.constant 0 : index
    %c128 = arith.constant 128 : index
    %50 = vector.load %arg11[%c0_20, %c128] : memref<32x256xbf16, #tpu.memory_space<vmem>>, vector<32x128xbf16>
    tpu.vector_store %arg11[%c0_20, %c128], %49 {strides = array<i32>} : memref<32x256xbf16, #tpu.memory_space<vmem>>, vector<32x128xbf16>,
    %c0_21 = arith.constant 0 : index
    %c0_22 = arith.constant 0 : index
    %51 = vector.load %arg11[%c0_21, %c0_22] : memref<32x256xbf16, #tpu.memory_space<vmem>>, vector<32x256xbf16>
    %c0_23 = arith.constant 0 : index
    %c0_24 = arith.constant 0 : index
    %c0_25 = arith.constant 0 : index
    %52 = vector.load %arg5[%c0_23, %c0_24, %c0_25] : memref<5x256x128xbf16, #tpu.memory_space<vmem>>, vector<1x256x128xbf16>
    %53 = vector.shape_cast %52 : vector<1x256x128xbf16> to vector<256x128xbf16>
    %cst_26 = arith.constant dense<0.000000e+00> : vector<32x128xf32>
    %54 = tpu.matmul %51, %53, %cst_26 {dimension_numbers = #tpu.dot_dimension_numbers<[1], [0], [0], [1], [0, 0, 1, 1], [], []>} : vector<32x256xbf16>, vector<256x128xbf16>, vector<32x128xf32> -> vector<32x128xf32>
    %55 = arith.addf %42, %54 : vector<32x128xf32>
    %c8 = arith.constant 8 : index
    %c0_27 = arith.constant 0 : index
    %56 = vector.load %arg10[%c8, %c0_27] : memref<50x128xbf16, #tpu.memory_space<vmem>>, vector<32x128xbf16>
    %57 = vector.broadcast %36 : vector<32x1xbf16> to vector<32x128xbf16>
    %58 = arith.mulf %56, %57 : vector<32x128xbf16>
    %c0_28 = arith.constant 0 : index
    %c0_29 = arith.constant 0 : index
    %59 = vector.load %arg11[%c0_28, %c0_29] : memref<32x256xbf16, #tpu.memory_space<vmem>>, vector<32x128xbf16>
    tpu.vector_store %arg11[%c0_28, %c0_29], %58 {strides = array<i32>} : memref<32x256xbf16, #tpu.memory_space<vmem>>, vector<32x128xbf16>,
    %c10 = arith.constant 10 : index
    %c0_30 = arith.constant 0 : index
    %60 = vector.load %arg10[%c10, %c0_30] : memref<50x128xbf16, #tpu.memory_space<vmem>>, vector<32x128xbf16>
    %61 = vector.broadcast %41 : vector<32x1xbf16> to vector<32x128xbf16>
    %62 = arith.mulf %60, %61 : vector<32x128xbf16>
    %c0_31 = arith.constant 0 : index
    %c128_32 = arith.constant 128 : index
    %63 = vector.load %arg11[%c0_31, %c128_32] : memref<32x256xbf16, #tpu.memory_space<vmem>>, vector<32x128xbf16>
    tpu.vector_store %arg11[%c0_31, %c128_32], %62 {strides = array<i32>} : memref<32x256xbf16, #tpu.memory_space<vmem>>, vector<32x128xbf16>,
    %c0_33 = arith.constant 0 : index
    %c0_34 = arith.constant 0 : index
    %64 = vector.load %arg11[%c0_33, %c0_34] : memref<32x256xbf16, #tpu.memory_space<vmem>>, vector<32x256xbf16>
    %c1 = arith.constant 1 : index
    %c0_35 = arith.constant 0 : index
    %c0_36 = arith.constant 0 : index
    %65 = vector.load %arg5[%c1, %c0_35, %c0_36] : memref<5x256x128xbf16, #tpu.memory_space<vmem>>, vector<1x256x128xbf16>
    %66 = vector.shape_cast %65 : vector<1x256x128xbf16> to vector<256x128xbf16>
    %cst_37 = arith.constant dense<0.000000e+00> : vector<32x128xf32>
    %67 = tpu.matmul %64, %66, %cst_37 {dimension_numbers = #tpu.dot_dimension_numbers<[1], [0], [0], [1], [0, 0, 1, 1], [], []>} : vector<32x256xbf16>, vector<256x128xbf16>, vector<32x128xf32> -> vector<32x128xf32>
    %68 = arith.addf %55, %67 : vector<32x128xf32>
    %c16 = arith.constant 16 : index
    %c0_38 = arith.constant 0 : index
    %69 = vector.load %arg10[%c16, %c0_38] : memref<50x128xbf16, #tpu.memory_space<vmem>>, vector<32x128xbf16>
    %70 = vector.broadcast %36 : vector<32x1xbf16> to vector<32x128xbf16>
    %71 = arith.mulf %69, %70 : vector<32x128xbf16>
    %c0_39 = arith.constant 0 : index
    %c0_40 = arith.constant 0 : index
    %72 = vector.load %arg11[%c0_39, %c0_40] : memref<32x256xbf16, #tpu.memory_space<vmem>>, vector<32x128xbf16>
    tpu.vector_store %arg11[%c0_39, %c0_40], %71 {strides = array<i32>} : memref<32x256xbf16, #tpu.memory_space<vmem>>, vector<32x128xbf16>,
    %c18 = arith.constant 18 : index
    %c0_41 = arith.constant 0 : index
    %73 = vector.load %arg10[%c18, %c0_41] : memref<50x128xbf16, #tpu.memory_space<vmem>>, vector<32x128xbf16>
    %74 = vector.broadcast %41 : vector<32x1xbf16> to vector<32x128xbf16>
    %75 = arith.mulf %73, %74 : vector<32x128xbf16>
    %c0_42 = arith.constant 0 : index
    %c128_43 = arith.constant 128 : index
    %76 = vector.load %arg11[%c0_42, %c128_43] : memref<32x256xbf16, #tpu.memory_space<vmem>>, vector<32x128xbf16>
    tpu.vector_store %arg11[%c0_42, %c128_43], %75 {strides = array<i32>} : memref<32x256xbf16, #tpu.memory_space<vmem>>, vector<32x128xbf16>,
    %c0_44 = arith.constant 0 : index
    %c0_45 = arith.constant 0 : index
    %77 = vector.load %arg11[%c0_44, %c0_45] : memref<32x256xbf16, #tpu.memory_space<vmem>>, vector<32x256xbf16>
    %c2_46 = arith.constant 2 : index
    %c0_47 = arith.constant 0 : index
    %c0_48 = arith.constant 0 : index
    %78 = vector.load %arg5[%c2_46, %c0_47, %c0_48] : memref<5x256x128xbf16, #tpu.memory_space<vmem>>, vector<1x256x128xbf16>
    %79 = vector.shape_cast %78 : vector<1x256x128xbf16> to vector<256x128xbf16>
    %cst_49 = arith.constant dense<0.000000e+00> : vector<32x128xf32>
    %80 = tpu.matmul %77, %79, %cst_49 {dimension_numbers = #tpu.dot_dimension_numbers<[1], [0], [0], [1], [0, 0, 1, 1], [], []>} : vector<32x256xbf16>, vector<256x128xbf16>, vector<32x128xf32> -> vector<32x128xf32>
    %81 = arith.addf %68, %80 : vector<32x128xf32>
    %c1_50 = arith.constant 1 : index
    %c0_51 = arith.constant 0 : index
    %82 = vector.load %arg10[%c1_50, %c0_51] : memref<50x128xbf16, #tpu.memory_space<vmem>>, vector<32x128xbf16>
    %c0_52 = arith.constant 0 : index
    %c0_53 = arith.constant 0 : index
    %83 = vector.load %arg11[%c0_52, %c0_53] : memref<32x256xbf16, #tpu.memory_space<vmem>>, vector<32x128xbf16>
    tpu.vector_store %arg11[%c0_52, %c0_53], %82 {strides = array<i32>} : memref<32x256xbf16, #tpu.memory_space<vmem>>, vector<32x128xbf16>,
    %c9_54 = arith.constant 9 : index
    %c0_55 = arith.constant 0 : index
    %84 = vector.load %arg10[%c9_54, %c0_55] : memref<50x128xbf16, #tpu.memory_space<vmem>>, vector<32x128xbf16>
    %c0_56 = arith.constant 0 : index
    %c128_57 = arith.constant 128 : index
    %85 = vector.load %arg11[%c0_56, %c128_57] : memref<32x256xbf16, #tpu.memory_space<vmem>>, vector<32x128xbf16>
    tpu.vector_store %arg11[%c0_56, %c128_57], %84 {strides = array<i32>} : memref<32x256xbf16, #tpu.memory_space<vmem>>, vector<32x128xbf16>,
    %c0_58 = arith.constant 0 : index
    %c0_59 = arith.constant 0 : index
    %86 = vector.load %arg11[%c0_58, %c0_59] : memref<32x256xbf16, #tpu.memory_space<vmem>>, vector<32x256xbf16>
    %c3 = arith.constant 3 : index
    %c0_60 = arith.constant 0 : index
    %c0_61 = arith.constant 0 : index
    %87 = vector.load %arg5[%c3, %c0_60, %c0_61] : memref<5x256x128xbf16, #tpu.memory_space<vmem>>, vector<1x256x128xbf16>
    %88 = vector.shape_cast %87 : vector<1x256x128xbf16> to vector<256x128xbf16>
    %cst_62 = arith.constant dense<0.000000e+00> : vector<32x128xf32>
    %89 = tpu.matmul %86, %88, %cst_62 {dimension_numbers = #tpu.dot_dimension_numbers<[1], [0], [0], [1], [0, 0, 1, 1], [], []>} : vector<32x256xbf16>, vector<256x128xbf16>, vector<32x128xf32> -> vector<32x128xf32>
    %90 = arith.addf %81, %89 : vector<32x128xf32>
    %c17 = arith.constant 17 : index
    %c0_63 = arith.constant 0 : index
    %91 = vector.load %arg10[%c17, %c0_63] : memref<50x128xbf16, #tpu.memory_space<vmem>>, vector<32x128xbf16>
    %c4 = arith.constant 4 : index
    %c0_64 = arith.constant 0 : index
    %c0_65 = arith.constant 0 : index
    %92 = vector.load %arg5[%c4, %c0_64, %c0_65] : memref<5x256x128xbf16, #tpu.memory_space<vmem>>, vector<1x128x128xbf16>
    %93 = vector.shape_cast %92 : vector<1x128x128xbf16> to vector<128x128xbf16>
    %cst_66 = arith.constant dense<0.000000e+00> : vector<32x128xf32>
    %94 = tpu.matmul %91, %93, %cst_66 {dimension_numbers = #tpu.dot_dimension_numbers<[1], [0], [0], [1], [0, 0, 1, 1], [], []>} : vector<32x128xbf16>, vector<128x128xbf16>, vector<32x128xf32> -> vector<32x128xf32>
    %95 = arith.addf %90, %94 : vector<32x128xf32>
    %c0_67 = arith.constant 0 : index
    %c0_68 = arith.constant 0 : index
    %96 = vector.load %arg6[%c0_67, %c0_68] : memref<1x128xf32, #tpu.memory_space<vmem>>, vector<1x128xf32>
    %97 = vector.broadcast %96 : vector<1x128xf32> to vector<32x128xf32>
    %98 = arith.mulf %95, %97 : vector<32x128xf32>
    %c0_69 = arith.constant 0 : index
    %c0_70 = arith.constant 0 : index
    %99 = vector.load %arg7[%c0_69, %c0_70] : memref<1x128xf32, #tpu.memory_space<vmem>>, vector<1x128xf32>
    %100 = vector.broadcast %99 : vector<1x128xf32> to vector<32x128xf32>
    %101 = arith.addf %98, %100 : vector<32x128xf32>
    %cst_71 = arith.constant 0.000000e+00 : f32
    %102 = vector.broadcast %cst_71 : f32 to vector<32x128xf32>
    %103 = arith.maximumf %101, %102 : vector<32x128xf32>
    %104 = arith.truncf %103 : vector<32x128xf32> to vector<32x128xbf16>
    %c0_72 = arith.constant 0 : index
    %c0_73 = arith.constant 0 : index
    %c0_74 = arith.constant 0 : index
    %105 = vector.load %arg8[%c0_72, %c0_73, %c0_74] : memref<1x32x128xbf16, #tpu.memory_space<vmem>>, vector<1x32x128xbf16>
    %106 = vector.shape_cast %105 : vector<1x32x128xbf16> to vector<32x128xbf16>
    %107 = vector.shape_cast %104 : vector<32x128xbf16> to vector<1x32x128xbf16>
    tpu.vector_store %arg8[%c0_72, %c0_73, %c0_74], %107 {strides = array<i32>} : memref<1x32x128xbf16, #tpu.memory_space<vmem>>, vector<1x32x128xbf16>,
    %cst_75 = arith.constant dense<0.000000e+00> : vector<128xf32>
    %108 = vector.multi_reduction <add>, %103, %cst_75 [0] : vector<32x128xf32> to vector<128xf32>
    %109 = vector.shape_cast %108 : vector<128xf32> to vector<1x128xf32>
    %110 = vector.shape_cast %109 : vector<1x128xf32> to vector<1x128xf32>
    %111 = vector.broadcast %110 : vector<1x128xf32> to vector<8x128xf32>
    %c0_76 = arith.constant 0 : index
    %c0_77 = arith.constant 0 : index
    %112 = vector.load %arg9[%c0_76, %c0_77] : memref<8x128xf32, #tpu.memory_space<vmem>>, vector<8x128xf32>
    tpu.vector_store %arg9[%c0_76, %c0_77], %111 {strides = array<i32>} : memref<8x128xf32, #tpu.memory_space<vmem>>, vector<8x128xf32>,
    return
  }
  func.func @transform_0(%arg0: i32, %arg1: i32) -> (i32, i32, i32) {
    %c0_i32 = arith.constant 0 : i32
    %c0_i32_0 = arith.constant 0 : i32
    return %arg0, %arg1, %c0_i32 : i32, i32, i32
  }
  func.func @transform_1(%arg0: i32, %arg1: i32) -> (i32, i32, i32) {
    %c2_i32 = arith.constant 2 : i32
    %0 = arith.muli %arg1, %c2_i32 : i32
    %c1_i32 = arith.constant 1 : i32
    %1 = arith.subi %0, %c1_i32 : i32
    %c0_i32 = arith.constant 0 : i32
    %2 = arith.maxsi %1, %c0_i32 : i32
    %c0_i32_0 = arith.constant 0 : i32
    %c0_i32_1 = arith.constant 0 : i32
    return %arg0, %2, %c0_i32_0 : i32, i32, i32
  }
  func.func @transform_2(%arg0: i32, %arg1: i32) -> (i32, i32, i32) {
    %c1_i32 = arith.constant 1 : i32
    %0 = arith.addi %arg1, %c1_i32 : i32
    %c2_i32 = arith.constant 2 : i32
    %1 = arith.muli %0, %c2_i32 : i32
    %c3_i32 = arith.constant 3 : i32
    %2 = arith.minsi %1, %c3_i32 : i32
    %c0_i32 = arith.constant 0 : i32
    %c0_i32_0 = arith.constant 0 : i32
    return %arg0, %2, %c0_i32 : i32, i32, i32
  }
  func.func @transform_3(%arg0: i32, %arg1: i32) -> (i32, i32, i32) {
    %c0_i32 = arith.constant 0 : i32
    %c0_i32_0 = arith.constant 0 : i32
    %c0_i32_1 = arith.constant 0 : i32
    %c0_i32_2 = arith.constant 0 : i32
    return %c0_i32, %c0_i32_0, %c0_i32_1 : i32, i32, i32
  }
  func.func @transform_4(%arg0: i32, %arg1: i32) -> (i32, i32) {
    %c0_i32 = arith.constant 0 : i32
    %c0_i32_0 = arith.constant 0 : i32
    %c0_i32_1 = arith.constant 0 : i32
    return %c0_i32, %c0_i32_0 : i32, i32
  }
  func.func @transform_5(%arg0: i32, %arg1: i32) -> (i32, i32) {
    %c0_i32 = arith.constant 0 : i32
    %c0_i32_0 = arith.constant 0 : i32
    %c0_i32_1 = arith.constant 0 : i32
    return %c0_i32, %c0_i32_0 : i32, i32
  }
  func.func @transform_6(%arg0: i32, %arg1: i32) -> (i32, i32, i32) {
    %c0_i32 = arith.constant 0 : i32
    %c0_i32_0 = arith.constant 0 : i32
    return %arg0, %arg1, %c0_i32 : i32, i32, i32
  }
  func.func @transform_7(%arg0: i32, %arg1: i32) -> (i32, i32) {
    %c2_i32 = arith.constant 2 : i32
    %0 = arith.muli %arg0, %c2_i32 : i32
    %1 = arith.addi %0, %arg1 : i32
    %c0_i32 = arith.constant 0 : i32
    %c0_i32_0 = arith.constant 0 : i32
    return %1, %c0_i32 : i32, i32
  }
}

module attributes {stable_mosaic.version = 11 : i64} {
  func.func @kernel(%arg0: i32, %arg1: i32, %arg2: memref<1x32x128xbf16, #tpu.memory_space<vmem>>, %arg3: memref<1x1x128xbf16, #tpu.memory_space<vmem>>, %arg4: memref<1x32x128xbf16, #tpu.memory_space<vmem>>, %arg5: memref<128x128xbf16, #tpu.memory_space<vmem>>, %arg6: memref<1x128xf32, #tpu.memory_space<vmem>>, %arg7: memref<1x128xf32, #tpu.memory_space<vmem>>, %arg8: memref<1x32x128xbf16, #tpu.memory_space<vmem>>) attributes {dimension_semantics = [#tpu.dimension_semantics<parallel>, #tpu.dimension_semantics<parallel>], iteration_bounds = array<i64: 2, 2>, scalar_prefetch = 0 : i64, scratch_operands = 0 : i64, tpu.core_type = #tpu.core_type<tc>, window_params = [{transform_indices = @transform_0, window_bounds = array<i64: 1, 32, 128>}, {transform_indices = @transform_1, window_bounds = array<i64: 1, 1, 128>}, {transform_indices = @transform_2, window_bounds = array<i64: 1, 32, 128>}, {pipeline_mode = #tpu.pipeline_mode<synchronous>, transform_indices = @transform_3, window_bounds = array<i64: 128, 128>}, {pipeline_mode = #tpu.pipeline_mode<synchronous>, transform_indices = @transform_4, window_bounds = array<i64: 1, 128>}, {pipeline_mode = #tpu.pipeline_mode<synchronous>, transform_indices = @transform_5, window_bounds = array<i64: 1, 128>}, {transform_indices = @transform_6, window_bounds = array<i64: 1, 32, 128>}]} {
    %c0 = arith.constant 0 : index
    %c0_0 = arith.constant 0 : index
    %c0_1 = arith.constant 0 : index
    %0 = vector.load %arg2[%c0, %c0_0, %c0_1] : memref<1x32x128xbf16, #tpu.memory_space<vmem>>, vector<1x32x128xbf16>
    %1 = vector.shape_cast %0 : vector<1x32x128xbf16> to vector<32x128xbf16>
    %c0_2 = arith.constant 0 : index
    %c0_3 = arith.constant 0 : index
    %c0_4 = arith.constant 0 : index
    %2 = vector.load %arg3[%c0_2, %c0_3, %c0_4] : memref<1x1x128xbf16, #tpu.memory_space<vmem>>, vector<1x1x128xbf16>
    %3 = vector.shape_cast %2 : vector<1x1x128xbf16> to vector<1x128xbf16>
    %4 = vector.broadcast %3 : vector<1x128xbf16> to vector<32x128xbf16>
    %5 = arith.mulf %1, %4 : vector<32x128xbf16>
    %c0_5 = arith.constant 0 : index
    %c0_6 = arith.constant 0 : index
    %6 = vector.load %arg5[%c0_5, %c0_6] : memref<128x128xbf16, #tpu.memory_space<vmem>>, vector<128x128xbf16>
    %cst = arith.constant dense<0.000000e+00> : vector<32x128xf32>
    %7 = tpu.matmul %5, %6, %cst {dimension_numbers = #tpu.dot_dimension_numbers<[1], [0], [0], [1], [0, 0, 1, 1], [], []>} : vector<32x128xbf16>, vector<128x128xbf16>, vector<32x128xf32> -> vector<32x128xf32>
    %c0_7 = arith.constant 0 : index
    %c0_8 = arith.constant 0 : index
    %8 = vector.load %arg6[%c0_7, %c0_8] : memref<1x128xf32, #tpu.memory_space<vmem>>, vector<1x128xf32>
    %9 = vector.broadcast %8 : vector<1x128xf32> to vector<32x128xf32>
    %10 = arith.mulf %7, %9 : vector<32x128xf32>
    %c0_9 = arith.constant 0 : index
    %c0_10 = arith.constant 0 : index
    %11 = vector.load %arg7[%c0_9, %c0_10] : memref<1x128xf32, #tpu.memory_space<vmem>>, vector<1x128xf32>
    %12 = vector.broadcast %11 : vector<1x128xf32> to vector<32x128xf32>
    %13 = arith.addf %10, %12 : vector<32x128xf32>
    %c0_11 = arith.constant 0 : index
    %c0_12 = arith.constant 0 : index
    %c0_13 = arith.constant 0 : index
    %14 = vector.load %arg4[%c0_11, %c0_12, %c0_13] : memref<1x32x128xbf16, #tpu.memory_space<vmem>>, vector<1x32x128xbf16>
    %15 = vector.shape_cast %14 : vector<1x32x128xbf16> to vector<32x128xbf16>
    %16 = arith.extf %15 : vector<32x128xbf16> to vector<32x128xf32>
    %17 = arith.addf %13, %16 : vector<32x128xf32>
    %cst_14 = arith.constant 0.000000e+00 : f32
    %18 = vector.broadcast %cst_14 : f32 to vector<32x128xf32>
    %19 = arith.maximumf %17, %18 : vector<32x128xf32>
    %20 = arith.truncf %19 : vector<32x128xf32> to vector<32x128xbf16>
    %c0_15 = arith.constant 0 : index
    %c0_16 = arith.constant 0 : index
    %c0_17 = arith.constant 0 : index
    %21 = vector.load %arg8[%c0_15, %c0_16, %c0_17] : memref<1x32x128xbf16, #tpu.memory_space<vmem>>, vector<1x32x128xbf16>
    %22 = vector.shape_cast %21 : vector<1x32x128xbf16> to vector<32x128xbf16>
    %23 = vector.shape_cast %20 : vector<32x128xbf16> to vector<1x32x128xbf16>
    tpu.vector_store %arg8[%c0_15, %c0_16, %c0_17], %23 {strides = array<i32>} : memref<1x32x128xbf16, #tpu.memory_space<vmem>>, vector<1x32x128xbf16>,
    return
  }
  func.func @transform_0(%arg0: i32, %arg1: i32) -> (i32, i32, i32) {
    %c0_i32 = arith.constant 0 : i32
    %c0_i32_0 = arith.constant 0 : i32
    return %arg0, %arg1, %c0_i32 : i32, i32, i32
  }
  func.func @transform_1(%arg0: i32, %arg1: i32) -> (i32, i32, i32) {
    %c0_i32 = arith.constant 0 : i32
    %c0_i32_0 = arith.constant 0 : i32
    %c0_i32_1 = arith.constant 0 : i32
    return %arg0, %c0_i32, %c0_i32_0 : i32, i32, i32
  }
  func.func @transform_2(%arg0: i32, %arg1: i32) -> (i32, i32, i32) {
    %c0_i32 = arith.constant 0 : i32
    %c0_i32_0 = arith.constant 0 : i32
    return %arg0, %arg1, %c0_i32 : i32, i32, i32
  }
  func.func @transform_3(%arg0: i32, %arg1: i32) -> (i32, i32) {
    %c0_i32 = arith.constant 0 : i32
    %c0_i32_0 = arith.constant 0 : i32
    %c0_i32_1 = arith.constant 0 : i32
    return %c0_i32, %c0_i32_0 : i32, i32
  }
  func.func @transform_4(%arg0: i32, %arg1: i32) -> (i32, i32) {
    %c0_i32 = arith.constant 0 : i32
    %c0_i32_0 = arith.constant 0 : i32
    %c0_i32_1 = arith.constant 0 : i32
    return %c0_i32, %c0_i32_0 : i32, i32
  }
  func.func @transform_5(%arg0: i32, %arg1: i32) -> (i32, i32) {
    %c0_i32 = arith.constant 0 : i32
    %c0_i32_0 = arith.constant 0 : i32
    %c0_i32_1 = arith.constant 0 : i32
    return %c0_i32, %c0_i32_0 : i32, i32
  }
  func.func @transform_6(%arg0: i32, %arg1: i32) -> (i32, i32, i32) {
    %c0_i32 = arith.constant 0 : i32
    %c0_i32_0 = arith.constant 0 : i32
    return %arg0, %arg1, %c0_i32 : i32, i32, i32
  }
}

</mosaic_0001>

<llo_original>
// kernel: bottleneck_forward.3
$region0: #{bottleneck_forward.3}
  #allocation0 [shape = 'u32[]', space=smem, size = 0x4, offset = 0x4, fixed_abs, tag = 'smem constant byte address 0x4 - core index']
  #allocation1 [shape = 'u32[144,128]{1,0:T(1,128)}', space=vmem, size = 0x12000, scoped, tag = 'internal scratch']
  %s0 = inlined_call_operand.vmem [shape: bf16[128,128], index: 0, kind: input, shape index: {}]
  %s1 = inlined_call_operand.vmem [shape: bf16[128,128], index: 1, kind: input, shape index: {}]
  %s2 = inlined_call_operand.vmem [shape: f32[1,128], index: 2, kind: input, shape index: {}]
  %s3 = inlined_call_operand.vmem [shape: f32[1,128], index: 3, kind: input, shape index: {}]
  %s4 = inlined_call_operand.vmem [shape: bf16[128,128], index: 4, kind: output, shape index: {}]
  %s5 = sld [smem:[#allocation0]]
  $region49: #{bottleneck_forward.3} parent=0
    _
  %s7 = ssub.s32 1, %s5
  %s8 = scalar_select 0, %s7, %s5
  loop: start=0, step=1, limit=6
  $region2: #{bottleneck_forward.3} parent=0 // loop_pre_header
    _
  $region3: #{bottleneck_forward.3} parent=0 // loop_header
    %s10 = sphi 0, %s14
    %p11 = scmp.ge.s32.totalorder %s10, 6
    %s20 = sphi 0, %s22
    %s23 = sphi 0, %s20
    %s24 = sphi 0, %s23
    %s40 = sphi 0, %s24
    %s44 = sphi 0, %s44
    %s46 = sphi 0, %s44
    %s47 = sphi 0, %s46
    %s61 = sphi 0, %s47
    %s65 = sphi 0, %s65
    %s67 = sphi 0, %s65
    %s68 = sphi 0, %s67
    %s82 = sphi 0, %s68
    %s86 = sphi 0, %s86
    %s88 = sphi 0, %s86
    %s89 = sphi 0, %s88
    %s103 = sphi 0, %s89
    %s109 = sphi 0, %s111
    %s112 = sphi 0, %s109
    %s113 = sphi 0, %s112
    %s129 = sphi 0, %s113
  $region4: #{bottleneck_forward.3} parent=0 // loop_header_branch
    %13 = sbr.rel (%p11) target = $region8
  $region5: #{bottleneck_forward.3} parent=0 // loop_body
    %s15 = ssub.s32 %s10, 1
    %s16 = ssub.s32 %s10, 2
    %s17 = sadd.s32 %s10, 1
    %s18 = ssub.s32 %s10, %s17
    %p19 = scmp.eq.s32.totalorder %s18, 0
    %s21 = sadd.s32 %s20, 1
    %s22 = scalar_select %p19, %s20, %s21
    %p25 = pneg %p19
    %p26 = scmp.eq.s32.totalorder %s10, 3
    %p27 = por %p25, %p26
    %p28 = scmp.ne.s32.totalorder %s20, %s23
    %p29 = scmp.eq.s32.totalorder %s10, 0
    %p30 = por %p28, %p29
    %p31 = scmp.ne.s32.totalorder %s20, %s23
    %p32 = scmp.eq.s32.totalorder %s15, 3
    %p33 = por %p31, %p32
    %p34 = scmp.ne.s32.totalorder %s23, %s24
    %p35 = scmp.eq.s32.totalorder %s15, 0
    %p36 = por %p34, %p35
    %p37 = scmp.ne.s32.totalorder %s23, %s24
    %p38 = scmp.eq.s32.totalorder %s16, 3
    %p39 = por %p37, %p38
    %p41 = scmp.ne.s32.totalorder %s24, %s40
    %p42 = scmp.eq.s32.totalorder %s16, 0
    %p43 = por %p41, %p42
    %s45 = sadd.s32 %s44, 1
    %p48 = scmp.eq.s32.totalorder %s10, 3
    %p49 = scmp.ne.s32.totalorder %s44, %s46
    %p50 = scmp.eq.s32.totalorder %s10, 0
    %p51 = por %p49, %p50
    %p52 = scmp.ne.s32.totalorder %s44, %s46
    %p53 = scmp.eq.s32.totalorder %s15, 3
    %p54 = por %p52, %p53
    %p55 = scmp.ne.s32.totalorder %s46, %s47
    %p56 = scmp.eq.s32.totalorder %s15, 0
    %p57 = por %p55, %p56
    %p58 = scmp.ne.s32.totalorder %s46, %s47
    %p59 = scmp.eq.s32.totalorder %s16, 3
    %p60 = por %p58, %p59
    %p62 = scmp.ne.s32.totalorder %s47, %s61
    %p63 = scmp.eq.s32.totalorder %s16, 0
    %p64 = por %p62, %p63
    %s66 = sadd.s32 %s65, 1
    %p69 = scmp.eq.s32.totalorder %s10, 3
    %p70 = scmp.ne.s32.totalorder %s65, %s67
    %p71 = scmp.eq.s32.totalorder %s10, 0
    %p72 = por %p70, %p71
    %p73 = scmp.ne.s32.totalorder %s65, %s67
    %p74 = scmp.eq.s32.totalorder %s15, 3
    %p75 = por %p73, %p74
    %p76 = scmp.ne.s32.totalorder %s67, %s68
    %p77 = scmp.eq.s32.totalorder %s15, 0
    %p78 = por %p76, %p77
    %p79 = scmp.ne.s32.totalorder %s67, %s68
    %p80 = scmp.eq.s32.totalorder %s16, 3
    %p81 = por %p79, %p80
    %p83 = scmp.ne.s32.totalorder %s68, %s82
    %p84 = scmp.eq.s32.totalorder %s16, 0
    %p85 = por %p83, %p84
    %s87 = sadd.s32 %s86, 1
    %p90 = scmp.eq.s32.totalorder %s10, 3
    %p91 = scmp.ne.s32.totalorder %s86, %s88
    %p92 = scmp.eq.s32.totalorder %s10, 0
    %p93 = por %p91, %p92
    %p94 = scmp.ne.s32.totalorder %s86, %s88
    %p95 = scmp.eq.s32.totalorder %s15, 3
    %p96 = por %p94, %p95
    %p97 = scmp.ne.s32.totalorder %s88, %s89
    %p98 = scmp.eq.s32.totalorder %s15, 0
    %p99 = por %p97, %p98
    %p100 = scmp.ne.s32.totalorder %s88, %s89
    %p101 = scmp.eq.s32.totalorder %s16, 3
    %p102 = por %p100, %p101
    %p104 = scmp.ne.s32.totalorder %s89, %s103
    %p105 = scmp.eq.s32.totalorder %s16, 0
    %p106 = por %p104, %p105
    %s107 = ssub.s32 %s10, %s17
    %p108 = scmp.eq.s32.totalorder %s107, 0
    %s110 = sadd.s32 %s109, 1
    %s111 = scalar_select %p108, %s109, %s110
    %p114 = pneg %p108
    %p115 = scmp.eq.s32.totalorder %s10, 3
    %p116 = por %p114, %p115
    %p117 = scmp.ne.s32.totalorder %s109, %s112
    %p118 = scmp.eq.s32.totalorder %s10, 0
    %p119 = por %p117, %p118
    %p120 = scmp.ne.s32.totalorder %s109, %s112
    %p121 = scmp.eq.s32.totalorder %s15, 3
    %p122 = por %p120, %p121
    %p123 = scmp.ne.s32.totalorder %s112, %s113
    %p124 = scmp.eq.s32.totalorder %s15, 0
    %p125 = por %p123, %p124
    %p126 = scmp.ne.s32.totalorder %s112, %s113
    %p127 = scmp.eq.s32.totalorder %s16, 3
    %p128 = por %p126, %p127
    %p130 = scmp.ne.s32.totalorder %s113, %s129
    %p131 = scmp.eq.s32.totalorder %s16, 0
    %p132 = por %p130, %p131
    %p133 = scmp.le.s32.totalorder 1, %s10
    %p134 = scmp.lt.s32.totalorder %s10, 5
    %p135 = pnand %p133, %p134
    %p136 = pneg %p135
    // Predicated region
    $region9: #{bottleneck_forward.3} parent=5 // pred_check
      _
    $region10: #{bottleneck_forward.3} parent=5 // pred_check_branch
      %138 = sbr.rel (%p135) target = $region12
    $region11: #{bottleneck_forward.3} parent=5 // pred_region
      %s139 = ssub.s32 %s10, 1
      // Predicated region
      $region13: #{bottleneck_forward.3} parent=11 // pred_check
        %p140 = pneg %p57
      $region14: #{bottleneck_forward.3} parent=11 // pred_check_branch
        %142 = sbr.rel (%p140) target = $region16
      $region15: #{bottleneck_forward.3} parent=11 // pred_region
        _
      $region16: #{bottleneck_forward.3} parent=11 // pred_fallthru
        _
      // Predicated region
      $region17: #{bottleneck_forward.3} parent=11 // pred_check
        %p143 = pneg %p78
      $region18: #{bottleneck_forward.3} parent=11 // pred_check_branch
        %145 = sbr.rel (%p143) target = $region20
      $region19: #{bottleneck_forward.3} parent=11 // pred_region
        _
      $region20: #{bottleneck_forward.3} parent=11 // pred_fallthru
        _
      // Predicated region
      $region21: #{bottleneck_forward.3} parent=11 // pred_check
        %p146 = pneg %p99
      $region22: #{bottleneck_forward.3} parent=11 // pred_check_branch
        %148 = sbr.rel (%p146) target = $region24
      $region23: #{bottleneck_forward.3} parent=11 // pred_region
        _
      $region24: #{bottleneck_forward.3} parent=11 // pred_fallthru
        _
    $region12: #{bottleneck_forward.3} parent=5 // pred_fallthru
      _
    %p149 = scmp.lt.s32.totalorder %s10, 4
    // Predicated region
    $region25: #{bottleneck_forward.3} parent=5 // pred_check
      %p150 = pneg %p149
    $region26: #{bottleneck_forward.3} parent=5 // pred_check_branch
      %152 = sbr.rel (%p150) target = $region28
    $region27: #{bottleneck_forward.3} parent=5 // pred_region
      // Predicated region
      $region29: #{bottleneck_forward.3} parent=27 // pred_check
        %p153 = pneg %p30
      $region30: #{bottleneck_forward.3} parent=27 // pred_check_branch
        %155 = sbr.rel (%p153) target = $region32
      $region31: #{bottleneck_forward.3} parent=27 // pred_region
        %s156 = smul.u32 4, %s10
        %p157 = scmp.lt.s32.totalorder %s156, 15
        %s158 = scalar_select %p157, %s156, 15
        %s159 = smul.addr %s158, 4
        %s160 = scalar_lea.vmem %s0, %s159
        %s161 = smul.u32 4, %s10
      $region32: #{bottleneck_forward.3} parent=27 // pred_fallthru
        _
    $region28: #{bottleneck_forward.3} parent=5 // pred_fallthru
      _
    %p162 = scmp.le.s32.totalorder 1, %s10
    %p163 = scmp.lt.s32.totalorder %s10, 5
    %p164 = pnand %p162, %p163
    %p165 = pneg %p164
    // Predicated region
    $region33: #{bottleneck_forward.3} parent=5 // pred_check
      _
    $region34: #{bottleneck_forward.3} parent=5 // pred_check_branch
      %167 = sbr.rel (%p164) target = $region36
    $region35: #{bottleneck_forward.3} parent=5 // pred_region
      %s168 = ssub.s32 %s10, 1
      %s169 = smul.u32 4, %s15
      %p170 = scmp.lt.s32.totalorder %s169, 15
      %s171 = scalar_select %p170, %s169, 15
      %s172 = smul.addr %s171, 4
      %s173 = scalar_lea.vmem %s0, %s172
      %p174 = pneg %p36
      %p175 = pneg %p33
      %p176 = pneg %p57
      %p177 = pneg %p54
      %p178 = pneg %p78
      %p179 = pneg %p75
      %p180 = pneg %p99
      %p181 = pneg %p96
      %p182 = pneg %p125
      %p183 = pneg %p122
      %s184 = smul.u32 4, %s15
      %p185 = scmp.lt.s32.totalorder %s184, 15
      %s186 = scalar_select %p185, %s184, 15
      %s187 = smul.addr %s186, 4
      %s188 = scalar_lea.vmem %s4, %s187
      %s189 = smul.u32 4, %s15
      %p190 = scmp.lt.s32.totalorder %s189, 15
      %s191 = scalar_select %p190, %s189, 15
      %s192 = smul.addr %s191, 4
      %s193 = scalar_lea.vmem %s0, %s192
      %s194 = smul.u32 4, %s15
      %s195 = smul.u32 4, %s15
      %p196 = scmp.lt.s32.totalorder %s195, 15
      %s197 = scalar_select %p196, %s195, 15
      %s198 = smul.addr %s197, 4
      %s199 = scalar_lea.vmem %s4, %s198
      %s200 = smul.u32 4, %s15
      %v202 = vld [vmem:[%s193] sm:$0xf]
      %v203 = vld [vmem:[%s193 + $0x4] sm:$0xf]
      %v204 = vld [vmem:[%s193 + $0x8] sm:$0xf]
      %v205 = vld [vmem:[%s193 + $0xc] sm:$0xf]
      %v206 = vld [vmem:[%s1] sm:$0xf]
      %v207 = vld [vmem:[%s1 + $0x4] sm:$0xf]
      %v208 = vld [vmem:[%s1 + $0x8] sm:$0xf]
      %v209 = vld [vmem:[%s1 + $0xc] sm:$0xf]
      %v210 = vld [vmem:[%s1 + $0x10] sm:$0xf]
      %v211 = vld [vmem:[%s1 + $0x14] sm:$0xf]
      %v212 = vld [vmem:[%s1 + $0x18] sm:$0xf]
      %v213 = vld [vmem:[%s1 + $0x1c] sm:$0xf]
      %v214 = vld [vmem:[%s1 + $0x20] sm:$0xf]
      %v215 = vld [vmem:[%s1 + $0x24] sm:$0xf]
      %v216 = vld [vmem:[%s1 + $0x28] sm:$0xf]
      %v217 = vld [vmem:[%s1 + $0x2c] sm:$0xf]
      %v218 = vld [vmem:[%s1 + $0x30] sm:$0xf]
      %v219 = vld [vmem:[%s1 + $0x34] sm:$0xf]
      %v220 = vld [vmem:[%s1 + $0x38] sm:$0xf]
      %v221 = vld [vmem:[%s1 + $0x3c] sm:$0xf]
      %v226 = vunpack.c.l.b16 %v202
      %v227 = vunpack.c.l.b16 %v203
      %v228 = vunpack.c.l.b16 %v204
      %v229 = vunpack.c.l.b16 %v205
      %v230 = vpack.c.b16 %v227, %v226
      %v231 = vpack.c.b16 %v229, %v228
      %v250 = vunpack.c.l.b16 %v206
      %v251 = vunpack.c.l.b16 %v207
      %v252 = vunpack.c.l.b16 %v208
      %v253 = vunpack.c.l.b16 %v209
      %v254 = vunpack.c.l.b16 %v210
      %v255 = vunpack.c.l.b16 %v211
      %v256 = vunpack.c.l.b16 %v212
      %v257 = vunpack.c.l.b16 %v213
      %v258 = vunpack.c.l.b16 %v214
      %v259 = vunpack.c.l.b16 %v215
      %v260 = vunpack.c.l.b16 %v216
      %v261 = vunpack.c.l.b16 %v217
      %v262 = vunpack.c.l.b16 %v218
      %v263 = vunpack.c.l.b16 %v219
      %v264 = vunpack.c.l.b16 %v220
      %v265 = vunpack.c.l.b16 %v221
      %v266 = vpack.c.b16 %v251, %v250
      %v267 = vpack.c.b16 %v253, %v252
      %v268 = vpack.c.b16 %v255, %v254
      %v269 = vpack.c.b16 %v257, %v256
      %v270 = vpack.c.b16 %v259, %v258
      %v271 = vpack.c.b16 %v261, %v260
      %v272 = vpack.c.b16 %v263, %v262
      %v273 = vpack.c.b16 %v265, %v264
      %282 = vmatprep.subr.bf16.mxu0 0
      %283 = vmatpush1.bf16.msra.mxu0 %v273
      %284 = vmatprep.subr.bf16.mxu0 0
      %285 = vmatpush1.bf16.msra.mxu0 %v272
      %286 = vmatprep.subr.bf16.mxu0 0
      %287 = vmatpush1.bf16.msra.mxu0 %v271
      %288 = vmatprep.subr.bf16.mxu0 0
      %289 = vmatpush1.bf16.msra.mxu0 %v270
      %290 = vmatprep.subr.bf16.mxu0 0
      %291 = vmatpush1.bf16.msra.mxu0 %v269
      %292 = vmatprep.subr.bf16.mxu0 0
      %293 = vmatpush1.bf16.msra.mxu0 %v268
      %294 = vmatprep.subr.bf16.mxu0 0
      %295 = vmatpush1.bf16.msra.mxu0 %v267
      %296 = vmatprep.subr.bf16.mxu0 0
      %297 = vmatpush1.bf16.msra.mxu0 %v266
      %298 = vmatprep.subr.bf16.mxu0 0
      %299 = vmatpush2.bf16.msra.mxu0 0
      %300 = vmatprep.subr.bf16.mxu0 0
      %301 = vmatpush2.bf16.msra.mxu0 0
      %302 = vmatprep.subr.bf16.mxu0 0
      %303 = vmatpush2.bf16.msra.mxu0 0
      %304 = vmatprep.subr.bf16.mxu0 0
      %305 = vmatpush2.bf16.msra.mxu0 0
      %306 = vmatprep.subr.bf16.mxu0 0
      %307 = vmatpush2.bf16.msra.mxu0 0
      %308 = vmatprep.subr.bf16.mxu0 0
      %309 = vmatpush2.bf16.msra.mxu0 0
      %310 = vmatprep.subr.bf16.mxu0 0
      %311 = vmatpush2.bf16.msra.mxu0 0
      %312 = vmatprep.subr.bf16.mxu0 0
      %313 = vmatpush2.bf16.msra.mxu0 0
      %314 = vmatprep.mubr.bf16.mxu0 0
      %315 = vmatmul.mubr.bf16.gmra.mxu0 %v230
      %v316 = vpop.f32.mrf.mxu0
      %v317 = vadd.f32 0.0, %v316
      %v318 = vpop.f32.mrf.mxu0
      %v319 = vpop.f32.mrf.mxu0
      %v320 = vadd.f32 0.0, %v319
      %v321 = vpop.f32.mrf.mxu0
      %322 = vmatprep.mubr.bf16.mxu0 0
      %323 = vmatmul.mubr.bf16.gmra.mxu0 %v231
      %v324 = vpop.f32.mrf.mxu0
      %v325 = vadd.f32 0.0, %v324
      %v326 = vpop.f32.mrf.mxu0
      %v327 = vpop.f32.mrf.mxu0
      %v328 = vadd.f32 0.0, %v327
      %v329 = vpop.f32.mrf.mxu0
      %330 = vdwg.mxu0
      %v331 = vld [vmem:[%s2] sm:$0x1]
      %v333 = vlaneseq
      %v334 = vshrl.u32 %v333, 7
      %v335 = vsub.s32 0, %v334
      %v336 = vrot.slane %v331, %v335
      %v338 = vmul.f32 %v317, %v336
      %v339 = vmul.f32 %v320, %v336
      %v340 = vmul.f32 %v325, %v336
      %v341 = vmul.f32 %v328, %v336
      %v342 = vld [vmem:[%s3] sm:$0x1]
      %v344 = vlaneseq
      %v345 = vshrl.u32 %v344, 7
      %v346 = vsub.s32 0, %v345
      %v347 = vrot.slane %v342, %v346
      %v349 = vadd.f32 %v338, %v347
      %v350 = vadd.f32 %v339, %v347
      %v351 = vadd.f32 %v340, %v347
      %v352 = vadd.f32 %v341, %v347
      %v353 = vmax.f32 %v349, 0.0
      %v354 = vmax.f32 %v350, 0.0
      %v355 = vmax.f32 %v351, 0.0
      %v356 = vmax.f32 %v352, 0.0
      %v357 = vpack.c.bf16 %v354, %v353
      %v358 = vpack.c.bf16 %v356, %v355
      %v361 = vunpack.c.l.b16 %v357
      %v362 = vunpack.c.h.b16 %v357
      %v363 = vunpack.c.l.b16 %v358
      %v364 = vunpack.c.h.b16 %v358
      %v365 = vpack.c.b16 %v361, %v361
      %v366 = vpack.c.b16 %v362, %v362
      %v367 = vpack.c.b16 %v363, %v363
      %v368 = vpack.c.b16 %v364, %v364
      %373 = vst [vmem:[%s199] sm:$0xf] %v365
      %374 = vst [vmem:[%s199 + $0x4] sm:$0xf] %v366
      %375 = vst [vmem:[%s199 + $0x8] sm:$0xf] %v367
      %376 = vst [vmem:[%s199 + $0xc] sm:$0xf] %v368
      %s377 = smul.u32 4, %s15
      %p378 = scmp.lt.s32.totalorder %s377, 15
      %s379 = scalar_select %p378, %s377, 15
      %s380 = smul.addr %s379, 4
      %s381 = scalar_lea.vmem %s4, %s380
      // Predicated region
      $region37: #{bottleneck_forward.3} parent=35 // pred_check
        %p382 = pneg %p122
      $region38: #{bottleneck_forward.3} parent=35 // pred_check_branch
        %384 = sbr.rel (%p382) target = $region40
      $region39: #{bottleneck_forward.3} parent=35 // pred_region
        %s385 = smul.u32 4, %s15
      $region40: #{bottleneck_forward.3} parent=35 // pred_fallthru
        _
    $region36: #{bottleneck_forward.3} parent=5 // pred_fallthru
      _
    %p386 = scmp.le.s32.totalorder 2, %s10
    // Predicated region
    $region41: #{bottleneck_forward.3} parent=5 // pred_check
      %p387 = pneg %p386
    $region42: #{bottleneck_forward.3} parent=5 // pred_check_branch
      %389 = sbr.rel (%p387) target = $region44
    $region43: #{bottleneck_forward.3} parent=5 // pred_region
      %s390 = ssub.s32 %s10, 2
      // Predicated region
      $region45: #{bottleneck_forward.3} parent=43 // pred_check
        %p391 = pneg %p128
      $region46: #{bottleneck_forward.3} parent=43 // pred_check_branch
        %393 = sbr.rel (%p391) target = $region48
      $region47: #{bottleneck_forward.3} parent=43 // pred_region
        %s394 = smul.u32 4, %s16
        %p395 = scmp.lt.s32.totalorder %s394, 15
        %s396 = scalar_select %p395, %s394, 15
        %s397 = smul.addr %s396, 4
        %s398 = scalar_lea.vmem %s4, %s397
      $region48: #{bottleneck_forward.3} parent=43 // pred_fallthru
        _
    $region44: #{bottleneck_forward.3} parent=5 // pred_fallthru
      _
  $region6: #{bottleneck_forward.3} parent=0 // loop_footer
    %s14 = sadd.s32 1, %s10
  $region7: #{bottleneck_forward.3} parent=0 // loop_footer_branch
    %9 = sbr.rel target = $region3
  $region8: #{bottleneck_forward.3} parent=0 // loop_exit
    _

// kernel: bottleneck_forward.5
$region0: #{bottleneck_forward.5}
  #allocation0 [shape = 'u32[]', space=smem, size = 0x4, offset = 0x4, fixed_abs, tag = 'smem constant byte address 0x4 - core index']
  #allocation1 [shape = 'u32[144,128]{1,0:T(1,128)}', space=vmem, size = 0x12000, scoped, tag = 'internal scratch']
  %s0 = inlined_call_operand.vmem [shape: bf16[2,64,128], index: 0, kind: input, shape index: {}]
  %s1 = inlined_call_operand.vmem [shape: bf16[2,1,128], index: 1, kind: input, shape index: {}]
  %s2 = inlined_call_operand.vmem [shape: bf16[2,64,128], index: 2, kind: input, shape index: {}, may-alias: {2,6}]
  %s3 = inlined_call_operand.vmem [shape: bf16[128,128], index: 3, kind: input, shape index: {}]
  %s4 = inlined_call_operand.vmem [shape: f32[1,128], index: 4, kind: input, shape index: {}]
  %s5 = inlined_call_operand.vmem [shape: f32[1,128], index: 5, kind: input, shape index: {}]
  %s6 = inlined_call_operand.vmem [shape: bf16[2,64,128], index: 6, kind: output, shape index: {}, may-alias: {2,6}]
  %s7 = sld [smem:[#allocation0]]
  $region57: #{bottleneck_forward.5} parent=0
    _
  %s9 = ssub.s32 1, %s7
  %s10 = scalar_select 0, %s9, %s7
  loop: start=0, step=1, limit=6
  $region2: #{bottleneck_forward.5} parent=0 // loop_pre_header
    _
  $region3: #{bottleneck_forward.5} parent=0 // loop_header
    %s12 = sphi 0, %s16
    %p13 = scmp.ge.s32.totalorder %s12, 6
    %s19 = sphi 0, %s31
    %s20 = sphi 0, %s27
    %s21 = sphi 0, %s19
    %s22 = sphi 0, %s20
    %s23 = sphi 0, %s21
    %s24 = sphi 0, %s22
    %s36 = sphi 0, %s38
    %s39 = sphi 0, %s36
    %s40 = sphi 0, %s39
    %s56 = sphi 0, %s40
    %s62 = sphi 0, %s64
    %s65 = sphi 0, %s62
    %s66 = sphi 0, %s65
    %s82 = sphi 0, %s66
    %s90 = sphi 0, %s92
    %s93 = sphi 0, %s90
    %s94 = sphi 0, %s93
    %s110 = sphi 0, %s94
    %s114 = sphi 0, %s114
    %s116 = sphi 0, %s114
    %s117 = sphi 0, %s116
    %s131 = sphi 0, %s117
    %s135 = sphi 0, %s135
    %s137 = sphi 0, %s135
    %s138 = sphi 0, %s137
    %s152 = sphi 0, %s138
    %s156 = sphi 0, %s156
    %s158 = sphi 0, %s156
    %s159 = sphi 0, %s158
    %s173 = sphi 0, %s159
    %s181 = sphi 0, %s183
    %s184 = sphi 0, %s181
    %s185 = sphi 0, %s184
    %s201 = sphi 0, %s185
  $region4: #{bottleneck_forward.5} parent=0 // loop_header_branch
    %15 = sbr.rel (%p13) target = $region8
  $region5: #{bottleneck_forward.5} parent=0 // loop_body
    %s17 = ssub.s32 %s12, 1
    %s18 = ssub.s32 %s12, 2
    %s25 = sadd.s32 1, %s20
    %p26 = scmp.ge.s32.totalorder %s25, 2
    %s27 = scalar_select %p26, 0, %s25
    %s28 = sadd.s32 1, %s19
    %s29 = scalar_select %p26, %s28, %s19
    %p30 = scmp.ge.s32.totalorder %s29, 2
    %s31 = scalar_select %p30, 0, %s29
    %s32 = ssub.s32 %s19, %s31
    %s33 = ssub.s32 %s20, %s27
    %s34 = sor.u32 %s32, %s33
    %p35 = scmp.eq.s32.totalorder %s34, 0
    %s37 = sadd.s32 %s36, 1
    %s38 = scalar_select %p35, %s36, %s37
    %p41 = pneg %p35
    %p42 = scmp.eq.s32.totalorder %s12, 3
    %p43 = por %p41, %p42
    %p44 = scmp.ne.s32.totalorder %s36, %s39
    %p45 = scmp.eq.s32.totalorder %s12, 0
    %p46 = por %p44, %p45
    %p47 = scmp.ne.s32.totalorder %s36, %s39
    %p48 = scmp.eq.s32.totalorder %s17, 3
    %p49 = por %p47, %p48
    %p50 = scmp.ne.s32.totalorder %s39, %s40
    %p51 = scmp.eq.s32.totalorder %s17, 0
    %p52 = por %p50, %p51
    %p53 = scmp.ne.s32.totalorder %s39, %s40
    %p54 = scmp.eq.s32.totalorder %s18, 3
    %p55 = por %p53, %p54
    %p57 = scmp.ne.s32.totalorder %s40, %s56
    %p58 = scmp.eq.s32.totalorder %s18, 0
    %p59 = por %p57, %p58
    %s60 = ssub.s32 %s19, %s31
    %p61 = scmp.eq.s32.totalorder %s60, 0
    %s63 = sadd.s32 %s62, 1
    %s64 = scalar_select %p61, %s62, %s63
    %p67 = pneg %p61
    %p68 = scmp.eq.s32.totalorder %s12, 3
    %p69 = por %p67, %p68
    %p70 = scmp.ne.s32.totalorder %s62, %s65
    %p71 = scmp.eq.s32.totalorder %s12, 0
    %p72 = por %p70, %p71
    %p73 = scmp.ne.s32.totalorder %s62, %s65
    %p74 = scmp.eq.s32.totalorder %s17, 3
    %p75 = por %p73, %p74
    %p76 = scmp.ne.s32.totalorder %s65, %s66
    %p77 = scmp.eq.s32.totalorder %s17, 0
    %p78 = por %p76, %p77
    %p79 = scmp.ne.s32.totalorder %s65, %s66
    %p80 = scmp.eq.s32.totalorder %s18, 3
    %p81 = por %p79, %p80
    %p83 = scmp.ne.s32.totalorder %s66, %s82
    %p84 = scmp.eq.s32.totalorder %s18, 0
    %p85 = por %p83, %p84
    %s86 = ssub.s32 %s19, %s31
    %s87 = ssub.s32 %s20, %s27
    %s88 = sor.u32 %s86, %s87
    %p89 = scmp.eq.s32.totalorder %s88, 0
    %s91 = sadd.s32 %s90, 1
    %s92 = scalar_select %p89, %s90, %s91
    %p95 = pneg %p89
    %p96 = scmp.eq.s32.totalorder %s12, 3
    %p97 = por %p95, %p96
    %p98 = scmp.ne.s32.totalorder %s90, %s93
    %p99 = scmp.eq.s32.totalorder %s12, 0
    %p100 = por %p98, %p99
    %p101 = scmp.ne.s32.totalorder %s90, %s93
    %p102 = scmp.eq.s32.totalorder %s17, 3
    %p103 = por %p101, %p102
    %p104 = scmp.ne.s32.totalorder %s93, %s94
    %p105 = scmp.eq.s32.totalorder %s17, 0
    %p106 = por %p104, %p105
    %p107 = scmp.ne.s32.totalorder %s93, %s94
    %p108 = scmp.eq.s32.totalorder %s18, 3
    %p109 = por %p107, %p108
    %p111 = scmp.ne.s32.totalorder %s94, %s110
    %p112 = scmp.eq.s32.totalorder %s18, 0
    %p113 = por %p111, %p112
    %s115 = sadd.s32 %s114, 1
    %p118 = scmp.eq.s32.totalorder %s12, 3
    %p119 = scmp.ne.s32.totalorder %s114, %s116
    %p120 = scmp.eq.s32.totalorder %s12, 0
    %p121 = por %p119, %p120
    %p122 = scmp.ne.s32.totalorder %s114, %s116
    %p123 = scmp.eq.s32.totalorder %s17, 3
    %p124 = por %p122, %p123
    %p125 = scmp.ne.s32.totalorder %s116, %s117
    %p126 = scmp.eq.s32.totalorder %s17, 0
    %p127 = por %p125, %p126
    %p128 = scmp.ne.s32.totalorder %s116, %s117
    %p129 = scmp.eq.s32.totalorder %s18, 3
    %p130 = por %p128, %p129
    %p132 = scmp.ne.s32.totalorder %s117, %s131
    %p133 = scmp.eq.s32.totalorder %s18, 0
    %p134 = por %p132, %p133
    %s136 = sadd.s32 %s135, 1
    %p139 = scmp.eq.s32.totalorder %s12, 3
    %p140 = scmp.ne.s32.totalorder %s135, %s137
    %p141 = scmp.eq.s32.totalorder %s12, 0
    %p142 = por %p140, %p141
    %p143 = scmp.ne.s32.totalorder %s135, %s137
    %p144 = scmp.eq.s32.totalorder %s17, 3
    %p145 = por %p143, %p144
    %p146 = scmp.ne.s32.totalorder %s137, %s138
    %p147 = scmp.eq.s32.totalorder %s17, 0
    %p148 = por %p146, %p147
    %p149 = scmp.ne.s32.totalorder %s137, %s138
    %p150 = scmp.eq.s32.totalorder %s18, 3
    %p151 = por %p149, %p150
    %p153 = scmp.ne.s32.totalorder %s138, %s152
    %p154 = scmp.eq.s32.totalorder %s18, 0
    %p155 = por %p153, %p154
    %s157 = sadd.s32 %s156, 1
    %p160 = scmp.eq.s32.totalorder %s12, 3
    %p161 = scmp.ne.s32.totalorder %s156, %s158
    %p162 = scmp.eq.s32.totalorder %s12, 0
    %p163 = por %p161, %p162
    %p164 = scmp.ne.s32.totalorder %s156, %s158
    %p165 = scmp.eq.s32.totalorder %s17, 3
    %p166 = por %p164, %p165
    %p167 = scmp.ne.s32.totalorder %s158, %s159
    %p168 = scmp.eq.s32.totalorder %s17, 0
    %p169 = por %p167, %p168
    %p170 = scmp.ne.s32.totalorder %s158, %s159
    %p171 = scmp.eq.s32.totalorder %s18, 3
    %p172 = por %p170, %p171
    %p174 = scmp.ne.s32.totalorder %s159, %s173
    %p175 = scmp.eq.s32.totalorder %s18, 0
    %p176 = por %p174, %p175
    %s177 = ssub.s32 %s19, %s31
    %s178 = ssub.s32 %s20, %s27
    %s179 = sor.u32 %s177, %s178
    %p180 = scmp.eq.s32.totalorder %s179, 0
    %s182 = sadd.s32 %s181, 1
    %s183 = scalar_select %p180, %s181, %s182
    %p186 = pneg %p180
    %p187 = scmp.eq.s32.totalorder %s12, 3
    %p188 = por %p186, %p187
    %p189 = scmp.ne.s32.totalorder %s181, %s184
    %p190 = scmp.eq.s32.totalorder %s12, 0
    %p191 = por %p189, %p190
    %p192 = scmp.ne.s32.totalorder %s181, %s184
    %p193 = scmp.eq.s32.totalorder %s17, 3
    %p194 = por %p192, %p193
    %p195 = scmp.ne.s32.totalorder %s184, %s185
    %p196 = scmp.eq.s32.totalorder %s17, 0
    %p197 = por %p195, %p196
    %p198 = scmp.ne.s32.totalorder %s184, %s185
    %p199 = scmp.eq.s32.totalorder %s18, 3
    %p200 = por %p198, %p199
    %p202 = scmp.ne.s32.totalorder %s185, %s201
    %p203 = scmp.eq.s32.totalorder %s18, 0
    %p204 = por %p202, %p203
    %p205 = scmp.le.s32.totalorder 1, %s12
    %p206 = scmp.lt.s32.totalorder %s12, 5
    %p207 = pnand %p205, %p206
    %p208 = pneg %p207
    // Predicated region
    $region9: #{bottleneck_forward.5} parent=5 // pred_check
      _
    $region10: #{bottleneck_forward.5} parent=5 // pred_check_branch
      %210 = sbr.rel (%p207) target = $region12
    $region11: #{bottleneck_forward.5} parent=5 // pred_region
      %s211 = ssub.s32 %s12, 1
      // Predicated region
      $region13: #{bottleneck_forward.5} parent=11 // pred_check
        %p212 = pneg %p127
      $region14: #{bottleneck_forward.5} parent=11 // pred_check_branch
        %214 = sbr.rel (%p212) target = $region16
      $region15: #{bottleneck_forward.5} parent=11 // pred_region
        _
      $region16: #{bottleneck_forward.5} parent=11 // pred_fallthru
        _
      // Predicated region
      $region17: #{bottleneck_forward.5} parent=11 // pred_check
        %p215 = pneg %p148
      $region18: #{bottleneck_forward.5} parent=11 // pred_check_branch
        %217 = sbr.rel (%p215) target = $region20
      $region19: #{bottleneck_forward.5} parent=11 // pred_region
        _
      $region20: #{bottleneck_forward.5} parent=11 // pred_fallthru
        _
      // Predicated region
      $region21: #{bottleneck_forward.5} parent=11 // pred_check
        %p218 = pneg %p169
      $region22: #{bottleneck_forward.5} parent=11 // pred_check_branch
        %220 = sbr.rel (%p218) target = $region24
      $region23: #{bottleneck_forward.5} parent=11 // pred_region
        _
      $region24: #{bottleneck_forward.5} parent=11 // pred_fallthru
        _
    $region12: #{bottleneck_forward.5} parent=5 // pred_fallthru
      _
    %p221 = scmp.lt.s32.totalorder %s12, 4
    // Predicated region
    $region25: #{bottleneck_forward.5} parent=5 // pred_check
      %p222 = pneg %p221
    $region26: #{bottleneck_forward.5} parent=5 // pred_check_branch
      %224 = sbr.rel (%p222) target = $region28
    $region27: #{bottleneck_forward.5} parent=5 // pred_region
      // Predicated region
      $region29: #{bottleneck_forward.5} parent=27 // pred_check
        %p225 = pneg %p46
      $region30: #{bottleneck_forward.5} parent=27 // pred_check_branch
        %227 = sbr.rel (%p225) target = $region32
      $region31: #{bottleneck_forward.5} parent=27 // pred_region
        %s228 = smul.u32 4, %s20
        %p229 = scmp.lt.s32.totalorder %s19, 1
        %s230 = scalar_select %p229, %s19, 1
        %p231 = scmp.lt.s32.totalorder %s228, 7
        %s232 = scalar_select %p231, %s228, 7
        %s233 = smul.addr %s230, 8
        %s234 = sadd.s32 %s232, %s233
        %s235 = smul.addr %s234, 4
        %s236 = scalar_lea.vmem %s0, %s235
        %s237 = smul.u32 4, %s20
      $region32: #{bottleneck_forward.5} parent=27 // pred_fallthru
        _
      // Predicated region
      $region33: #{bottleneck_forward.5} parent=27 // pred_check
        %p238 = pneg %p72
      $region34: #{bottleneck_forward.5} parent=27 // pred_check_branch
        %240 = sbr.rel (%p238) target = $region36
      $region35: #{bottleneck_forward.5} parent=27 // pred_region
        %p241 = scmp.lt.s32.totalorder %s19, 1
        %s242 = scalar_select %p241, %s19, 1
        %s243 = scalar_lea.vmem %s1, %s242
      $region36: #{bottleneck_forward.5} parent=27 // pred_fallthru
        _
      // Predicated region
      $region37: #{bottleneck_forward.5} parent=27 // pred_check
        %p244 = pneg %p100
      $region38: #{bottleneck_forward.5} parent=27 // pred_check_branch
        %246 = sbr.rel (%p244) target = $region40
      $region39: #{bottleneck_forward.5} parent=27 // pred_region
        %s247 = smul.u32 4, %s20
        %p248 = scmp.lt.s32.totalorder %s19, 1
        %s249 = scalar_select %p248, %s19, 1
        %p250 = scmp.lt.s32.totalorder %s247, 7
        %s251 = scalar_select %p250, %s247, 7
        %s252 = smul.addr %s249, 8
        %s253 = sadd.s32 %s251, %s252
        %s254 = smul.addr %s253, 4
        %s255 = scalar_lea.vmem %s2, %s254
        %s256 = smul.u32 4, %s20
      $region40: #{bottleneck_forward.5} parent=27 // pred_fallthru
        _
    $region28: #{bottleneck_forward.5} parent=5 // pred_fallthru
      _
    %p257 = scmp.le.s32.totalorder 1, %s12
    %p258 = scmp.lt.s32.totalorder %s12, 5
    %p259 = pnand %p257, %p258
    %p260 = pneg %p259
    // Predicated region
    $region41: #{bottleneck_forward.5} parent=5 // pred_check
      _
    $region42: #{bottleneck_forward.5} parent=5 // pred_check_branch
      %262 = sbr.rel (%p259) target = $region44
    $region43: #{bottleneck_forward.5} parent=5 // pred_region
      %s263 = ssub.s32 %s12, 1
      %s264 = smul.u32 4, %s22
      %p265 = scmp.lt.s32.totalorder %s21, 1
      %s266 = scalar_select %p265, %s21, 1
      %p267 = scmp.lt.s32.totalorder %s264, 7
      %s268 = scalar_select %p267, %s264, 7
      %s269 = smul.addr %s266, 8
      %s270 = sadd.s32 %s268, %s269
      %s271 = smul.addr %s270, 4
      %s272 = scalar_lea.vmem %s0, %s271
      %p273 = pneg %p52
      %p274 = pneg %p49
      %p275 = scmp.lt.s32.totalorder %s21, 1
      %s276 = scalar_select %p275, %s21, 1
      %s277 = scalar_lea.vmem %s1, %s276
      %p278 = pneg %p78
      %p279 = pneg %p75
      %s280 = smul.u32 4, %s22
      %p281 = scmp.lt.s32.totalorder %s21, 1
      %s282 = scalar_select %p281, %s21, 1
      %p283 = scmp.lt.s32.totalorder %s280, 7
      %s284 = scalar_select %p283, %s280, 7
      %s285 = smul.addr %s282, 8
      %s286 = sadd.s32 %s284, %s285
      %s287 = smul.addr %s286, 4
      %s288 = scalar_lea.vmem %s2, %s287
      %p289 = pneg %p106
      %p290 = pneg %p103
      %p291 = pneg %p127
      %p292 = pneg %p124
      %p293 = pneg %p148
      %p294 = pneg %p145
      %p295 = pneg %p169
      %p296 = pneg %p166
      %p297 = pneg %p197
      %p298 = pneg %p194
      %s299 = smul.u32 4, %s22
      %p300 = scmp.lt.s32.totalorder %s21, 1
      %s301 = scalar_select %p300, %s21, 1
      %p302 = scmp.lt.s32.totalorder %s299, 7
      %s303 = scalar_select %p302, %s299, 7
      %s304 = smul.addr %s301, 8
      %s305 = sadd.s32 %s303, %s304
      %s306 = smul.addr %s305, 4
      %s307 = scalar_lea.vmem %s6, %s306
      %s308 = smul.u32 4, %s22
      %p309 = scmp.lt.s32.totalorder %s21, 1
      %s310 = scalar_select %p309, %s21, 1
      %p311 = scmp.lt.s32.totalorder %s308, 7
      %s312 = scalar_select %p311, %s308, 7
      %s313 = smul.addr %s310, 8
      %s314 = sadd.s32 %s312, %s313
      %s315 = smul.addr %s314, 4
      %s316 = scalar_lea.vmem %s0, %s315
      %s317 = smul.u32 4, %s22
      %p318 = scmp.lt.s32.totalorder %s21, 1
      %s319 = scalar_select %p318, %s21, 1
      %s320 = scalar_lea.vmem %s1, %s319
      %s321 = smul.u32 4, %s22
      %p322 = scmp.lt.s32.totalorder %s21, 1
      %s323 = scalar_select %p322, %s21, 1
      %p324 = scmp.lt.s32.totalorder %s321, 7
      %s325 = scalar_select %p324, %s321, 7
      %s326 = smul.addr %s323, 8
      %s327 = sadd.s32 %s325, %s326
      %s328 = smul.addr %s327, 4
      %s329 = scalar_lea.vmem %s2, %s328
      %s330 = smul.u32 4, %s22
      %s331 = smul.u32 4, %s22
      %p332 = scmp.lt.s32.totalorder %s21, 1
      %s333 = scalar_select %p332, %s21, 1
      %p334 = scmp.lt.s32.totalorder %s331, 7
      %s335 = scalar_select %p334, %s331, 7
      %s336 = smul.addr %s333, 8
      %s337 = sadd.s32 %s335, %s336
      %s338 = smul.addr %s337, 4
      %s339 = scalar_lea.vmem %s6, %s338
      %s340 = smul.u32 4, %s22
      %v342 = vld [vmem:[%s316] sm:$0xf]
      %v343 = vld [vmem:[%s316 + $0x4] sm:$0xf]
      %v344 = vld [vmem:[%s316 + $0x8] sm:$0xf]
      %v345 = vld [vmem:[%s316 + $0xc] sm:$0xf]
      %v346 = vld [vmem:[%s320] sm:$0x1]
      %v348 = vpack.i.b16 %v346, %v346
      %v350 = vlaneseq
      %v351 = vshrl.u32 %v350, 7
      %v352 = vsub.s32 0, %v351
      %v353 = vrot.slane %v348, %v352
      %v355 = vunpack.c.l.b16 %v353
      %v356 = vpack.c.b16 %v355, %v355
      %v358 = vmul.bf16 %v342, %v356
      %v359 = vmul.bf16 %v343, %v356
      %v360 = vmul.bf16 %v344, %v356
      %v361 = vmul.bf16 %v345, %v356
      %v362 = vld [vmem:[%s3] sm:$0xf]
      %v363 = vld [vmem:[%s3 + $0x4] sm:$0xf]
      %v364 = vld [vmem:[%s3 + $0x8] sm:$0xf]
      %v365 = vld [vmem:[%s3 + $0xc] sm:$0xf]
      %v366 = vld [vmem:[%s3 + $0x10] sm:$0xf]
      %v367 = vld [vmem:[%s3 + $0x14] sm:$0xf]
      %v368 = vld [vmem:[%s3 + $0x18] sm:$0xf]
      %v369 = vld [vmem:[%s3 + $0x1c] sm:$0xf]
      %v370 = vld [vmem:[%s3 + $0x20] sm:$0xf]
      %v371 = vld [vmem:[%s3 + $0x24] sm:$0xf]
      %v372 = vld [vmem:[%s3 + $0x28] sm:$0xf]
      %v373 = vld [vmem:[%s3 + $0x2c] sm:$0xf]
      %v374 = vld [vmem:[%s3 + $0x30] sm:$0xf]
      %v375 = vld [vmem:[%s3 + $0x34] sm:$0xf]
      %v376 = vld [vmem:[%s3 + $0x38] sm:$0xf]
      %v377 = vld [vmem:[%s3 + $0x3c] sm:$0xf]
      %v382 = vunpack.c.l.b16 %v358
      %v383 = vunpack.c.l.b16 %v359
      %v384 = vunpack.c.l.b16 %v360
      %v385 = vunpack.c.l.b16 %v361
      %v386 = vpack.c.b16 %v383, %v382
      %v387 = vpack.c.b16 %v385, %v384
      %v406 = vunpack.c.l.b16 %v362
      %v407 = vunpack.c.l.b16 %v363
      %v408 = vunpack.c.l.b16 %v364
      %v409 = vunpack.c.l.b16 %v365
      %v410 = vunpack.c.l.b16 %v366
      %v411 = vunpack.c.l.b16 %v367
      %v412 = vunpack.c.l.b16 %v368
      %v413 = vunpack.c.l.b16 %v369
      %v414 = vunpack.c.l.b16 %v370
      %v415 = vunpack.c.l.b16 %v371
      %v416 = vunpack.c.l.b16 %v372
      %v417 = vunpack.c.l.b16 %v373
      %v418 = vunpack.c.l.b16 %v374
      %v419 = vunpack.c.l.b16 %v375
      %v420 = vunpack.c.l.b16 %v376
      %v421 = vunpack.c.l.b16 %v377
      %v422 = vpack.c.b16 %v407, %v406
      %v423 = vpack.c.b16 %v409, %v408
      %v424 = vpack.c.b16 %v411, %v410
      %v425 = vpack.c.b16 %v413, %v412
      %v426 = vpack.c.b16 %v415, %v414
      %v427 = vpack.c.b16 %v417, %v416
      %v428 = vpack.c.b16 %v419, %v418
      %v429 = vpack.c.b16 %v421, %v420
      %438 = vmatprep.subr.bf16.mxu0 0
      %439 = vmatpush1.bf16.msra.mxu0 %v429
      %440 = vmatprep.subr.bf16.mxu0 0
      %441 = vmatpush1.bf16.msra.mxu0 %v428
      %442 = vmatprep.subr.bf16.mxu0 0
      %443 = vmatpush1.bf16.msra.mxu0 %v427
      %444 = vmatprep.subr.bf16.mxu0 0
      %445 = vmatpush1.bf16.msra.mxu0 %v426
      %446 = vmatprep.subr.bf16.mxu0 0
      %447 = vmatpush1.bf16.msra.mxu0 %v425
      %448 = vmatprep.subr.bf16.mxu0 0
      %449 = vmatpush1.bf16.msra.mxu0 %v424
      %450 = vmatprep.subr.bf16.mxu0 0
      %451 = vmatpush1.bf16.msra.mxu0 %v423
      %452 = vmatprep.subr.bf16.mxu0 0
      %453 = vmatpush1.bf16.msra.mxu0 %v422
      %454 = vmatprep.subr.bf16.mxu0 0
      %455 = vmatpush2.bf16.msra.mxu0 0
      %456 = vmatprep.subr.bf16.mxu0 0
      %457 = vmatpush2.bf16.msra.mxu0 0
      %458 = vmatprep.subr.bf16.mxu0 0
      %459 = vmatpush2.bf16.msra.mxu0 0
      %460 = vmatprep.subr.bf16.mxu0 0
      %461 = vmatpush2.bf16.msra.mxu0 0
      %462 = vmatprep.subr.bf16.mxu0 0
      %463 = vmatpush2.bf16.msra.mxu0 0
      %464 = vmatprep.subr.bf16.mxu0 0
      %465 = vmatpush2.bf16.msra.mxu0 0
      %466 = vmatprep.subr.bf16.mxu0 0
      %467 = vmatpush2.bf16.msra.mxu0 0
      %468 = vmatprep.subr.bf16.mxu0 0
      %469 = vmatpush2.bf16.msra.mxu0 0
      %470 = vmatprep.mubr.bf16.mxu0 0
      %471 = vmatmul.mubr.bf16.gmra.mxu0 %v386
      %v472 = vpop.f32.mrf.mxu0
      %v473 = vadd.f32 0.0, %v472
      %v474 = vpop.f32.mrf.mxu0
      %v475 = vpop.f32.mrf.mxu0
      %v476 = vadd.f32 0.0, %v475
      %v477 = vpop.f32.mrf.mxu0
      %478 = vmatprep.mubr.bf16.mxu0 0
      %479 = vmatmul.mubr.bf16.gmra.mxu0 %v387
      %v480 = vpop.f32.mrf.mxu0
      %v481 = vadd.f32 0.0, %v480
      %v482 = vpop.f32.mrf.mxu0
      %v483 = vpop.f32.mrf.mxu0
      %v484 = vadd.f32 0.0, %v483
      %v485 = vpop.f32.mrf.mxu0
      %486 = vdwg.mxu0
      %v487 = vld [vmem:[%s4] sm:$0x1]
      %v489 = vlaneseq
      %v490 = vshrl.u32 %v489, 7
      %v491 = vsub.s32 0, %v490
      %v492 = vrot.slane %v487, %v491
      %v494 = vmul.f32 %v473, %v492
      %v495 = vmul.f32 %v476, %v492
      %v496 = vmul.f32 %v481, %v492
      %v497 = vmul.f32 %v484, %v492
      %v498 = vld [vmem:[%s5] sm:$0x1]
      %v500 = vlaneseq
      %v501 = vshrl.u32 %v500, 7
      %v502 = vsub.s32 0, %v501
      %v503 = vrot.slane %v498, %v502
      %v505 = vadd.f32 %v494, %v503
      %v506 = vadd.f32 %v495, %v503
      %v507 = vadd.f32 %v496, %v503
      %v508 = vadd.f32 %v497, %v503
      %v509 = vld [vmem:[%s329] sm:$0xf]
      %v510 = vld [vmem:[%s329 + $0x4] sm:$0xf]
      %v511 = vld [vmem:[%s329 + $0x8] sm:$0xf]
      %v512 = vld [vmem:[%s329 + $0xc] sm:$0xf]
      %v513 = vunpack.c.l.bf16 %v509
      %v514 = vunpack.c.l.bf16 %v510
      %v515 = vunpack.c.l.bf16 %v511
      %v516 = vunpack.c.l.bf16 %v512
      %v517 = vadd.f32 %v505, %v513
      %v518 = vadd.f32 %v506, %v514
      %v519 = vadd.f32 %v507, %v515
      %v520 = vadd.f32 %v508, %v516
      %v521 = vmax.f32 %v517, 0.0
      %v522 = vmax.f32 %v518, 0.0
      %v523 = vmax.f32 %v519, 0.0
      %v524 = vmax.f32 %v520, 0.0
      %v525 = vpack.c.bf16 %v522, %v521
      %v526 = vpack.c.bf16 %v524, %v523
      %v529 = vunpack.c.l.b16 %v525
      %v530 = vunpack.c.h.b16 %v525
      %v531 = vunpack.c.l.b16 %v526
      %v532 = vunpack.c.h.b16 %v526
      %v533 = vpack.c.b16 %v529, %v529
      %v534 = vpack.c.b16 %v530, %v530
      %v535 = vpack.c.b16 %v531, %v531
      %v536 = vpack.c.b16 %v532, %v532
      %541 = vst [vmem:[%s339] sm:$0xf] %v533
      %542 = vst [vmem:[%s339 + $0x4] sm:$0xf] %v534
      %543 = vst [vmem:[%s339 + $0x8] sm:$0xf] %v535
      %544 = vst [vmem:[%s339 + $0xc] sm:$0xf] %v536
      %s545 = smul.u32 4, %s22
      %p546 = scmp.lt.s32.totalorder %s21, 1
      %s547 = scalar_select %p546, %s21, 1
      %p548 = scmp.lt.s32.totalorder %s545, 7
      %s549 = scalar_select %p548, %s545, 7
      %s550 = smul.addr %s547, 8
      %s551 = sadd.s32 %s549, %s550
      %s552 = smul.addr %s551, 4
      %s553 = scalar_lea.vmem %s6, %s552
      // Predicated region
      $region45: #{bottleneck_forward.5} parent=43 // pred_check
        %p554 = pneg %p194
      $region46: #{bottleneck_forward.5} parent=43 // pred_check_branch
        %556 = sbr.rel (%p554) target = $region48
      $region47: #{bottleneck_forward.5} parent=43 // pred_region
        %s557 = smul.u32 4, %s22
      $region48: #{bottleneck_forward.5} parent=43 // pred_fallthru
        _
    $region44: #{bottleneck_forward.5} parent=5 // pred_fallthru
      _
    %p558 = scmp.le.s32.totalorder 2, %s12
    // Predicated region
    $region49: #{bottleneck_forward.5} parent=5 // pred_check
      %p559 = pneg %p558
    $region50: #{bottleneck_forward.5} parent=5 // pred_check_branch
      %561 = sbr.rel (%p559) target = $region52
    $region51: #{bottleneck_forward.5} parent=5 // pred_region
      %s562 = ssub.s32 %s12, 2
      // Predicated region
      $region53: #{bottleneck_forward.5} parent=51 // pred_check
        %p563 = pneg %p200
      $region54: #{bottleneck_forward.5} parent=51 // pred_check_branch
        %565 = sbr.rel (%p563) target = $region56
      $region55: #{bottleneck_forward.5} parent=51 // pred_region
        %s566 = smul.u32 4, %s24
        %p567 = scmp.lt.s32.totalorder %s23, 1
        %s568 = scalar_select %p567, %s23, 1
        %p569 = scmp.lt.s32.totalorder %s566, 7
        %s570 = scalar_select %p569, %s566, 7
        %s571 = smul.addr %s568, 8
        %s572 = sadd.s32 %s570, %s571
        %s573 = smul.addr %s572, 4
        %s574 = scalar_lea.vmem %s6, %s573
      $region56: #{bottleneck_forward.5} parent=51 // pred_fallthru
        _
    $region52: #{bottleneck_forward.5} parent=5 // pred_fallthru
      _
  $region6: #{bottleneck_forward.5} parent=0 // loop_footer
    %s16 = sadd.s32 1, %s12
  $region7: #{bottleneck_forward.5} parent=0 // loop_footer_branch
    %11 = sbr.rel target = $region3
  $region8: #{bottleneck_forward.5} parent=0 // loop_exit
    _

// kernel: bottleneck_forward.4
$region0: #{bottleneck_forward.4}
  #allocation0 [shape = 'u32[]', space=smem, size = 0x4, offset = 0x4, fixed_abs, tag = 'smem constant byte address 0x4 - core index']
  #allocation1 [shape = 'u32[144,128]{1,0:T(1,128)}', space=vmem, size = 0x12000, scoped, tag = 'internal scratch']
  #allocation2 [shape = 'bf16[50,128]{1,0:T(8,128)(2,1)}', space=vmem, size = 0x3800, scoped, tag = 'scratch operand']
  #allocation3 [shape = 'bf16[32,256]{1,0:T(8,128)(2,1)}', space=vmem, size = 0x4000, scoped, tag = 'scratch operand']
  %s0 = inlined_call_operand.vmem [shape: bf16[2,64,128], index: 0, kind: input, shape index: {}, may-alias: {0,1,2}]
  %s1 = inlined_call_operand.vmem [shape: bf16[2,64,128], index: 1, kind: input, shape index: {}, may-alias: {0,1,2}]
  %s2 = inlined_call_operand.vmem [shape: bf16[2,64,128], index: 2, kind: input, shape index: {}, may-alias: {0,1,2}]
  %s3 = inlined_call_operand.vmem [shape: bf16[5,256,128], index: 3, kind: input, shape index: {}]
  %s4 = inlined_call_operand.vmem [shape: f32[1,128], index: 4, kind: input, shape index: {}]
  %s5 = inlined_call_operand.vmem [shape: f32[1,128], index: 5, kind: input, shape index: {}]
  %s6 = inlined_call_operand.vmem [shape: bf16[2,64,128], index: 6, kind: output, shape index: {0}]
  %s7 = inlined_call_operand.vmem [shape: f32[32,128], index: 7, kind: output, shape index: {1}]
  %8 = xla_tuple %s6, %s7
  %s9 = sld [smem:[#allocation0]]
  $region81: #{bottleneck_forward.4} parent=0
    _
  %s11 = ssub.s32 1, %s9
  %s12 = scalar_select 0, %s11, %s9
  loop: start=0, step=1, limit=6
  $region2: #{bottleneck_forward.4} parent=0 // loop_pre_header
    _
  $region3: #{bottleneck_forward.4} parent=0 // loop_header
    %s14 = sphi 0, %s18
    %p15 = scmp.ge.s32.totalorder %s14, 6
    %s21 = sphi 0, %s33
    %s22 = sphi 0, %s29
    %s23 = sphi 0, %s21
    %s24 = sphi 0, %s22
    %s25 = sphi 0, %s23
    %s26 = sphi 0, %s24
    %s38 = sphi 0, %s40
    %s41 = sphi 0, %s38
    %s42 = sphi 0, %s41
    %s58 = sphi 0, %s42
    %s74 = sphi 0, %s76
    %s77 = sphi 0, %s74
    %s78 = sphi 0, %s77
    %s94 = sphi 0, %s78
    %s110 = sphi 0, %s112
    %s113 = sphi 0, %s110
    %s114 = sphi 0, %s113
    %s130 = sphi 0, %s114
    %s134 = sphi 0, %s134
    %s136 = sphi 0, %s134
    %s137 = sphi 0, %s136
    %s151 = sphi 0, %s137
    %s155 = sphi 0, %s155
    %s157 = sphi 0, %s155
    %s158 = sphi 0, %s157
    %s172 = sphi 0, %s158
    %s176 = sphi 0, %s176
    %s178 = sphi 0, %s176
    %s179 = sphi 0, %s178
    %s193 = sphi 0, %s179
    %s201 = sphi 0, %s203
    %s204 = sphi 0, %s201
    %s205 = sphi 0, %s204
    %s221 = sphi 0, %s205
    %s231 = sphi 0, %s233
    %s234 = sphi 0, %s231
    %s235 = sphi 0, %s234
    %s251 = sphi 0, %s235
  $region4: #{bottleneck_forward.4} parent=0 // loop_header_branch
    %17 = sbr.rel (%p15) target = $region8
  $region5: #{bottleneck_forward.4} parent=0 // loop_body
    %s19 = ssub.s32 %s14, 1
    %s20 = ssub.s32 %s14, 2
    %s27 = sadd.s32 1, %s22
    %p28 = scmp.ge.s32.totalorder %s27, 2
    %s29 = scalar_select %p28, 0, %s27
    %s30 = sadd.s32 1, %s21
    %s31 = scalar_select %p28, %s30, %s21
    %p32 = scmp.ge.s32.totalorder %s31, 2
    %s33 = scalar_select %p32, 0, %s31
    %s34 = ssub.s32 %s21, %s33
    %s35 = ssub.s32 %s22, %s29
    %s36 = sor.u32 %s34, %s35
    %p37 = scmp.eq.s32.totalorder %s36, 0
    %s39 = sadd.s32 %s38, 1
    %s40 = scalar_select %p37, %s38, %s39
    %p43 = pneg %p37
    %p44 = scmp.eq.s32.totalorder %s14, 3
    %p45 = por %p43, %p44
    %p46 = scmp.ne.s32.totalorder %s38, %s41
    %p47 = scmp.eq.s32.totalorder %s14, 0
    %p48 = por %p46, %p47
    %p49 = scmp.ne.s32.totalorder %s38, %s41
    %p50 = scmp.eq.s32.totalorder %s19, 3
    %p51 = por %p49, %p50
    %p52 = scmp.ne.s32.totalorder %s41, %s42
    %p53 = scmp.eq.s32.totalorder %s19, 0
    %p54 = por %p52, %p53
    %p55 = scmp.ne.s32.totalorder %s41, %s42
    %p56 = scmp.eq.s32.totalorder %s20, 3
    %p57 = por %p55, %p56
    %p59 = scmp.ne.s32.totalorder %s42, %s58
    %p60 = scmp.eq.s32.totalorder %s20, 0
    %p61 = por %p59, %p60
    %s62 = smul.u32 %s22, 2
    %s63 = ssub.s32 %s62, 1
    %p64 = scmp.gt.s32.totalorder %s63, 0
    %s65 = scalar_select %p64, %s63, 0
    %s66 = smul.u32 %s29, 2
    %s67 = ssub.s32 %s66, 1
    %p68 = scmp.gt.s32.totalorder %s67, 0
    %s69 = scalar_select %p68, %s67, 0
    %s70 = ssub.s32 %s21, %s33
    %s71 = ssub.s32 %s65, %s69
    %s72 = sor.u32 %s70, %s71
    %p73 = scmp.eq.s32.totalorder %s72, 0
    %s75 = sadd.s32 %s74, 1
    %s76 = scalar_select %p73, %s74, %s75
    %p79 = pneg %p73
    %p80 = scmp.eq.s32.totalorder %s14, 3
    %p81 = por %p79, %p80
    %p82 = scmp.ne.s32.totalorder %s74, %s77
    %p83 = scmp.eq.s32.totalorder %s14, 0
    %p84 = por %p82, %p83
    %p85 = scmp.ne.s32.totalorder %s74, %s77
    %p86 = scmp.eq.s32.totalorder %s19, 3
    %p87 = por %p85, %p86
    %p88 = scmp.ne.s32.totalorder %s77, %s78
    %p89 = scmp.eq.s32.totalorder %s19, 0
    %p90 = por %p88, %p89
    %p91 = scmp.ne.s32.totalorder %s77, %s78
    %p92 = scmp.eq.s32.totalorder %s20, 3
    %p93 = por %p91, %p92
    %p95 = scmp.ne.s32.totalorder %s78, %s94
    %p96 = scmp.eq.s32.totalorder %s20, 0
    %p97 = por %p95, %p96
    %s98 = sadd.s32 %s22, 1
    %s99 = smul.u32 %s98, 2
    %p100 = scmp.lt.s32.totalorder %s99, 3
    %s101 = scalar_select %p100, %s99, 3
    %s102 = sadd.s32 %s29, 1
    %s103 = smul.u32 %s102, 2
    %p104 = scmp.lt.s32.totalorder %s103, 3
    %s105 = scalar_select %p104, %s103, 3
    %s106 = ssub.s32 %s21, %s33
    %s107 = ssub.s32 %s101, %s105
    %s108 = sor.u32 %s106, %s107
    %p109 = scmp.eq.s32.totalorder %s108, 0
    %s111 = sadd.s32 %s110, 1
    %s112 = scalar_select %p109, %s110, %s111
    %p115 = pneg %p109
    %p116 = scmp.eq.s32.totalorder %s14, 3
    %p117 = por %p115, %p116
    %p118 = scmp.ne.s32.totalorder %s110, %s113
    %p119 = scmp.eq.s32.totalorder %s14, 0
    %p120 = por %p118, %p119
    %p121 = scmp.ne.s32.totalorder %s110, %s113
    %p122 = scmp.eq.s32.totalorder %s19, 3
    %p123 = por %p121, %p122
    %p124 = scmp.ne.s32.totalorder %s113, %s114
    %p125 = scmp.eq.s32.totalorder %s19, 0
    %p126 = por %p124, %p125
    %p127 = scmp.ne.s32.totalorder %s113, %s114
    %p128 = scmp.eq.s32.totalorder %s20, 3
    %p129 = por %p127, %p128
    %p131 = scmp.ne.s32.totalorder %s114, %s130
    %p132 = scmp.eq.s32.totalorder %s20, 0
    %p133 = por %p131, %p132
    %s135 = sadd.s32 %s134, 1
    %p138 = scmp.eq.s32.totalorder %s14, 3
    %p139 = scmp.ne.s32.totalorder %s134, %s136
    %p140 = scmp.eq.s32.totalorder %s14, 0
    %p141 = por %p139, %p140
    %p142 = scmp.ne.s32.totalorder %s134, %s136
    %p143 = scmp.eq.s32.totalorder %s19, 3
    %p144 = por %p142, %p143
    %p145 = scmp.ne.s32.totalorder %s136, %s137
    %p146 = scmp.eq.s32.totalorder %s19, 0
    %p147 = por %p145, %p146
    %p148 = scmp.ne.s32.totalorder %s136, %s137
    %p149 = scmp.eq.s32.totalorder %s20, 3
    %p150 = por %p148, %p149
    %p152 = scmp.ne.s32.totalorder %s137, %s151
    %p153 = scmp.eq.s32.totalorder %s20, 0
    %p154 = por %p152, %p153
    %s156 = sadd.s32 %s155, 1
    %p159 = scmp.eq.s32.totalorder %s14, 3
    %p160 = scmp.ne.s32.totalorder %s155, %s157
    %p161 = scmp.eq.s32.totalorder %s14, 0
    %p162 = por %p160, %p161
    %p163 = scmp.ne.s32.totalorder %s155, %s157
    %p164 = scmp.eq.s32.totalorder %s19, 3
    %p165 = por %p163, %p164
    %p166 = scmp.ne.s32.totalorder %s157, %s158
    %p167 = scmp.eq.s32.totalorder %s19, 0
    %p168 = por %p166, %p167
    %p169 = scmp.ne.s32.totalorder %s157, %s158
    %p170 = scmp.eq.s32.totalorder %s20, 3
    %p171 = por %p169, %p170
    %p173 = scmp.ne.s32.totalorder %s158, %s172
    %p174 = scmp.eq.s32.totalorder %s20, 0
    %p175 = por %p173, %p174
    %s177 = sadd.s32 %s176, 1
    %p180 = scmp.eq.s32.totalorder %s14, 3
    %p181 = scmp.ne.s32.totalorder %s176, %s178
    %p182 = scmp.eq.s32.totalorder %s14, 0
    %p183 = por %p181, %p182
    %p184 = scmp.ne.s32.totalorder %s176, %s178
    %p185 = scmp.eq.s32.totalorder %s19, 3
    %p186 = por %p184, %p185
    %p187 = scmp.ne.s32.totalorder %s178, %s179
    %p188 = scmp.eq.s32.totalorder %s19, 0
    %p189 = por %p187, %p188
    %p190 = scmp.ne.s32.totalorder %s178, %s179
    %p191 = scmp.eq.s32.totalorder %s20, 3
    %p192 = por %p190, %p191
    %p194 = scmp.ne.s32.totalorder %s179, %s193
    %p195 = scmp.eq.s32.totalorder %s20, 0
    %p196 = por %p194, %p195
    %s197 = ssub.s32 %s21, %s33
    %s198 = ssub.s32 %s22, %s29
    %s199 = sor.u32 %s197, %s198
    %p200 = scmp.eq.s32.totalorder %s199, 0
    %s202 = sadd.s32 %s201, 1
    %s203 = scalar_select %p200, %s201, %s202
    %p206 = pneg %p200
    %p207 = scmp.eq.s32.totalorder %s14, 3
    %p208 = por %p206, %p207
    %p209 = scmp.ne.s32.totalorder %s201, %s204
    %p210 = scmp.eq.s32.totalorder %s14, 0
    %p211 = por %p209, %p210
    %p212 = scmp.ne.s32.totalorder %s201, %s204
    %p213 = scmp.eq.s32.totalorder %s19, 3
    %p214 = por %p212, %p213
    %p215 = scmp.ne.s32.totalorder %s204, %s205
    %p216 = scmp.eq.s32.totalorder %s19, 0
    %p217 = por %p215, %p216
    %p218 = scmp.ne.s32.totalorder %s204, %s205
    %p219 = scmp.eq.s32.totalorder %s20, 3
    %p220 = por %p218, %p219
    %p222 = scmp.ne.s32.totalorder %s205, %s221
    %p223 = scmp.eq.s32.totalorder %s20, 0
    %p224 = por %p222, %p223
    %s225 = smul.u32 %s21, 2
    %s226 = sadd.s32 %s225, %s22
    %s227 = smul.u32 %s33, 2
    %s228 = sadd.s32 %s227, %s29
    %s229 = ssub.s32 %s226, %s228
    %p230 = scmp.eq.s32.totalorder %s229, 0
    %s232 = sadd.s32 %s231, 1
    %s233 = scalar_select %p230, %s231, %s232
    %p236 = pneg %p230
    %p237 = scmp.eq.s32.totalorder %s14, 3
    %p238 = por %p236, %p237
    %p239 = scmp.ne.s32.totalorder %s231, %s234
    %p240 = scmp.eq.s32.totalorder %s14, 0
    %p241 = por %p239, %p240
    %p242 = scmp.ne.s32.totalorder %s231, %s234
    %p243 = scmp.eq.s32.totalorder %s19, 3
    %p244 = por %p242, %p243
    %p245 = scmp.ne.s32.totalorder %s234, %s235
    %p246 = scmp.eq.s32.totalorder %s19, 0
    %p247 = por %p245, %p246
    %p248 = scmp.ne.s32.totalorder %s234, %s235
    %p249 = scmp.eq.s32.totalorder %s20, 3
    %p250 = por %p248, %p249
    %p252 = scmp.ne.s32.totalorder %s235, %s251
    %p253 = scmp.eq.s32.totalorder %s20, 0
    %p254 = por %p252, %p253
    %p255 = scmp.le.s32.totalorder 1, %s14
    %p256 = scmp.lt.s32.totalorder %s14, 5
    %p257 = pnand %p255, %p256
    %p258 = pneg %p257
    // Predicated region
    $region9: #{bottleneck_forward.4} parent=5 // pred_check
      _
    $region10: #{bottleneck_forward.4} parent=5 // pred_check_branch
      %260 = sbr.rel (%p257) target = $region12
    $region11: #{bottleneck_forward.4} parent=5 // pred_region
      %s261 = ssub.s32 %s14, 1
      // Predicated region
      $region13: #{bottleneck_forward.4} parent=11 // pred_check
        %p262 = pneg %p147
      $region14: #{bottleneck_forward.4} parent=11 // pred_check_branch
        %264 = sbr.rel (%p262) target = $region16
      $region15: #{bottleneck_forward.4} parent=11 // pred_region
        _
      $region16: #{bottleneck_forward.4} parent=11 // pred_fallthru
        _
      // Predicated region
      $region17: #{bottleneck_forward.4} parent=11 // pred_check
        %p265 = pneg %p168
      $region18: #{bottleneck_forward.4} parent=11 // pred_check_branch
        %267 = sbr.rel (%p265) target = $region20
      $region19: #{bottleneck_forward.4} parent=11 // pred_region
        _
      $region20: #{bottleneck_forward.4} parent=11 // pred_fallthru
        _
      // Predicated region
      $region21: #{bottleneck_forward.4} parent=11 // pred_check
        %p268 = pneg %p189
      $region22: #{bottleneck_forward.4} parent=11 // pred_check_branch
        %270 = sbr.rel (%p268) target = $region24
      $region23: #{bottleneck_forward.4} parent=11 // pred_region
        _
      $region24: #{bottleneck_forward.4} parent=11 // pred_fallthru
        _
    $region12: #{bottleneck_forward.4} parent=5 // pred_fallthru
      _
    %p271 = scmp.lt.s32.totalorder %s14, 4
    // Predicated region
    $region25: #{bottleneck_forward.4} parent=5 // pred_check
      %p272 = pneg %p271
    $region26: #{bottleneck_forward.4} parent=5 // pred_check_branch
      %274 = sbr.rel (%p272) target = $region28
    $region27: #{bottleneck_forward.4} parent=5 // pred_region
      // Predicated region
      $region29: #{bottleneck_forward.4} parent=27 // pred_check
        %p275 = pneg %p48
      $region30: #{bottleneck_forward.4} parent=27 // pred_check_branch
        %277 = sbr.rel (%p275) target = $region32
      $region31: #{bottleneck_forward.4} parent=27 // pred_region
        %s278 = smul.u32 4, %s22
        %p279 = scmp.lt.s32.totalorder %s21, 1
        %s280 = scalar_select %p279, %s21, 1
        %p281 = scmp.lt.s32.totalorder %s278, 7
        %s282 = scalar_select %p281, %s278, 7
        %s283 = smul.addr %s280, 8
        %s284 = sadd.s32 %s282, %s283
        %s285 = smul.addr %s284, 4
        %s286 = scalar_lea.vmem %s0, %s285
        %s287 = smul.u32 4, %s22
      $region32: #{bottleneck_forward.4} parent=27 // pred_fallthru
        _
      // Predicated region
      $region33: #{bottleneck_forward.4} parent=27 // pred_check
        %p288 = pneg %p84
      $region34: #{bottleneck_forward.4} parent=27 // pred_check_branch
        %290 = sbr.rel (%p288) target = $region36
      $region35: #{bottleneck_forward.4} parent=27 // pred_region
        %s291 = smul.u32 %s22, 2
        %s292 = ssub.s32 %s291, 1
        %p293 = scmp.gt.s32.totalorder %s292, 0
        %s294 = scalar_select %p293, %s292, 0
        %s295 = smul.u32 2, %s294
        %p296 = scmp.lt.s32.totalorder %s21, 1
        %s297 = scalar_select %p296, %s21, 1
        %p298 = scmp.lt.s32.totalorder %s295, 7
        %s299 = scalar_select %p298, %s295, 7
        %s300 = smul.addr %s297, 8
        %s301 = sadd.s32 %s299, %s300
        %s302 = smul.addr %s301, 4
        %s303 = scalar_lea.vmem %s1, %s302
        %s304 = smul.u32 %s22, 2
        %s305 = ssub.s32 %s304, 1
        %p306 = scmp.gt.s32.totalorder %s305, 0
        %s307 = scalar_select %p306, %s305, 0
        %s308 = smul.u32 2, %s307
      $region36: #{bottleneck_forward.4} parent=27 // pred_fallthru
        _
      // Predicated region
      $region37: #{bottleneck_forward.4} parent=27 // pred_check
        %p309 = pneg %p120
      $region38: #{bottleneck_forward.4} parent=27 // pred_check_branch
        %311 = sbr.rel (%p309) target = $region40
      $region39: #{bottleneck_forward.4} parent=27 // pred_region
        %s312 = sadd.s32 %s22, 1
        %s313 = smul.u32 %s312, 2
        %p314 = scmp.lt.s32.totalorder %s313, 3
        %s315 = scalar_select %p314, %s313, 3
        %s316 = smul.u32 2, %s315
        %p317 = scmp.lt.s32.totalorder %s21, 1
        %s318 = scalar_select %p317, %s21, 1
        %p319 = scmp.lt.s32.totalorder %s316, 7
        %s320 = scalar_select %p319, %s316, 7
        %s321 = smul.addr %s318, 8
        %s322 = sadd.s32 %s320, %s321
        %s323 = smul.addr %s322, 4
        %s324 = scalar_lea.vmem %s2, %s323
        %s325 = sadd.s32 %s22, 1
        %s326 = smul.u32 %s325, 2
        %p327 = scmp.lt.s32.totalorder %s326, 3
        %s328 = scalar_select %p327, %s326, 3
        %s329 = smul.u32 2, %s328
      $region40: #{bottleneck_forward.4} parent=27 // pred_fallthru
        _
    $region28: #{bottleneck_forward.4} parent=5 // pred_fallthru
      _
    %p330 = scmp.le.s32.totalorder 1, %s14
    %p331 = scmp.lt.s32.totalorder %s14, 5
    %p332 = pnand %p330, %p331
    %p333 = pneg %p332
    // Predicated region
    $region41: #{bottleneck_forward.4} parent=5 // pred_check
      _
    $region42: #{bottleneck_forward.4} parent=5 // pred_check_branch
      %335 = sbr.rel (%p332) target = $region44
    $region43: #{bottleneck_forward.4} parent=5 // pred_region
      %s336 = ssub.s32 %s14, 1
      %s337 = smul.u32 4, %s24
      %p338 = scmp.lt.s32.totalorder %s23, 1
      %s339 = scalar_select %p338, %s23, 1
      %p340 = scmp.lt.s32.totalorder %s337, 7
      %s341 = scalar_select %p340, %s337, 7
      %s342 = smul.addr %s339, 8
      %s343 = sadd.s32 %s341, %s342
      %s344 = smul.addr %s343, 4
      %s345 = scalar_lea.vmem %s0, %s344
      %p346 = pneg %p54
      %p347 = pneg %p51
      %s348 = smul.u32 %s24, 2
      %s349 = ssub.s32 %s348, 1
      %p350 = scmp.gt.s32.totalorder %s349, 0
      %s351 = scalar_select %p350, %s349, 0
      %s352 = smul.u32 2, %s351
      %p353 = scmp.lt.s32.totalorder %s23, 1
      %s354 = scalar_select %p353, %s23, 1
      %p355 = scmp.lt.s32.totalorder %s352, 7
      %s356 = scalar_select %p355, %s352, 7
      %s357 = smul.addr %s354, 8
      %s358 = sadd.s32 %s356, %s357
      %s359 = smul.addr %s358, 4
      %s360 = scalar_lea.vmem %s1, %s359
      %p361 = pneg %p90
      %p362 = pneg %p87
      %s363 = sadd.s32 %s24, 1
      %s364 = smul.u32 %s363, 2
      %p365 = scmp.lt.s32.totalorder %s364, 3
      %s366 = scalar_select %p365, %s364, 3
      %s367 = smul.u32 2, %s366
      %p368 = scmp.lt.s32.totalorder %s23, 1
      %s369 = scalar_select %p368, %s23, 1
      %p370 = scmp.lt.s32.totalorder %s367, 7
      %s371 = scalar_select %p370, %s367, 7
      %s372 = smul.addr %s369, 8
      %s373 = sadd.s32 %s371, %s372
      %s374 = smul.addr %s373, 4
      %s375 = scalar_lea.vmem %s2, %s374
      %p376 = pneg %p126
      %p377 = pneg %p123
      %p378 = pneg %p147
      %p379 = pneg %p144
      %p380 = pneg %p168
      %p381 = pneg %p165
      %p382 = pneg %p189
      %p383 = pneg %p186
      %p384 = pneg %p217
      %p385 = pneg %p214
      %s386 = smul.u32 4, %s24
      %p387 = scmp.lt.s32.totalorder %s23, 1
      %s388 = scalar_select %p387, %s23, 1
      %p389 = scmp.lt.s32.totalorder %s386, 7
      %s390 = scalar_select %p389, %s386, 7
      %s391 = smul.addr %s388, 8
      %s392 = sadd.s32 %s390, %s391
      %s393 = smul.addr %s392, 4
      %s394 = scalar_lea.vmem %s6, %s393
      %p395 = pneg %p247
      %p396 = pneg %p244
      %s397 = smul.u32 %s23, 2
      %s398 = sadd.s32 %s397, %s24
      %p399 = scmp.lt.s32.totalorder %s398, 3
      %s400 = scalar_select %p399, %s398, 3
      %s401 = smul.addr %s400, 8
      %s402 = scalar_lea.vmem %s7, %s401
      %s403 = smul.u32 4, %s24
      %p404 = scmp.lt.s32.totalorder %s23, 1
      %s405 = scalar_select %p404, %s23, 1
      %p406 = scmp.lt.s32.totalorder %s403, 7
      %s407 = scalar_select %p406, %s403, 7
      %s408 = smul.addr %s405, 8
      %s409 = sadd.s32 %s407, %s408
      %s410 = smul.addr %s409, 4
      %s411 = scalar_lea.vmem %s0, %s410
      %s412 = smul.u32 4, %s24
      %s413 = smul.u32 %s24, 2
      %s414 = ssub.s32 %s413, 1
      %p415 = scmp.gt.s32.totalorder %s414, 0
      %s416 = scalar_select %p415, %s414, 0
      %s417 = smul.u32 2, %s416
      %p418 = scmp.lt.s32.totalorder %s23, 1
      %s419 = scalar_select %p418, %s23, 1
      %p420 = scmp.lt.s32.totalorder %s417, 7
      %s421 = scalar_select %p420, %s417, 7
      %s422 = smul.addr %s419, 8
      %s423 = sadd.s32 %s421, %s422
      %s424 = smul.addr %s423, 4
      %s425 = scalar_lea.vmem %s1, %s424
      %s426 = smul.u32 %s24, 2
      %s427 = ssub.s32 %s426, 1
      %p428 = scmp.gt.s32.totalorder %s427, 0
      %s429 = scalar_select %p428, %s427, 0
      %s430 = smul.u32 2, %s429
      %s431 = sadd.s32 %s24, 1
      %s432 = smul.u32 %s431, 2
      %p433 = scmp.lt.s32.totalorder %s432, 3
      %s434 = scalar_select %p433, %s432, 3
      %s435 = smul.u32 2, %s434
      %p436 = scmp.lt.s32.totalorder %s23, 1
      %s437 = scalar_select %p436, %s23, 1
      %p438 = scmp.lt.s32.totalorder %s435, 7
      %s439 = scalar_select %p438, %s435, 7
      %s440 = smul.addr %s437, 8
      %s441 = sadd.s32 %s439, %s440
      %s442 = smul.addr %s441, 4
      %s443 = scalar_lea.vmem %s2, %s442
      %s444 = sadd.s32 %s24, 1
      %s445 = smul.u32 %s444, 2
      %p446 = scmp.lt.s32.totalorder %s445, 3
      %s447 = scalar_select %p446, %s445, 3
      %s448 = smul.u32 2, %s447
      %s449 = smul.u32 4, %s24
      %p450 = scmp.lt.s32.totalorder %s23, 1
      %s451 = scalar_select %p450, %s23, 1
      %p452 = scmp.lt.s32.totalorder %s449, 7
      %s453 = scalar_select %p452, %s449, 7
      %s454 = smul.addr %s451, 8
      %s455 = sadd.s32 %s453, %s454
      %s456 = smul.addr %s455, 4
      %s457 = scalar_lea.vmem %s6, %s456
      %s458 = smul.u32 4, %s24
      %s459 = smul.u32 %s23, 2
      %s460 = sadd.s32 %s459, %s24
      %p461 = scmp.lt.s32.totalorder %s460, 3
      %s462 = scalar_select %p461, %s460, 3
      %s463 = smul.addr %s462, 8
      %s464 = scalar_lea.vmem %s7, %s463
      %s465 = smul.u32 %s23, 2
      %s466 = sadd.s32 %s465, %s24
      %v468 = vld [vmem:[%s411] sm:$0xf]
      %v469 = vld [vmem:[%s411 + $0x4] sm:$0xf]
      %v470 = vld [vmem:[%s411 + $0x8] sm:$0xf]
      %v471 = vld [vmem:[%s411 + $0xc] sm:$0xf]
      %vm472 = vsmask.f32 256
      %vm473 = vsmask.f32 4368
      %vm474 = vmor %vm472, %vm473
      %v476 = vshrl.u32 %v468, 16
      %v478 = vrot.slane %v476, 7
      %v479 = vshll.u32 %v468, 16
      %v481 = vor.u32 %v478, %v479
      %v482 = vrot.slane %v478, 4
      %v484 = vshrl.u32 %v469, 16
      %v486 = vrot.slane %v484, 7
      %v487 = vshll.u32 %v469, 16
      %v489 = vor.u32 %v486, %v487
      %v490 = vsel %vm474, %v482, %v489
      %v491 = vrot.slane %v486, 4
      %v493 = vshrl.u32 %v470, 16
      %v495 = vrot.slane %v493, 7
      %v496 = vshll.u32 %v470, 16
      %v498 = vor.u32 %v495, %v496
      %v499 = vsel %vm474, %v491, %v498
      %v500 = vrot.slane %v495, 4
      %v502 = vshrl.u32 %v471, 16
      %v504 = vrot.slane %v502, 7
      %v505 = vshll.u32 %v471, 16
      %v507 = vor.u32 %v504, %v505
      %v508 = vsel %vm474, %v500, %v507
      %v509 = vrot.slane %v504, 4
      %vm515 = vcmask 1043456
      %vm516 = vsmask.f32 7938
      %vm517 = vmand %vm515, %vm516
      %v518 = vld [vmem:[#allocation2 + $0x4] sm:$0xf]
      %v519 = vsel %vm517, %v481, %v518
      %520 = vst [vmem:[#allocation2 + $0x4] sm:$0xf] %v519
      %521 = vst [vmem:[#allocation2 + $0x8] sm:$0xf] %v490
      %522 = vst [vmem:[#allocation2 + $0xc] sm:$0xf] %v499
      %523 = vst [vmem:[#allocation2 + $0x10] sm:$0xf] %v508
      %vm524 = vcmask 1040384
      %vm525 = vmand %vm524, %vm472
      %v526 = vld [vmem:[#allocation2 + $0x14] sm:$0x1]
      %v527 = vsel %vm525, %v509, %v526
      %528 = vst [vmem:[#allocation2 + $0x14] sm:$0x1] %v527
      %p529 = scmp.gt.s32.totalorder %s24, 0
      // Predicated region
      $region45: #{bottleneck_forward.4} parent=43 // pred_check
        %p530 = pneg %p529
      $region46: #{bottleneck_forward.4} parent=43 // pred_check_branch
        %532 = sbr.rel (%p530) target = $region48
      $region47: #{bottleneck_forward.4} parent=43 // pred_region
        %v533 = vld [vmem:[%s425] sm:$0x8]
        %v534 = vld [vmem:[%s425 + $0x4] sm:$0xf]
        %v536 = vshrl.u32 %v533, 16
        %v538 = vrot.slane %v536, 7
        %v539 = vrot.slane %v538, 4
        %v541 = vshrl.u32 %v534, 16
        %v543 = vrot.slane %v541, 7
        %v544 = vshll.u32 %v534, 16
        %v546 = vor.u32 %v543, %v544
        %v547 = vsel %vm474, %v539, %v546
        %v548 = vrot.slane %v543, 4
        %551 = vst [vmem:[#allocation2] sm:$0xf] %v547
        %v552 = vld [vmem:[#allocation2 + $0x4] sm:$0x1]
        %v553 = vsel %vm525, %v548, %v552
        %554 = vst [vmem:[#allocation2 + $0x4] sm:$0x1] %v553
      $region48: #{bottleneck_forward.4} parent=43 // pred_fallthru
        _
      %p555 = scmp.eq.s32.totalorder %s24, 0
      // Predicated region
      $region49: #{bottleneck_forward.4} parent=43 // pred_check
        %p556 = pneg %p555
      $region50: #{bottleneck_forward.4} parent=43 // pred_check_branch
        %558 = sbr.rel (%p556) target = $region52
      $region51: #{bottleneck_forward.4} parent=43 // pred_region
        %559 = vst [vmem:[#allocation2] sm:$0xf] 0
        %v560 = vld [vmem:[#allocation2 + $0x4] sm:$0x1]
        %v561 = vsel %vm525, 0, %v560
        %562 = vst [vmem:[#allocation2 + $0x4] sm:$0x1] %v561
      $region52: #{bottleneck_forward.4} parent=43 // pred_fallthru
        _
      %p563 = scmp.lt.s32.totalorder %s24, 1
      // Predicated region
      $region53: #{bottleneck_forward.4} parent=43 // pred_check
        %p564 = pneg %p563
      $region54: #{bottleneck_forward.4} parent=43 // pred_check_branch
        %566 = sbr.rel (%p564) target = $region56
      $region55: #{bottleneck_forward.4} parent=43 // pred_region
        %v567 = vld [vmem:[%s443] sm:$0xf]
        %v568 = vld [vmem:[%s443 + $0x4] sm:$0x1]
        %v570 = vshrl.u32 %v567, 16
        %v572 = vrot.slane %v570, 7
        %v573 = vshll.u32 %v567, 16
        %v575 = vor.u32 %v572, %v573
        %v576 = vrot.slane %v572, 4
        %v578 = vshll.u32 %v568, 16
        %v580 = vsel %vm474, %v576, %v578
        %v583 = vld [vmem:[#allocation2 + $0x14] sm:$0xf]
        %v584 = vsel %vm517, %v575, %v583
        %585 = vst [vmem:[#allocation2 + $0x14] sm:$0xf] %v584
        %586 = vst [vmem:[#allocation2 + $0x18] sm:$0x1] %v580
      $region56: #{bottleneck_forward.4} parent=43 // pred_fallthru
        _
      %p587 = scmp.eq.s32.totalorder %s24, 1
      // Predicated region
      $region57: #{bottleneck_forward.4} parent=43 // pred_check
        %p588 = pneg %p587
      $region58: #{bottleneck_forward.4} parent=43 // pred_check_branch
        %590 = sbr.rel (%p588) target = $region60
      $region59: #{bottleneck_forward.4} parent=43 // pred_region
        %v591 = vld [vmem:[#allocation2 + $0x14] sm:$0xf]
        %v592 = vsel %vm517, 0, %v591
        %593 = vst [vmem:[#allocation2 + $0x14] sm:$0xf] %v592
        %594 = vst [vmem:[#allocation2 + $0x18] sm:$0x1] 0
      $region60: #{bottleneck_forward.4} parent=43 // pred_fallthru
        _
      %v595 = vlaneseq
      %v596 = vshrl.u32 %v595, 7
      %v597 = vadd.s32 %v596, 8
      %v598 = vadd.s32 %v596, 16
      %v599 = vadd.s32 %v596, 24
      %vm600 = vcmp.lt.s32.totalorder %v596, 0
      %v601 = vsub.s32 0, %v596
      %v602 = vsel %vm600, %v601, %v596
      %v603 = vshrl.u32 %v602, 3
      %v604 = vand.u32 %v602, 7
      %v605 = vsub.s32 0, %v604
      %v606 = vsel %vm600, %v605, %v604
      %vm607 = vcmp.lt.s32.totalorder %v597, 0
      %v608 = vsub.s32 0, %v597
      %v609 = vsel %vm607, %v608, %v597
      %v610 = vshrl.u32 %v609, 3
      %v611 = vand.u32 %v609, 7
      %v612 = vsub.s32 0, %v611
      %v613 = vsel %vm607, %v612, %v611
      %vm614 = vcmp.lt.s32.totalorder %v598, 0
      %v615 = vsub.s32 0, %v598
      %v616 = vsel %vm614, %v615, %v598
      %v617 = vshrl.u32 %v616, 3
      %v618 = vand.u32 %v616, 7
      %v619 = vsub.s32 0, %v618
      %v620 = vsel %vm614, %v619, %v618
      %vm621 = vcmp.lt.s32.totalorder %v599, 0
      %v622 = vsub.s32 0, %v599
      %v623 = vsel %vm621, %v622, %v599
      %v624 = vshrl.u32 %v623, 3
      %v625 = vand.u32 %v623, 7
      %v626 = vsub.s32 0, %v625
      %v627 = vsel %vm621, %v626, %v625
      %vm628 = vcmp.ne.s32.totalorder %v606, 0
      %vm629 = vcmp.ne.s32.totalorder %v613, 0
      %vm630 = vcmp.ne.s32.totalorder %v620, 0
      %vm631 = vcmp.ne.s32.totalorder %v627, 0
      %vm632 = vcmp.lt.s32.totalorder %v606, 0
      %vm633 = vcmp.lt.s32.totalorder %v613, 0
      %vm634 = vcmp.lt.s32.totalorder %v620, 0
      %vm635 = vcmp.lt.s32.totalorder %v627, 0
      %vm636 = vmand %vm632, %vm628
      %vm637 = vmand %vm633, %vm629
      %vm638 = vmand %vm634, %vm630
      %vm639 = vmand %vm635, %vm631
      %v640 = vadd.s32 %v606, 8
      %v641 = vadd.s32 %v613, 8
      %v642 = vadd.s32 %v620, 8
      %v643 = vadd.s32 %v627, 8
      %v644 = vsel %vm636, %v640, %v606
      %v645 = vsel %vm637, %v641, %v613
      %v646 = vsel %vm638, %v642, %v620
      %v647 = vsel %vm639, %v643, %v627
      %vm648 = vcmp.ge.s32.totalorder %v644, 1
      %vm649 = vcmp.ge.s32.totalorder %v645, 1
      %vm650 = vcmp.ge.s32.totalorder %v646, 1
      %vm651 = vcmp.ge.s32.totalorder %v647, 1
      %v652 = vsel %vm648, 1, 0
      %v653 = vsel %vm649, 1, 0
      %v654 = vsel %vm650, 1, 0
      %v655 = vsel %vm651, 1, 0
      %v656 = vcvt.s32.f32 %v652
      %v657 = vcvt.s32.f32 %v653
      %v658 = vcvt.s32.f32 %v654
      %v659 = vcvt.s32.f32 %v655
      %v660 = vpack.c.bf16 %v657, %v656
      %v661 = vpack.c.bf16 %v659, %v658
      %vm662 = vcmp.le.s32.totalorder %v644, 6
      %vm663 = vcmp.le.s32.totalorder %v645, 6
      %vm664 = vcmp.le.s32.totalorder %v646, 6
      %vm665 = vcmp.le.s32.totalorder %v647, 6
      %v666 = vsel %vm662, 1, 0
      %v667 = vsel %vm663, 1, 0
      %v668 = vsel %vm664, 1, 0
      %v669 = vsel %vm665, 1, 0
      %v670 = vcvt.s32.f32 %v666
      %v671 = vcvt.s32.f32 %v667
      %v672 = vcvt.s32.f32 %v668
      %v673 = vcvt.s32.f32 %v669
      %v674 = vpack.c.bf16 %v671, %v670
      %v675 = vpack.c.bf16 %v673, %v672
      %v676 = vld [vmem:[#allocation2] sm:$0xf]
      %v677 = vld [vmem:[#allocation2 + $0x4] sm:$0xf]
      %v678 = vld [vmem:[#allocation2 + $0x8] sm:$0xf]
      %v679 = vld [vmem:[#allocation2 + $0xc] sm:$0xf]
      %v683 = vunpack.c.l.s4 839922192
      %v684 = vunpack.c.0.s8 %v683
      %v685 = vlaneseq
      %v686 = vshrl.u32 %v685, 7
      %v687 = vsub.s32 %v684, %v686
      %v688 = vrot.slane %v660, %v687
      %v690 = vunpack.c.l.s4 1985246804
      %v691 = vunpack.c.0.s8 %v690
      %v692 = vlaneseq
      %v693 = vshrl.u32 %v692, 7
      %v694 = vsub.s32 %v691, %v693
      %v695 = vrot.slane %v660, %v694
      %v697 = vunpack.c.l.s4 839922192
      %v698 = vunpack.c.0.s8 %v697
      %v699 = vlaneseq
      %v700 = vshrl.u32 %v699, 7
      %v701 = vsub.s32 %v698, %v700
      %v702 = vrot.slane %v661, %v701
      %v704 = vunpack.c.l.s4 1985246804
      %v705 = vunpack.c.0.s8 %v704
      %v706 = vlaneseq
      %v707 = vshrl.u32 %v706, 7
      %v708 = vsub.s32 %v705, %v707
      %v709 = vrot.slane %v661, %v708
      %v714 = vmul.bf16 %v676, %v688
      %v715 = vmul.bf16 %v677, %v695
      %v716 = vmul.bf16 %v678, %v702
      %v717 = vmul.bf16 %v679, %v709
      %718 = vst [vmem:[#allocation3] sm:$0xf] %v714
      %719 = vst [vmem:[#allocation3 + $0x8] sm:$0xf] %v715
      %720 = vst [vmem:[#allocation3 + $0x10] sm:$0xf] %v716
      %721 = vst [vmem:[#allocation3 + $0x18] sm:$0xf] %v717
      %v722 = vld [vmem:[#allocation2] sm:$0xe]
      %v723 = vld [vmem:[#allocation2 + $0x4] sm:$0xf]
      %v724 = vld [vmem:[#allocation2 + $0x8] sm:$0xf]
      %v725 = vld [vmem:[#allocation2 + $0xc] sm:$0xf]
      %v726 = vld [vmem:[#allocation2 + $0x10] sm:$0x1]
      %v730 = vunpack.c.l.s4 839922192
      %v731 = vunpack.c.0.s8 %v730
      %v732 = vlaneseq
      %v733 = vshrl.u32 %v732, 7
      %v734 = vsub.s32 %v731, %v733
      %v735 = vrot.slane %v674, %v734
      %v737 = vunpack.c.l.s4 1985246804
      %v738 = vunpack.c.0.s8 %v737
      %v739 = vlaneseq
      %v740 = vshrl.u32 %v739, 7
      %v741 = vsub.s32 %v738, %v740
      %v742 = vrot.slane %v674, %v741
      %v744 = vunpack.c.l.s4 839922192
      %v745 = vunpack.c.0.s8 %v744
      %v746 = vlaneseq
      %v747 = vshrl.u32 %v746, 7
      %v748 = vsub.s32 %v745, %v747
      %v749 = vrot.slane %v675, %v748
      %v751 = vunpack.c.l.s4 1985246804
      %v752 = vunpack.c.0.s8 %v751
      %v753 = vlaneseq
      %v754 = vshrl.u32 %v753, 7
      %v755 = vsub.s32 %v752, %v754
      %v756 = vrot.slane %v675, %v755
      %vm757 = vcmask 1044484
      %vm758 = vmor %vm524, %vm757
      %v759 = vrot.slane %v735, 7
      %v760 = vrot.slane %v759, 4
      %v761 = vrot.slane %v742, 7
      %v762 = vsel %vm758, %v760, %v761
      %v763 = vrot.slane %v761, 4
      %v764 = vrot.slane %v749, 7
      %v765 = vsel %vm758, %v763, %v764
      %v766 = vrot.slane %v764, 4
      %v767 = vrot.slane %v756, 7
      %v768 = vsel %vm758, %v766, %v767
      %v769 = vrot.slane %v767, 4
      %v775 = vmul.bf16 %v722, %v759
      %v776 = vmul.bf16 %v723, %v762
      %v777 = vmul.bf16 %v724, %v765
      %v778 = vmul.bf16 %v725, %v768
      %v779 = vmul.bf16 %v726, %v769
      %vm785 = vcmask 1042432
      %vm786 = vcmask 1046532
      %vm787 = vmor %vm785, %vm786
      %v788 = vrot.slane %v775, 5
      %v789 = vrot.slane %v788, 4
      %v790 = vrot.slane %v776, 5
      %v791 = vsel %vm787, %v789, %v790
      %v792 = vrot.slane %v790, 4
      %v793 = vrot.slane %v777, 5
      %v794 = vsel %vm787, %v792, %v793
      %v795 = vrot.slane %v793, 4
      %v796 = vrot.slane %v778, 5
      %v797 = vsel %vm787, %v795, %v796
      %v798 = vrot.slane %v796, 4
      %v799 = vrot.slane %v779, 5
      %v800 = vsel %vm787, %v798, %v799
      %805 = vst [vmem:[#allocation3 + $0x4] sm:$0xf] %v791
      %806 = vst [vmem:[#allocation3 + $0xc] sm:$0xf] %v794
      %807 = vst [vmem:[#allocation3 + $0x14] sm:$0xf] %v797
      %808 = vst [vmem:[#allocation3 + $0x1c] sm:$0xf] %v800
      %v809 = vld [vmem:[#allocation3] sm:$0xff]
      %v810 = vld [vmem:[#allocation3 + $0x8] sm:$0xff]
      %v811 = vld [vmem:[#allocation3 + $0x10] sm:$0xff]
      %v812 = vld [vmem:[#allocation3 + $0x18] sm:$0xff]
      %v813 = vld [vmem:[%s3] sm:$0xf]
      %v814 = vld [vmem:[%s3 + $0x4] sm:$0xf]
      %v815 = vld [vmem:[%s3 + $0x8] sm:$0xf]
      %v816 = vld [vmem:[%s3 + $0xc] sm:$0xf]
      %v817 = vld [vmem:[%s3 + $0x10] sm:$0xf]
      %v818 = vld [vmem:[%s3 + $0x14] sm:$0xf]
      %v819 = vld [vmem:[%s3 + $0x18] sm:$0xf]
      %v820 = vld [vmem:[%s3 + $0x1c] sm:$0xf]
      %v821 = vld [vmem:[%s3 + $0x20] sm:$0xf]
      %v822 = vld [vmem:[%s3 + $0x24] sm:$0xf]
      %v823 = vld [vmem:[%s3 + $0x28] sm:$0xf]
      %v824 = vld [vmem:[%s3 + $0x2c] sm:$0xf]
      %v825 = vld [vmem:[%s3 + $0x30] sm:$0xf]
      %v826 = vld [vmem:[%s3 + $0x34] sm:$0xf]
      %v827 = vld [vmem:[%s3 + $0x38] sm:$0xf]
      %v828 = vld [vmem:[%s3 + $0x3c] sm:$0xf]
      %v829 = vld [vmem:[%s3 + $0x40] sm:$0xf]
      %v830 = vld [vmem:[%s3 + $0x44] sm:$0xf]
      %v831 = vld [vmem:[%s3 + $0x48] sm:$0xf]
      %v832 = vld [vmem:[%s3 + $0x4c] sm:$0xf]
      %v833 = vld [vmem:[%s3 + $0x50] sm:$0xf]
      %v834 = vld [vmem:[%s3 + $0x54] sm:$0xf]
      %v835 = vld [vmem:[%s3 + $0x58] sm:$0xf]
      %v836 = vld [vmem:[%s3 + $0x5c] sm:$0xf]
      %v837 = vld [vmem:[%s3 + $0x60] sm:$0xf]
      %v838 = vld [vmem:[%s3 + $0x64] sm:$0xf]
      %v839 = vld [vmem:[%s3 + $0x68] sm:$0xf]
      %v840 = vld [vmem:[%s3 + $0x6c] sm:$0xf]
      %v841 = vld [vmem:[%s3 + $0x70] sm:$0xf]
      %v842 = vld [vmem:[%s3 + $0x74] sm:$0xf]
      %v843 = vld [vmem:[%s3 + $0x78] sm:$0xf]
      %v844 = vld [vmem:[%s3 + $0x7c] sm:$0xf]
      %v845 = vld [vmem:[#allocation2 + $0x4] sm:$0xf]
      %v846 = vld [vmem:[#allocation2 + $0x8] sm:$0xf]
      %v847 = vld [vmem:[#allocation2 + $0xc] sm:$0xf]
      %v848 = vld [vmem:[#allocation2 + $0x10] sm:$0xf]
      %v849 = vmul.bf16 %v845, %v688
      %v850 = vmul.bf16 %v846, %v695
      %v851 = vmul.bf16 %v847, %v702
      %v852 = vmul.bf16 %v848, %v709
      %853 = vst [vmem:[#allocation3] sm:$0xf] %v849
      %854 = vst [vmem:[#allocation3 + $0x8] sm:$0xf] %v850
      %855 = vst [vmem:[#allocation3 + $0x10] sm:$0xf] %v851
      %856 = vst [vmem:[#allocation3 + $0x18] sm:$0xf] %v852
      %v857 = vld [vmem:[#allocation2 + $0x4] sm:$0xe]
      %v858 = vld [vmem:[#allocation2 + $0x8] sm:$0xf]
      %v859 = vld [vmem:[#allocation2 + $0xc] sm:$0xf]
      %v860 = vld [vmem:[#allocation2 + $0x10] sm:$0xf]
      %v861 = vld [vmem:[#allocation2 + $0x14] sm:$0x1]
      %v862 = vmul.bf16 %v857, %v759
      %v863 = vmul.bf16 %v858, %v762
      %v864 = vmul.bf16 %v859, %v765
      %v865 = vmul.bf16 %v860, %v768
      %v866 = vmul.bf16 %v861, %v769
      %v872 = vrot.slane %v862, 5
      %v873 = vrot.slane %v872, 4
      %v874 = vrot.slane %v863, 5
      %v875 = vsel %vm787, %v873, %v874
      %v876 = vrot.slane %v874, 4
      %v877 = vrot.slane %v864, 5
      %v878 = vsel %vm787, %v876, %v877
      %v879 = vrot.slane %v877, 4
      %v880 = vrot.slane %v865, 5
      %v881 = vsel %vm787, %v879, %v880
      %v882 = vrot.slane %v880, 4
      %v883 = vrot.slane %v866, 5
      %v884 = vsel %vm787, %v882, %v883
      %889 = vst [vmem:[#allocation3 + $0x4] sm:$0xf] %v875
      %890 = vst [vmem:[#allocation3 + $0xc] sm:$0xf] %v878
      %891 = vst [vmem:[#allocation3 + $0x14] sm:$0xf] %v881
      %892 = vst [vmem:[#allocation3 + $0x1c] sm:$0xf] %v884
      %v893 = vld [vmem:[#allocation3] sm:$0xff]
      %v894 = vld [vmem:[#allocation3 + $0x8] sm:$0xff]
      %v895 = vld [vmem:[#allocation3 + $0x10] sm:$0xff]
      %v896 = vld [vmem:[#allocation3 + $0x18] sm:$0xff]
      %s897 = scalar_lea.vmem %s3, 128
      %v898 = vld [vmem:[%s897] sm:$0xf]
      %v899 = vld [vmem:[%s897 + $0x4] sm:$0xf]
      %v900 = vld [vmem:[%s897 + $0x8] sm:$0xf]
      %v901 = vld [vmem:[%s897 + $0xc] sm:$0xf]
      %v902 = vld [vmem:[%s897 + $0x10] sm:$0xf]
      %v903 = vld [vmem:[%s897 + $0x14] sm:$0xf]
      %v904 = vld [vmem:[%s897 + $0x18] sm:$0xf]
      %v905 = vld [vmem:[%s897 + $0x1c] sm:$0xf]
      %v906 = vld [vmem:[%s897 + $0x20] sm:$0xf]
      %v907 = vld [vmem:[%s897 + $0x24] sm:$0xf]
      %v908 = vld [vmem:[%s897 + $0x28] sm:$0xf]
      %v909 = vld [vmem:[%s897 + $0x2c] sm:$0xf]
      %v910 = vld [vmem:[%s897 + $0x30] sm:$0xf]
      %v911 = vld [vmem:[%s897 + $0x34] sm:$0xf]
      %v912 = vld [vmem:[%s897 + $0x38] sm:$0xf]
      %v913 = vld [vmem:[%s897 + $0x3c] sm:$0xf]
      %v914 = vld [vmem:[%s897 + $0x40] sm:$0xf]
      %v915 = vld [vmem:[%s897 + $0x44] sm:$0xf]
      %v916 = vld [vmem:[%s897 + $0x48] sm:$0xf]
      %v917 = vld [vmem:[%s897 + $0x4c] sm:$0xf]
      %v918 = vld [vmem:[%s897 + $0x50] sm:$0xf]
      %v919 = vld [vmem:[%s897 + $0x54] sm:$0xf]
      %v920 = vld [vmem:[%s897 + $0x58] sm:$0xf]
      %v921 = vld [vmem:[%s897 + $0x5c] sm:$0xf]
      %v922 = vld [vmem:[%s897 + $0x60] sm:$0xf]
      %v923 = vld [vmem:[%s897 + $0x64] sm:$0xf]
      %v924 = vld [vmem:[%s897 + $0x68] sm:$0xf]
      %v925 = vld [vmem:[%s897 + $0x6c] sm:$0xf]
      %v926 = vld [vmem:[%s897 + $0x70] sm:$0xf]
      %v927 = vld [vmem:[%s897 + $0x74] sm:$0xf]
      %v928 = vld [vmem:[%s897 + $0x78] sm:$0xf]
      %v929 = vld [vmem:[%s897 + $0x7c] sm:$0xf]
      %v934 = vunpack.c.l.b16 %v893
      %v935 = vunpack.c.h.b16 %v893
      %v936 = vunpack.c.l.b16 %v894
      %v937 = vunpack.c.h.b16 %v894
      %v938 = vunpack.c.l.b16 %v895
      %v939 = vunpack.c.h.b16 %v895
      %v940 = vunpack.c.l.b16 %v896
      %v941 = vunpack.c.h.b16 %v896
      %v942 = vpack.c.b16 %v936, %v934
      %v943 = vpack.c.b16 %v937, %v935
      %v944 = vpack.c.b16 %v940, %v938
      %v945 = vpack.c.b16 %v941, %v939
      %v982 = vunpack.c.l.b16 %v898
      %v983 = vunpack.c.l.b16 %v899
      %v984 = vunpack.c.l.b16 %v900
      %v985 = vunpack.c.l.b16 %v901
      %v986 = vunpack.c.l.b16 %v902
      %v987 = vunpack.c.l.b16 %v903
      %v988 = vunpack.c.l.b16 %v904
      %v989 = vunpack.c.l.b16 %v905
      %v990 = vunpack.c.l.b16 %v906
      %v991 = vunpack.c.l.b16 %v907
      %v992 = vunpack.c.l.b16 %v908
      %v993 = vunpack.c.l.b16 %v909
      %v994 = vunpack.c.l.b16 %v910
      %v995 = vunpack.c.l.b16 %v911
      %v996 = vunpack.c.l.b16 %v912
      %v997 = vunpack.c.l.b16 %v913
      %v998 = vunpack.c.l.b16 %v914
      %v999 = vunpack.c.l.b16 %v915
      %v1000 = vunpack.c.l.b16 %v916
      %v1001 = vunpack.c.l.b16 %v917
      %v1002 = vunpack.c.l.b16 %v918
      %v1003 = vunpack.c.l.b16 %v919
      %v1004 = vunpack.c.l.b16 %v920
      %v1005 = vunpack.c.l.b16 %v921
      %v1006 = vunpack.c.l.b16 %v922
      %v1007 = vunpack.c.l.b16 %v923
      %v1008 = vunpack.c.l.b16 %v924
      %v1009 = vunpack.c.l.b16 %v925
      %v1010 = vunpack.c.l.b16 %v926
      %v1011 = vunpack.c.l.b16 %v927
      %v1012 = vunpack.c.l.b16 %v928
      %v1013 = vunpack.c.l.b16 %v929
      %v1014 = vpack.c.b16 %v983, %v982
      %v1015 = vpack.c.b16 %v985, %v984
      %v1016 = vpack.c.b16 %v987, %v986
      %v1017 = vpack.c.b16 %v989, %v988
      %v1018 = vpack.c.b16 %v991, %v990
      %v1019 = vpack.c.b16 %v993, %v992
      %v1020 = vpack.c.b16 %v995, %v994
      %v1021 = vpack.c.b16 %v997, %v996
      %v1022 = vpack.c.b16 %v999, %v998
      %v1023 = vpack.c.b16 %v1001, %v1000
      %v1024 = vpack.c.b16 %v1003, %v1002
      %v1025 = vpack.c.b16 %v1005, %v1004
      %v1026 = vpack.c.b16 %v1007, %v1006
      %v1027 = vpack.c.b16 %v1009, %v1008
      %v1028 = vpack.c.b16 %v1011, %v1010
      %v1029 = vpack.c.b16 %v1013, %v1012
      %1046 = vmatprep.subr.bf16.mxu0 0
      %1047 = vmatpush1.bf16.msra.mxu0 %v1021
      %1048 = vmatprep.subr.bf16.mxu0 0
      %1049 = vmatpush1.bf16.msra.mxu0 %v1020
      %1050 = vmatprep.subr.bf16.mxu0 0
      %1051 = vmatpush1.bf16.msra.mxu0 %v1019
      %1052 = vmatprep.subr.bf16.mxu0 0
      %1053 = vmatpush1.bf16.msra.mxu0 %v1018
      %1054 = vmatprep.subr.bf16.mxu0 0
      %1055 = vmatpush1.bf16.msra.mxu0 %v1017
      %1056 = vmatprep.subr.bf16.mxu0 0
      %1057 = vmatpush1.bf16.msra.mxu0 %v1016
      %1058 = vmatprep.subr.bf16.mxu0 0
      %1059 = vmatpush1.bf16.msra.mxu0 %v1015
      %1060 = vmatprep.subr.bf16.mxu0 0
      %1061 = vmatpush1.bf16.msra.mxu0 %v1014
      %1062 = vmatprep.subr.bf16.mxu0 0
      %1063 = vmatpush2.bf16.msra.mxu0 %v1029
      %1064 = vmatprep.subr.bf16.mxu0 0
      %1065 = vmatpush2.bf16.msra.mxu0 %v1028
      %1066 = vmatprep.subr.bf16.mxu0 0
      %1067 = vmatpush2.bf16.msra.mxu0 %v1027
      %1068 = vmatprep.subr.bf16.mxu0 0
      %1069 = vmatpush2.bf16.msra.mxu0 %v1026
      %1070 = vmatprep.subr.bf16.mxu0 0
      %1071 = vmatpush2.bf16.msra.mxu0 %v1025
      %1072 = vmatprep.subr.bf16.mxu0 0
      %1073 = vmatpush2.bf16.msra.mxu0 %v1024
      %1074 = vmatprep.subr.bf16.mxu0 0
      %1075 = vmatpush2.bf16.msra.mxu0 %v1023
      %1076 = vmatprep.subr.bf16.mxu0 0
      %1077 = vmatpush2.bf16.msra.mxu0 %v1022
      %1078 = vmatprep.mubr.bf16.mxu0 %v943
      %1079 = vmatmul.mubr.bf16.gmra.mxu0 %v942
      %v1080 = vpop.f32.mrf.mxu0
      %v1081 = vadd.f32 0.0, %v1080
      %v1082 = vpop.f32.mrf.mxu0
      %v1083 = vpop.f32.mrf.mxu0
      %v1084 = vadd.f32 0.0, %v1083
      %v1085 = vpop.f32.mrf.mxu0
      %1086 = vmatprep.mubr.bf16.mxu0 %v945
      %1087 = vmatmul.mubr.bf16.gmra.mxu0 %v944
      %v1088 = vpop.f32.mrf.mxu0
      %v1089 = vadd.f32 0.0, %v1088
      %v1090 = vpop.f32.mrf.mxu0
      %v1091 = vpop.f32.mrf.mxu0
      %v1092 = vadd.f32 0.0, %v1091
      %v1093 = vpop.f32.mrf.mxu0
      %1094 = vdwg.mxu0
      %v1099 = vunpack.c.l.b16 %v809
      %v1100 = vunpack.c.h.b16 %v809
      %v1101 = vunpack.c.l.b16 %v810
      %v1102 = vunpack.c.h.b16 %v810
      %v1103 = vunpack.c.l.b16 %v811
      %v1104 = vunpack.c.h.b16 %v811
      %v1105 = vunpack.c.l.b16 %v812
      %v1106 = vunpack.c.h.b16 %v812
      %v1107 = vpack.c.b16 %v1101, %v1099
      %v1108 = vpack.c.b16 %v1102, %v1100
      %v1109 = vpack.c.b16 %v1105, %v1103
      %v1110 = vpack.c.b16 %v1106, %v1104
      %v1147 = vunpack.c.l.b16 %v813
      %v1148 = vunpack.c.l.b16 %v814
      %v1149 = vunpack.c.l.b16 %v815
      %v1150 = vunpack.c.l.b16 %v816
      %v1151 = vunpack.c.l.b16 %v817
      %v1152 = vunpack.c.l.b16 %v818
      %v1153 = vunpack.c.l.b16 %v819
      %v1154 = vunpack.c.l.b16 %v820
      %v1155 = vunpack.c.l.b16 %v821
      %v1156 = vunpack.c.l.b16 %v822
      %v1157 = vunpack.c.l.b16 %v823
      %v1158 = vunpack.c.l.b16 %v824
      %v1159 = vunpack.c.l.b16 %v825
      %v1160 = vunpack.c.l.b16 %v826
      %v1161 = vunpack.c.l.b16 %v827
      %v1162 = vunpack.c.l.b16 %v828
      %v1163 = vunpack.c.l.b16 %v829
      %v1164 = vunpack.c.l.b16 %v830
      %v1165 = vunpack.c.l.b16 %v831
      %v1166 = vunpack.c.l.b16 %v832
      %v1167 = vunpack.c.l.b16 %v833
      %v1168 = vunpack.c.l.b16 %v834
      %v1169 = vunpack.c.l.b16 %v835
      %v1170 = vunpack.c.l.b16 %v836
      %v1171 = vunpack.c.l.b16 %v837
      %v1172 = vunpack.c.l.b16 %v838
      %v1173 = vunpack.c.l.b16 %v839
      %v1174 = vunpack.c.l.b16 %v840
      %v1175 = vunpack.c.l.b16 %v841
      %v1176 = vunpack.c.l.b16 %v842
      %v1177 = vunpack.c.l.b16 %v843
      %v1178 = vunpack.c.l.b16 %v844
      %v1179 = vpack.c.b16 %v1148, %v1147
      %v1180 = vpack.c.b16 %v1150, %v1149
      %v1181 = vpack.c.b16 %v1152, %v1151
      %v1182 = vpack.c.b16 %v1154, %v1153
      %v1183 = vpack.c.b16 %v1156, %v1155
      %v1184 = vpack.c.b16 %v1158, %v1157
      %v1185 = vpack.c.b16 %v1160, %v1159
      %v1186 = vpack.c.b16 %v1162, %v1161
      %v1187 = vpack.c.b16 %v1164, %v1163
      %v1188 = vpack.c.b16 %v1166, %v1165
      %v1189 = vpack.c.b16 %v1168, %v1167
      %v1190 = vpack.c.b16 %v1170, %v1169
      %v1191 = vpack.c.b16 %v1172, %v1171
      %v1192 = vpack.c.b16 %v1174, %v1173
      %v1193 = vpack.c.b16 %v1176, %v1175
      %v1194 = vpack.c.b16 %v1178, %v1177
      %1211 = vmatprep.subr.bf16.mxu0 0
      %1212 = vmatpush1.bf16.msra.mxu0 %v1186
      %1213 = vmatprep.subr.bf16.mxu0 0
      %1214 = vmatpush1.bf16.msra.mxu0 %v1185
      %1215 = vmatprep.subr.bf16.mxu0 0
      %1216 = vmatpush1.bf16.msra.mxu0 %v1184
      %1217 = vmatprep.subr.bf16.mxu0 0
      %1218 = vmatpush1.bf16.msra.mxu0 %v1183
      %1219 = vmatprep.subr.bf16.mxu0 0
      %1220 = vmatpush1.bf16.msra.mxu0 %v1182
      %1221 = vmatprep.subr.bf16.mxu0 0
      %1222 = vmatpush1.bf16.msra.mxu0 %v1181
      %1223 = vmatprep.subr.bf16.mxu0 0
      %1224 = vmatpush1.bf16.msra.mxu0 %v1180
      %1225 = vmatprep.subr.bf16.mxu0 0
      %1226 = vmatpush1.bf16.msra.mxu0 %v1179
      %1227 = vmatprep.subr.bf16.mxu0 0
      %1228 = vmatpush2.bf16.msra.mxu0 %v1194
      %1229 = vmatprep.subr.bf16.mxu0 0
      %1230 = vmatpush2.bf16.msra.mxu0 %v1193
      %1231 = vmatprep.subr.bf16.mxu0 0
      %1232 = vmatpush2.bf16.msra.mxu0 %v1192
      %1233 = vmatprep.subr.bf16.mxu0 0
      %1234 = vmatpush2.bf16.msra.mxu0 %v1191
      %1235 = vmatprep.subr.bf16.mxu0 0
      %1236 = vmatpush2.bf16.msra.mxu0 %v1190
      %1237 = vmatprep.subr.bf16.mxu0 0
      %1238 = vmatpush2.bf16.msra.mxu0 %v1189
      %1239 = vmatprep.subr.bf16.mxu0 0
      %1240 = vmatpush2.bf16.msra.mxu0 %v1188
      %1241 = vmatprep.subr.bf16.mxu0 0
      %1242 = vmatpush2.bf16.msra.mxu0 %v1187
      %1243 = vmatprep.mubr.bf16.mxu0 %v1108
      %1244 = vmatmul.mubr.bf16.gmra.mxu0 %v1107
      %v1245 = vpop.f32.mrf.mxu0
      %v1246 = vadd.f32 %v1081, %v1245
      %v1247 = vpop.f32.mrf.mxu0
      %v1248 = vpop.f32.mrf.mxu0
      %v1249 = vadd.f32 %v1084, %v1248
      %v1250 = vpop.f32.mrf.mxu0
      %1251 = vmatprep.mubr.bf16.mxu0 %v1110
      %1252 = vmatmul.mubr.bf16.gmra.mxu0 %v1109
      %v1253 = vpop.f32.mrf.mxu0
      %v1254 = vadd.f32 %v1089, %v1253
      %v1255 = vpop.f32.mrf.mxu0
      %v1256 = vpop.f32.mrf.mxu0
      %v1257 = vadd.f32 %v1092, %v1256
      %v1258 = vpop.f32.mrf.mxu0
      %1259 = vdwg.mxu0
      %v1260 = vld [vmem:[#allocation2 + $0x8] sm:$0xf]
      %v1261 = vld [vmem:[#allocation2 + $0xc] sm:$0xf]
      %v1262 = vld [vmem:[#allocation2 + $0x10] sm:$0xf]
      %v1263 = vld [vmem:[#allocation2 + $0x14] sm:$0xf]
      %v1264 = vmul.bf16 %v1260, %v688
      %v1265 = vmul.bf16 %v1261, %v695
      %v1266 = vmul.bf16 %v1262, %v702
      %v1267 = vmul.bf16 %v1263, %v709
      %1268 = vst [vmem:[#allocation3] sm:$0xf] %v1264
      %1269 = vst [vmem:[#allocation3 + $0x8] sm:$0xf] %v1265
      %1270 = vst [vmem:[#allocation3 + $0x10] sm:$0xf] %v1266
      %1271 = vst [vmem:[#allocation3 + $0x18] sm:$0xf] %v1267
      %v1272 = vld [vmem:[#allocation2 + $0x8] sm:$0xe]
      %v1273 = vld [vmem:[#allocation2 + $0xc] sm:$0xf]
      %v1274 = vld [vmem:[#allocation2 + $0x10] sm:$0xf]
      %v1275 = vld [vmem:[#allocation2 + $0x14] sm:$0xf]
      %v1276 = vld [vmem:[#allocation2 + $0x18] sm:$0x1]
      %v1277 = vmul.bf16 %v1272, %v759
      %v1278 = vmul.bf16 %v1273, %v762
      %v1279 = vmul.bf16 %v1274, %v765
      %v1280 = vmul.bf16 %v1275, %v768
      %v1281 = vmul.bf16 %v1276, %v769
      %v1287 = vrot.slane %v1277, 5
      %v1288 = vrot.slane %v1287, 4
      %v1289 = vrot.slane %v1278, 5
      %v1290 = vsel %vm787, %v1288, %v1289
      %v1291 = vrot.slane %v1289, 4
      %v1292 = vrot.slane %v1279, 5
      %v1293 = vsel %vm787, %v1291, %v1292
      %v1294 = vrot.slane %v1292, 4
      %v1295 = vrot.slane %v1280, 5
      %v1296 = vsel %vm787, %v1294, %v1295
      %v1297 = vrot.slane %v1295, 4
      %v1298 = vrot.slane %v1281, 5
      %v1299 = vsel %vm787, %v1297, %v1298
      %1304 = vst [vmem:[#allocation3 + $0x4] sm:$0xf] %v1290
      %1305 = vst [vmem:[#allocation3 + $0xc] sm:$0xf] %v1293
      %1306 = vst [vmem:[#allocation3 + $0x14] sm:$0xf] %v1296
      %1307 = vst [vmem:[#allocation3 + $0x1c] sm:$0xf] %v1299
      %v1308 = vld [vmem:[#allocation3] sm:$0xff]
      %v1309 = vld [vmem:[#allocation3 + $0x8] sm:$0xff]
      %v1310 = vld [vmem:[#allocation3 + $0x10] sm:$0xff]
      %v1311 = vld [vmem:[#allocation3 + $0x18] sm:$0xff]
      %s1312 = scalar_lea.vmem %s3, 256
      %v1313 = vld [vmem:[%s1312] sm:$0xf]
      %v1314 = vld [vmem:[%s1312 + $0x4] sm:$0xf]
      %v1315 = vld [vmem:[%s1312 + $0x8] sm:$0xf]
      %v1316 = vld [vmem:[%s1312 + $0xc] sm:$0xf]
      %v1317 = vld [vmem:[%s1312 + $0x10] sm:$0xf]
      %v1318 = vld [vmem:[%s1312 + $0x14] sm:$0xf]
      %v1319 = vld [vmem:[%s1312 + $0x18] sm:$0xf]
      %v1320 = vld [vmem:[%s1312 + $0x1c] sm:$0xf]
      %v1321 = vld [vmem:[%s1312 + $0x20] sm:$0xf]
      %v1322 = vld [vmem:[%s1312 + $0x24] sm:$0xf]
      %v1323 = vld [vmem:[%s1312 + $0x28] sm:$0xf]
      %v1324 = vld [vmem:[%s1312 + $0x2c] sm:$0xf]
      %v1325 = vld [vmem:[%s1312 + $0x30] sm:$0xf]
      %v1326 = vld [vmem:[%s1312 + $0x34] sm:$0xf]
      %v1327 = vld [vmem:[%s1312 + $0x38] sm:$0xf]
      %v1328 = vld [vmem:[%s1312 + $0x3c] sm:$0xf]
      %v1329 = vld [vmem:[%s1312 + $0x40] sm:$0xf]
      %v1330 = vld [vmem:[%s1312 + $0x44] sm:$0xf]
      %v1331 = vld [vmem:[%s1312 + $0x48] sm:$0xf]
      %v1332 = vld [vmem:[%s1312 + $0x4c] sm:$0xf]
      %v1333 = vld [vmem:[%s1312 + $0x50] sm:$0xf]
      %v1334 = vld [vmem:[%s1312 + $0x54] sm:$0xf]
      %v1335 = vld [vmem:[%s1312 + $0x58] sm:$0xf]
      %v1336 = vld [vmem:[%s1312 + $0x5c] sm:$0xf]
      %v1337 = vld [vmem:[%s1312 + $0x60] sm:$0xf]
      %v1338 = vld [vmem:[%s1312 + $0x64] sm:$0xf]
      %v1339 = vld [vmem:[%s1312 + $0x68] sm:$0xf]
      %v1340 = vld [vmem:[%s1312 + $0x6c] sm:$0xf]
      %v1341 = vld [vmem:[%s1312 + $0x70] sm:$0xf]
      %v1342 = vld [vmem:[%s1312 + $0x74] sm:$0xf]
      %v1343 = vld [vmem:[%s1312 + $0x78] sm:$0xf]
      %v1344 = vld [vmem:[%s1312 + $0x7c] sm:$0xf]
      %v1349 = vunpack.c.l.b16 %v1308
      %v1350 = vunpack.c.h.b16 %v1308
      %v1351 = vunpack.c.l.b16 %v1309
      %v1352 = vunpack.c.h.b16 %v1309
      %v1353 = vunpack.c.l.b16 %v1310
      %v1354 = vunpack.c.h.b16 %v1310
      %v1355 = vunpack.c.l.b16 %v1311
      %v1356 = vunpack.c.h.b16 %v1311
      %v1357 = vpack.c.b16 %v1351, %v1349
      %v1358 = vpack.c.b16 %v1352, %v1350
      %v1359 = vpack.c.b16 %v1355, %v1353
      %v1360 = vpack.c.b16 %v1356, %v1354
      %v1397 = vunpack.c.l.b16 %v1313
      %v1398 = vunpack.c.l.b16 %v1314
      %v1399 = vunpack.c.l.b16 %v1315
      %v1400 = vunpack.c.l.b16 %v1316
      %v1401 = vunpack.c.l.b16 %v1317
      %v1402 = vunpack.c.l.b16 %v1318
      %v1403 = vunpack.c.l.b16 %v1319
      %v1404 = vunpack.c.l.b16 %v1320
      %v1405 = vunpack.c.l.b16 %v1321
      %v1406 = vunpack.c.l.b16 %v1322
      %v1407 = vunpack.c.l.b16 %v1323
      %v1408 = vunpack.c.l.b16 %v1324
      %v1409 = vunpack.c.l.b16 %v1325
      %v1410 = vunpack.c.l.b16 %v1326
      %v1411 = vunpack.c.l.b16 %v1327
      %v1412 = vunpack.c.l.b16 %v1328
      %v1413 = vunpack.c.l.b16 %v1329
      %v1414 = vunpack.c.l.b16 %v1330
      %v1415 = vunpack.c.l.b16 %v1331
      %v1416 = vunpack.c.l.b16 %v1332
      %v1417 = vunpack.c.l.b16 %v1333
      %v1418 = vunpack.c.l.b16 %v1334
      %v1419 = vunpack.c.l.b16 %v1335
      %v1420 = vunpack.c.l.b16 %v1336
      %v1421 = vunpack.c.l.b16 %v1337
      %v1422 = vunpack.c.l.b16 %v1338
      %v1423 = vunpack.c.l.b16 %v1339
      %v1424 = vunpack.c.l.b16 %v1340
      %v1425 = vunpack.c.l.b16 %v1341
      %v1426 = vunpack.c.l.b16 %v1342
      %v1427 = vunpack.c.l.b16 %v1343
      %v1428 = vunpack.c.l.b16 %v1344
      %v1429 = vpack.c.b16 %v1398, %v1397
      %v1430 = vpack.c.b16 %v1400, %v1399
      %v1431 = vpack.c.b16 %v1402, %v1401
      %v1432 = vpack.c.b16 %v1404, %v1403
      %v1433 = vpack.c.b16 %v1406, %v1405
      %v1434 = vpack.c.b16 %v1408, %v1407
      %v1435 = vpack.c.b16 %v1410, %v1409
      %v1436 = vpack.c.b16 %v1412, %v1411
      %v1437 = vpack.c.b16 %v1414, %v1413
      %v1438 = vpack.c.b16 %v1416, %v1415
      %v1439 = vpack.c.b16 %v1418, %v1417
      %v1440 = vpack.c.b16 %v1420, %v1419
      %v1441 = vpack.c.b16 %v1422, %v1421
      %v1442 = vpack.c.b16 %v1424, %v1423
      %v1443 = vpack.c.b16 %v1426, %v1425
      %v1444 = vpack.c.b16 %v1428, %v1427
      %1461 = vmatprep.subr.bf16.mxu0 0
      %1462 = vmatpush1.bf16.msra.mxu0 %v1436
      %1463 = vmatprep.subr.bf16.mxu0 0
      %1464 = vmatpush1.bf16.msra.mxu0 %v1435
      %1465 = vmatprep.subr.bf16.mxu0 0
      %1466 = vmatpush1.bf16.msra.mxu0 %v1434
      %1467 = vmatprep.subr.bf16.mxu0 0
      %1468 = vmatpush1.bf16.msra.mxu0 %v1433
      %1469 = vmatprep.subr.bf16.mxu0 0
      %1470 = vmatpush1.bf16.msra.mxu0 %v1432
      %1471 = vmatprep.subr.bf16.mxu0 0
      %1472 = vmatpush1.bf16.msra.mxu0 %v1431
      %1473 = vmatprep.subr.bf16.mxu0 0
      %1474 = vmatpush1.bf16.msra.mxu0 %v1430
      %1475 = vmatprep.subr.bf16.mxu0 0
      %1476 = vmatpush1.bf16.msra.mxu0 %v1429
      %1477 = vmatprep.subr.bf16.mxu0 0
      %1478 = vmatpush2.bf16.msra.mxu0 %v1444
      %1479 = vmatprep.subr.bf16.mxu0 0
      %1480 = vmatpush2.bf16.msra.mxu0 %v1443
      %1481 = vmatprep.subr.bf16.mxu0 0
      %1482 = vmatpush2.bf16.msra.mxu0 %v1442
      %1483 = vmatprep.subr.bf16.mxu0 0
      %1484 = vmatpush2.bf16.msra.mxu0 %v1441
      %1485 = vmatprep.subr.bf16.mxu0 0
      %1486 = vmatpush2.bf16.msra.mxu0 %v1440
      %1487 = vmatprep.subr.bf16.mxu0 0
      %1488 = vmatpush2.bf16.msra.mxu0 %v1439
      %1489 = vmatprep.subr.bf16.mxu0 0
      %1490 = vmatpush2.bf16.msra.mxu0 %v1438
      %1491 = vmatprep.subr.bf16.mxu0 0
      %1492 = vmatpush2.bf16.msra.mxu0 %v1437
      %1493 = vmatprep.mubr.bf16.mxu0 %v1358
      %1494 = vmatmul.mubr.bf16.gmra.mxu0 %v1357
      %v1495 = vpop.f32.mrf.mxu0
      %v1496 = vadd.f32 0.0, %v1495
      %v1497 = vpop.f32.mrf.mxu0
      %v1498 = vpop.f32.mrf.mxu0
      %v1499 = vadd.f32 0.0, %v1498
      %v1500 = vpop.f32.mrf.mxu0
      %1501 = vmatprep.mubr.bf16.mxu0 %v1360
      %1502 = vmatmul.mubr.bf16.gmra.mxu0 %v1359
      %v1503 = vpop.f32.mrf.mxu0
      %v1504 = vadd.f32 0.0, %v1503
      %v1505 = vpop.f32.mrf.mxu0
      %v1506 = vpop.f32.mrf.mxu0
      %v1507 = vadd.f32 0.0, %v1506
      %v1508 = vpop.f32.mrf.mxu0
      %1509 = vdwg.mxu0
      %v1510 = vadd.f32 %v1246, %v1496
      %v1511 = vadd.f32 %v1249, %v1499
      %v1512 = vadd.f32 %v1254, %v1504
      %v1513 = vadd.f32 %v1257, %v1507
      %v1514 = vld [vmem:[#allocation2] sm:$0xf]
      %v1515 = vld [vmem:[#allocation2 + $0x4] sm:$0xf]
      %v1516 = vld [vmem:[#allocation2 + $0x8] sm:$0xf]
      %v1517 = vld [vmem:[#allocation2 + $0xc] sm:$0xf]
      %v1518 = vld [vmem:[#allocation2 + $0x10] sm:$0x1]
      %vm1519 = vsmask.f32 3328
      %vm1520 = vsmask.f32 7440
      %vm1521 = vmor %vm1519, %vm1520
      %v1523 = vshrl.u32 %v1514, 16
      %v1525 = vrot.slane %v1523, 4
      %v1526 = vshll.u32 %v1514, 16
      %v1528 = vrot.slane %v1526, 5
      %v1529 = vor.u32 %v1525, %v1528
      %v1530 = vrot.slane %v1529, 4
      %v1532 = vshll.u32 %v1515, 16
      %v1534 = vrot.slane %v1532, 5
      %v1535 = vsel %vm1521, %v1530, %v1534
      %v1536 = vshrl.u32 %v1515, 16
      %v1538 = vrot.slane %v1536, 4
      %v1539 = vor.u32 %v1538, %v1534
      %v1540 = vrot.slane %v1539, 4
      %v1542 = vshll.u32 %v1516, 16
      %v1544 = vrot.slane %v1542, 5
      %v1545 = vsel %vm1521, %v1540, %v1544
      %v1546 = vshrl.u32 %v1516, 16
      %v1548 = vrot.slane %v1546, 4
      %v1549 = vor.u32 %v1548, %v1544
      %v1550 = vrot.slane %v1549, 4
      %v1552 = vshll.u32 %v1517, 16
      %v1554 = vrot.slane %v1552, 5
      %v1555 = vsel %vm1521, %v1550, %v1554
      %v1556 = vshrl.u32 %v1517, 16
      %v1558 = vrot.slane %v1556, 4
      %v1559 = vor.u32 %v1558, %v1554
      %v1560 = vrot.slane %v1559, 4
      %v1562 = vshll.u32 %v1518, 16
      %v1564 = vrot.slane %v1562, 5
      %v1565 = vsel %vm1521, %v1560, %v1564
      %1570 = vst [vmem:[#allocation3] sm:$0xf] %v1535
      %1571 = vst [vmem:[#allocation3 + $0x8] sm:$0xf] %v1545
      %1572 = vst [vmem:[#allocation3 + $0x10] sm:$0xf] %v1555
      %1573 = vst [vmem:[#allocation3 + $0x18] sm:$0xf] %v1565
      %v1574 = vld [vmem:[#allocation2 + $0x4] sm:$0xf]
      %v1575 = vld [vmem:[#allocation2 + $0x8] sm:$0xf]
      %v1576 = vld [vmem:[#allocation2 + $0xc] sm:$0xf]
      %v1577 = vld [vmem:[#allocation2 + $0x10] sm:$0xf]
      %v1578 = vld [vmem:[#allocation2 + $0x14] sm:$0x1]
      %v1580 = vshrl.u32 %v1574, 16
      %v1582 = vrot.slane %v1580, 4
      %v1583 = vshll.u32 %v1574, 16
      %v1585 = vrot.slane %v1583, 5
      %v1586 = vor.u32 %v1582, %v1585
      %v1587 = vrot.slane %v1586, 4
      %v1589 = vshll.u32 %v1575, 16
      %v1591 = vrot.slane %v1589, 5
      %v1592 = vsel %vm1521, %v1587, %v1591
      %v1593 = vshrl.u32 %v1575, 16
      %v1595 = vrot.slane %v1593, 4
      %v1596 = vor.u32 %v1595, %v1591
      %v1597 = vrot.slane %v1596, 4
      %v1599 = vshll.u32 %v1576, 16
      %v1601 = vrot.slane %v1599, 5
      %v1602 = vsel %vm1521, %v1597, %v1601
      %v1603 = vshrl.u32 %v1576, 16
      %v1605 = vrot.slane %v1603, 4
      %v1606 = vor.u32 %v1605, %v1601
      %v1607 = vrot.slane %v1606, 4
      %v1609 = vshll.u32 %v1577, 16
      %v1611 = vrot.slane %v1609, 5
      %v1612 = vsel %vm1521, %v1607, %v1611
      %v1613 = vshrl.u32 %v1577, 16
      %v1615 = vrot.slane %v1613, 4
      %v1616 = vor.u32 %v1615, %v1611
      %v1617 = vrot.slane %v1616, 4
      %v1619 = vshll.u32 %v1578, 16
      %v1621 = vrot.slane %v1619, 5
      %v1622 = vsel %vm1521, %v1617, %v1621
      %1627 = vst [vmem:[#allocation3 + $0x4] sm:$0xf] %v1592
      %1628 = vst [vmem:[#allocation3 + $0xc] sm:$0xf] %v1602
      %1629 = vst [vmem:[#allocation3 + $0x14] sm:$0xf] %v1612
      %1630 = vst [vmem:[#allocation3 + $0x1c] sm:$0xf] %v1622
      %v1631 = vld [vmem:[#allocation3] sm:$0xff]
      %v1632 = vld [vmem:[#allocation3 + $0x8] sm:$0xff]
      %v1633 = vld [vmem:[#allocation3 + $0x10] sm:$0xff]
      %v1634 = vld [vmem:[#allocation3 + $0x18] sm:$0xff]
      %s1635 = scalar_lea.vmem %s3, 384
      %v1636 = vld [vmem:[%s1635] sm:$0xf]
      %v1637 = vld [vmem:[%s1635 + $0x4] sm:$0xf]
      %v1638 = vld [vmem:[%s1635 + $0x8] sm:$0xf]
      %v1639 = vld [vmem:[%s1635 + $0xc] sm:$0xf]
      %v1640 = vld [vmem:[%s1635 + $0x10] sm:$0xf]
      %v1641 = vld [vmem:[%s1635 + $0x14] sm:$0xf]
      %v1642 = vld [vmem:[%s1635 + $0x18] sm:$0xf]
      %v1643 = vld [vmem:[%s1635 + $0x1c] sm:$0xf]
      %v1644 = vld [vmem:[%s1635 + $0x20] sm:$0xf]
      %v1645 = vld [vmem:[%s1635 + $0x24] sm:$0xf]
      %v1646 = vld [vmem:[%s1635 + $0x28] sm:$0xf]
      %v1647 = vld [vmem:[%s1635 + $0x2c] sm:$0xf]
      %v1648 = vld [vmem:[%s1635 + $0x30] sm:$0xf]
      %v1649 = vld [vmem:[%s1635 + $0x34] sm:$0xf]
      %v1650 = vld [vmem:[%s1635 + $0x38] sm:$0xf]
      %v1651 = vld [vmem:[%s1635 + $0x3c] sm:$0xf]
      %v1652 = vld [vmem:[%s1635 + $0x40] sm:$0xf]
      %v1653 = vld [vmem:[%s1635 + $0x44] sm:$0xf]
      %v1654 = vld [vmem:[%s1635 + $0x48] sm:$0xf]
      %v1655 = vld [vmem:[%s1635 + $0x4c] sm:$0xf]
      %v1656 = vld [vmem:[%s1635 + $0x50] sm:$0xf]
      %v1657 = vld [vmem:[%s1635 + $0x54] sm:$0xf]
      %v1658 = vld [vmem:[%s1635 + $0x58] sm:$0xf]
      %v1659 = vld [vmem:[%s1635 + $0x5c] sm:$0xf]
      %v1660 = vld [vmem:[%s1635 + $0x60] sm:$0xf]
      %v1661 = vld [vmem:[%s1635 + $0x64] sm:$0xf]
      %v1662 = vld [vmem:[%s1635 + $0x68] sm:$0xf]
      %v1663 = vld [vmem:[%s1635 + $0x6c] sm:$0xf]
      %v1664 = vld [vmem:[%s1635 + $0x70] sm:$0xf]
      %v1665 = vld [vmem:[%s1635 + $0x74] sm:$0xf]
      %v1666 = vld [vmem:[%s1635 + $0x78] sm:$0xf]
      %v1667 = vld [vmem:[%s1635 + $0x7c] sm:$0xf]
      %v1672 = vunpack.c.l.b16 %v1631
      %v1673 = vunpack.c.h.b16 %v1631
      %v1674 = vunpack.c.l.b16 %v1632
      %v1675 = vunpack.c.h.b16 %v1632
      %v1676 = vunpack.c.l.b16 %v1633
      %v1677 = vunpack.c.h.b16 %v1633
      %v1678 = vunpack.c.l.b16 %v1634
      %v1679 = vunpack.c.h.b16 %v1634
      %v1680 = vpack.c.b16 %v1674, %v1672
      %v1681 = vpack.c.b16 %v1675, %v1673
      %v1682 = vpack.c.b16 %v1678, %v1676
      %v1683 = vpack.c.b16 %v1679, %v1677
      %v1720 = vunpack.c.l.b16 %v1636
      %v1721 = vunpack.c.l.b16 %v1637
      %v1722 = vunpack.c.l.b16 %v1638
      %v1723 = vunpack.c.l.b16 %v1639
      %v1724 = vunpack.c.l.b16 %v1640
      %v1725 = vunpack.c.l.b16 %v1641
      %v1726 = vunpack.c.l.b16 %v1642
      %v1727 = vunpack.c.l.b16 %v1643
      %v1728 = vunpack.c.l.b16 %v1644
      %v1729 = vunpack.c.l.b16 %v1645
      %v1730 = vunpack.c.l.b16 %v1646
      %v1731 = vunpack.c.l.b16 %v1647
      %v1732 = vunpack.c.l.b16 %v1648
      %v1733 = vunpack.c.l.b16 %v1649
      %v1734 = vunpack.c.l.b16 %v1650
      %v1735 = vunpack.c.l.b16 %v1651
      %v1736 = vunpack.c.l.b16 %v1652
      %v1737 = vunpack.c.l.b16 %v1653
      %v1738 = vunpack.c.l.b16 %v1654
      %v1739 = vunpack.c.l.b16 %v1655
      %v1740 = vunpack.c.l.b16 %v1656
      %v1741 = vunpack.c.l.b16 %v1657
      %v1742 = vunpack.c.l.b16 %v1658
      %v1743 = vunpack.c.l.b16 %v1659
      %v1744 = vunpack.c.l.b16 %v1660
      %v1745 = vunpack.c.l.b16 %v1661
      %v1746 = vunpack.c.l.b16 %v1662
      %v1747 = vunpack.c.l.b16 %v1663
      %v1748 = vunpack.c.l.b16 %v1664
      %v1749 = vunpack.c.l.b16 %v1665
      %v1750 = vunpack.c.l.b16 %v1666
      %v1751 = vunpack.c.l.b16 %v1667
      %v1752 = vpack.c.b16 %v1721, %v1720
      %v1753 = vpack.c.b16 %v1723, %v1722
      %v1754 = vpack.c.b16 %v1725, %v1724
      %v1755 = vpack.c.b16 %v1727, %v1726
      %v1756 = vpack.c.b16 %v1729, %v1728
      %v1757 = vpack.c.b16 %v1731, %v1730
      %v1758 = vpack.c.b16 %v1733, %v1732
      %v1759 = vpack.c.b16 %v1735, %v1734
      %v1760 = vpack.c.b16 %v1737, %v1736
      %v1761 = vpack.c.b16 %v1739, %v1738
      %v1762 = vpack.c.b16 %v1741, %v1740
      %v1763 = vpack.c.b16 %v1743, %v1742
      %v1764 = vpack.c.b16 %v1745, %v1744
      %v1765 = vpack.c.b16 %v1747, %v1746
      %v1766 = vpack.c.b16 %v1749, %v1748
      %v1767 = vpack.c.b16 %v1751, %v1750
      %1784 = vmatprep.subr.bf16.mxu0 0
      %1785 = vmatpush1.bf16.msra.mxu0 %v1759
      %1786 = vmatprep.subr.bf16.mxu0 0
      %1787 = vmatpush1.bf16.msra.mxu0 %v1758
      %1788 = vmatprep.subr.bf16.mxu0 0
      %1789 = vmatpush1.bf16.msra.mxu0 %v1757
      %1790 = vmatprep.subr.bf16.mxu0 0
      %1791 = vmatpush1.bf16.msra.mxu0 %v1756
      %1792 = vmatprep.subr.bf16.mxu0 0
      %1793 = vmatpush1.bf16.msra.mxu0 %v1755
      %1794 = vmatprep.subr.bf16.mxu0 0
      %1795 = vmatpush1.bf16.msra.mxu0 %v1754
      %1796 = vmatprep.subr.bf16.mxu0 0
      %1797 = vmatpush1.bf16.msra.mxu0 %v1753
      %1798 = vmatprep.subr.bf16.mxu0 0
      %1799 = vmatpush1.bf16.msra.mxu0 %v1752
      %1800 = vmatprep.subr.bf16.mxu0 0
      %1801 = vmatpush2.bf16.msra.mxu0 %v1767
      %1802 = vmatprep.subr.bf16.mxu0 0
      %1803 = vmatpush2.bf16.msra.mxu0 %v1766
      %1804 = vmatprep.subr.bf16.mxu0 0
      %1805 = vmatpush2.bf16.msra.mxu0 %v1765
      %1806 = vmatprep.subr.bf16.mxu0 0
      %1807 = vmatpush2.bf16.msra.mxu0 %v1764
      %1808 = vmatprep.subr.bf16.mxu0 0
      %1809 = vmatpush2.bf16.msra.mxu0 %v1763
      %1810 = vmatprep.subr.bf16.mxu0 0
      %1811 = vmatpush2.bf16.msra.mxu0 %v1762
      %1812 = vmatprep.subr.bf16.mxu0 0
      %1813 = vmatpush2.bf16.msra.mxu0 %v1761
      %1814 = vmatprep.subr.bf16.mxu0 0
      %1815 = vmatpush2.bf16.msra.mxu0 %v1760
      %1816 = vmatprep.mubr.bf16.mxu0 %v1681
      %1817 = vmatmul.mubr.bf16.gmra.mxu0 %v1680
      %v1818 = vpop.f32.mrf.mxu0
      %v1819 = vadd.f32 0.0, %v1818
      %v1820 = vpop.f32.mrf.mxu0
      %v1821 = vpop.f32.mrf.mxu0
      %v1822 = vadd.f32 0.0, %v1821
      %v1823 = vpop.f32.mrf.mxu0
      %1824 = vmatprep.mubr.bf16.mxu0 %v1683
      %1825 = vmatmul.mubr.bf16.gmra.mxu0 %v1682
      %v1826 = vpop.f32.mrf.mxu0
      %v1827 = vadd.f32 0.0, %v1826
      %v1828 = vpop.f32.mrf.mxu0
      %v1829 = vpop.f32.mrf.mxu0
      %v1830 = vadd.f32 0.0, %v1829
      %v1831 = vpop.f32.mrf.mxu0
      %1832 = vdwg.mxu0
      %v1833 = vadd.f32 %v1510, %v1819
      %v1834 = vadd.f32 %v1511, %v1822
      %v1835 = vadd.f32 %v1512, %v1827
      %v1836 = vadd.f32 %v1513, %v1830
      %v1837 = vld [vmem:[#allocation2 + $0x8] sm:$0xf]
      %v1838 = vld [vmem:[#allocation2 + $0xc] sm:$0xf]
      %v1839 = vld [vmem:[#allocation2 + $0x10] sm:$0xf]
      %v1840 = vld [vmem:[#allocation2 + $0x14] sm:$0xf]
      %v1841 = vld [vmem:[#allocation2 + $0x18] sm:$0x1]
      %s1842 = scalar_lea.vmem %s3, 512
      %v1843 = vld [vmem:[%s1842] sm:$0xf]
      %v1844 = vld [vmem:[%s1842 + $0x4] sm:$0xf]
      %v1845 = vld [vmem:[%s1842 + $0x8] sm:$0xf]
      %v1846 = vld [vmem:[%s1842 + $0xc] sm:$0xf]
      %v1847 = vld [vmem:[%s1842 + $0x10] sm:$0xf]
      %v1848 = vld [vmem:[%s1842 + $0x14] sm:$0xf]
      %v1849 = vld [vmem:[%s1842 + $0x18] sm:$0xf]
      %v1850 = vld [vmem:[%s1842 + $0x1c] sm:$0xf]
      %v1851 = vld [vmem:[%s1842 + $0x20] sm:$0xf]
      %v1852 = vld [vmem:[%s1842 + $0x24] sm:$0xf]
      %v1853 = vld [vmem:[%s1842 + $0x28] sm:$0xf]
      %v1854 = vld [vmem:[%s1842 + $0x2c] sm:$0xf]
      %v1855 = vld [vmem:[%s1842 + $0x30] sm:$0xf]
      %v1856 = vld [vmem:[%s1842 + $0x34] sm:$0xf]
      %v1857 = vld [vmem:[%s1842 + $0x38] sm:$0xf]
      %v1858 = vld [vmem:[%s1842 + $0x3c] sm:$0xf]
      %v1864 = vunpack.c.l.b16 %v1837
      %v1865 = vunpack.c.l.b16 %v1838
      %v1866 = vunpack.c.l.b16 %v1839
      %v1867 = vunpack.c.l.b16 %v1840
      %v1868 = vunpack.c.l.b16 %v1841
      %v1869 = vpack.c.b16 %v1865, %v1864
      %v1870 = vpack.c.b16 %v1867, %v1866
      %v1871 = vpack.c.b16 %v1868, %v1868
      %vm1872 = vsmask.f32 7424
      %v1874 = vshrl.u32 %v1869, 16
      %v1876 = vshll.u32 %v1869, 16
      %v1878 = vrot.slane %v1876, 1
      %v1879 = vor.u32 %v1874, %v1878
      %v1881 = vshll.u32 %v1870, 16
      %v1883 = vrot.slane %v1881, 1
      %v1884 = vsel %vm1872, %v1879, %v1883
      %v1885 = vshrl.u32 %v1870, 16
      %v1887 = vor.u32 %v1885, %v1883
      %v1889 = vshll.u32 %v1871, 16
      %v1891 = vrot.slane %v1889, 1
      %v1892 = vsel %vm1872, %v1887, %v1891
      %v1911 = vunpack.c.l.b16 %v1843
      %v1912 = vunpack.c.l.b16 %v1844
      %v1913 = vunpack.c.l.b16 %v1845
      %v1914 = vunpack.c.l.b16 %v1846
      %v1915 = vunpack.c.l.b16 %v1847
      %v1916 = vunpack.c.l.b16 %v1848
      %v1917 = vunpack.c.l.b16 %v1849
      %v1918 = vunpack.c.l.b16 %v1850
      %v1919 = vunpack.c.l.b16 %v1851
      %v1920 = vunpack.c.l.b16 %v1852
      %v1921 = vunpack.c.l.b16 %v1853
      %v1922 = vunpack.c.l.b16 %v1854
      %v1923 = vunpack.c.l.b16 %v1855
      %v1924 = vunpack.c.l.b16 %v1856
      %v1925 = vunpack.c.l.b16 %v1857
      %v1926 = vunpack.c.l.b16 %v1858
      %v1927 = vpack.c.b16 %v1912, %v1911
      %v1928 = vpack.c.b16 %v1914, %v1913
      %v1929 = vpack.c.b16 %v1916, %v1915
      %v1930 = vpack.c.b16 %v1918, %v1917
      %v1931 = vpack.c.b16 %v1920, %v1919
      %v1932 = vpack.c.b16 %v1922, %v1921
      %v1933 = vpack.c.b16 %v1924, %v1923
      %v1934 = vpack.c.b16 %v1926, %v1925
      %1943 = vmatprep.subr.bf16.mxu0 0
      %1944 = vmatpush1.bf16.msra.mxu0 %v1934
      %1945 = vmatprep.subr.bf16.mxu0 0
      %1946 = vmatpush1.bf16.msra.mxu0 %v1933
      %1947 = vmatprep.subr.bf16.mxu0 0
      %1948 = vmatpush1.bf16.msra.mxu0 %v1932
      %1949 = vmatprep.subr.bf16.mxu0 0
      %1950 = vmatpush1.bf16.msra.mxu0 %v1931
      %1951 = vmatprep.subr.bf16.mxu0 0
      %1952 = vmatpush1.bf16.msra.mxu0 %v1930
      %1953 = vmatprep.subr.bf16.mxu0 0
      %1954 = vmatpush1.bf16.msra.mxu0 %v1929
      %1955 = vmatprep.subr.bf16.mxu0 0
      %1956 = vmatpush1.bf16.msra.mxu0 %v1928
      %1957 = vmatprep.subr.bf16.mxu0 0
      %1958 = vmatpush1.bf16.msra.mxu0 %v1927
      %1959 = vmatprep.subr.bf16.mxu0 0
      %1960 = vmatpush2.bf16.msra.mxu0 0
      %1961 = vmatprep.subr.bf16.mxu0 0
      %1962 = vmatpush2.bf16.msra.mxu0 0
      %1963 = vmatprep.subr.bf16.mxu0 0
      %1964 = vmatpush2.bf16.msra.mxu0 0
      %1965 = vmatprep.subr.bf16.mxu0 0
      %1966 = vmatpush2.bf16.msra.mxu0 0
      %1967 = vmatprep.subr.bf16.mxu0 0
      %1968 = vmatpush2.bf16.msra.mxu0 0
      %1969 = vmatprep.subr.bf16.mxu0 0
      %1970 = vmatpush2.bf16.msra.mxu0 0
      %1971 = vmatprep.subr.bf16.mxu0 0
      %1972 = vmatpush2.bf16.msra.mxu0 0
      %1973 = vmatprep.subr.bf16.mxu0 0
      %1974 = vmatpush2.bf16.msra.mxu0 0
      %1975 = vmatprep.mubr.bf16.mxu0 0
      %1976 = vmatmul.mubr.bf16.gmra.mxu0 %v1884
      %v1977 = vpop.f32.mrf.mxu0
      %v1978 = vadd.f32 0.0, %v1977
      %v1979 = vpop.f32.mrf.mxu0
      %v1980 = vpop.f32.mrf.mxu0
      %v1981 = vadd.f32 0.0, %v1980
      %v1982 = vpop.f32.mrf.mxu0
      %1983 = vmatprep.mubr.bf16.mxu0 0
      %1984 = vmatmul.mubr.bf16.gmra.mxu0 %v1892
      %v1985 = vpop.f32.mrf.mxu0
      %v1986 = vadd.f32 0.0, %v1985
      %v1987 = vpop.f32.mrf.mxu0
      %v1988 = vpop.f32.mrf.mxu0
      %v1989 = vadd.f32 0.0, %v1988
      %v1990 = vpop.f32.mrf.mxu0
      %1991 = vdwg.mxu0
      %v1992 = vadd.f32 %v1833, %v1978
      %v1993 = vadd.f32 %v1834, %v1981
      %v1994 = vadd.f32 %v1835, %v1986
      %v1995 = vadd.f32 %v1836, %v1989
      %v1996 = vld [vmem:[%s4] sm:$0x1]
      %v1998 = vlaneseq
      %v1999 = vshrl.u32 %v1998, 7
      %v2000 = vsub.s32 0, %v1999
      %v2001 = vrot.slane %v1996, %v2000
      %v2003 = vmul.f32 %v1992, %v2001
      %v2004 = vmul.f32 %v1993, %v2001
      %v2005 = vmul.f32 %v1994, %v2001
      %v2006 = vmul.f32 %v1995, %v2001
      %v2007 = vld [vmem:[%s5] sm:$0x1]
      %v2009 = vlaneseq
      %v2010 = vshrl.u32 %v2009, 7
      %v2011 = vsub.s32 0, %v2010
      %v2012 = vrot.slane %v2007, %v2011
      %v2014 = vadd.f32 %v2003, %v2012
      %v2015 = vadd.f32 %v2004, %v2012
      %v2016 = vadd.f32 %v2005, %v2012
      %v2017 = vadd.f32 %v2006, %v2012
      %v2018 = vmax.f32 %v2014, 0.0
      %v2019 = vmax.f32 %v2015, 0.0
      %v2020 = vmax.f32 %v2016, 0.0
      %v2021 = vmax.f32 %v2017, 0.0
      %v2022 = vpack.c.bf16 %v2019, %v2018
      %v2023 = vpack.c.bf16 %v2021, %v2020
      %v2026 = vunpack.c.l.b16 %v2022
      %v2027 = vunpack.c.h.b16 %v2022
      %v2028 = vunpack.c.l.b16 %v2023
      %v2029 = vunpack.c.h.b16 %v2023
      %v2030 = vpack.c.b16 %v2026, %v2026
      %v2031 = vpack.c.b16 %v2027, %v2027
      %v2032 = vpack.c.b16 %v2028, %v2028
      %v2033 = vpack.c.b16 %v2029, %v2029
      %2038 = vst [vmem:[%s457] sm:$0xf] %v2030
      %2039 = vst [vmem:[%s457 + $0x4] sm:$0xf] %v2031
      %2040 = vst [vmem:[%s457 + $0x8] sm:$0xf] %v2032
      %2041 = vst [vmem:[%s457 + $0xc] sm:$0xf] %v2033
      %v2042 = vadd.f32 %v2018, %v2019
      %v2043 = vadd.f32 %v2042, %v2020
      %v2044 = vadd.f32 %v2043, %v2021
      %v2045 = vrot.slane %v2044, 4
      %v2046 = vadd.f32 %v2044, %v2045
      %v2047 = vrot.slane %v2046, 2
      %v2048 = vadd.f32 %v2046, %v2047
      %v2049 = vrot.slane %v2048, 1
      %v2050 = vadd.f32 %v2048, %v2049
      %2051 = vst [vmem:[%s464] sm:$0xff] %v2050
      %s2052 = smul.u32 4, %s24
      %p2053 = scmp.lt.s32.totalorder %s23, 1
      %s2054 = scalar_select %p2053, %s23, 1
      %p2055 = scmp.lt.s32.totalorder %s2052, 7
      %s2056 = scalar_select %p2055, %s2052, 7
      %s2057 = smul.addr %s2054, 8
      %s2058 = sadd.s32 %s2056, %s2057
      %s2059 = smul.addr %s2058, 4
      %s2060 = scalar_lea.vmem %s6, %s2059
      %s2061 = smul.u32 %s23, 2
      %s2062 = sadd.s32 %s2061, %s24
      %p2063 = scmp.lt.s32.totalorder %s2062, 3
      %s2064 = scalar_select %p2063, %s2062, 3
      %s2065 = smul.addr %s2064, 8
      %s2066 = scalar_lea.vmem %s7, %s2065
      // Predicated region
      $region61: #{bottleneck_forward.4} parent=43 // pred_check
        %p2067 = pneg %p214
      $region62: #{bottleneck_forward.4} parent=43 // pred_check_branch
        %2069 = sbr.rel (%p2067) target = $region64
      $region63: #{bottleneck_forward.4} parent=43 // pred_region
        %s2070 = smul.u32 4, %s24
      $region64: #{bottleneck_forward.4} parent=43 // pred_fallthru
        _
      // Predicated region
      $region65: #{bottleneck_forward.4} parent=43 // pred_check
        %p2071 = pneg %p244
      $region66: #{bottleneck_forward.4} parent=43 // pred_check_branch
        %2073 = sbr.rel (%p2071) target = $region68
      $region67: #{bottleneck_forward.4} parent=43 // pred_region
        %s2074 = smul.u32 %s23, 2
        %s2075 = sadd.s32 %s2074, %s24
      $region68: #{bottleneck_forward.4} parent=43 // pred_fallthru
        _
    $region44: #{bottleneck_forward.4} parent=5 // pred_fallthru
      _
    %p2076 = scmp.le.s32.totalorder 2, %s14
    // Predicated region
    $region69: #{bottleneck_forward.4} parent=5 // pred_check
      %p2077 = pneg %p2076
    $region70: #{bottleneck_forward.4} parent=5 // pred_check_branch
      %2079 = sbr.rel (%p2077) target = $region72
    $region71: #{bottleneck_forward.4} parent=5 // pred_region
      %s2080 = ssub.s32 %s14, 2
      // Predicated region
      $region73: #{bottleneck_forward.4} parent=71 // pred_check
        %p2081 = pneg %p220
      $region74: #{bottleneck_forward.4} parent=71 // pred_check_branch
        %2083 = sbr.rel (%p2081) target = $region76
      $region75: #{bottleneck_forward.4} parent=71 // pred_region
        %s2084 = smul.u32 4, %s26
        %p2085 = scmp.lt.s32.totalorder %s25, 1
        %s2086 = scalar_select %p2085, %s25, 1
        %p2087 = scmp.lt.s32.totalorder %s2084, 7
        %s2088 = scalar_select %p2087, %s2084, 7
        %s2089 = smul.addr %s2086, 8
        %s2090 = sadd.s32 %s2088, %s2089
        %s2091 = smul.addr %s2090, 4
        %s2092 = scalar_lea.vmem %s6, %s2091
      $region76: #{bottleneck_forward.4} parent=71 // pred_fallthru
        _
      // Predicated region
      $region77: #{bottleneck_forward.4} parent=71 // pred_check
        %p2093 = pneg %p250
      $region78: #{bottleneck_forward.4} parent=71 // pred_check_branch
        %2095 = sbr.rel (%p2093) target = $region80
      $region79: #{bottleneck_forward.4} parent=71 // pred_region
        %s2096 = smul.u32 %s25, 2
        %s2097 = sadd.s32 %s2096, %s26
        %p2098 = scmp.lt.s32.totalorder %s2097, 3
        %s2099 = scalar_select %p2098, %s2097, 3
        %s2100 = smul.addr %s2099, 8
        %s2101 = scalar_lea.vmem %s7, %s2100
      $region80: #{bottleneck_forward.4} parent=71 // pred_fallthru
        _
    $region72: #{bottleneck_forward.4} parent=5 // pred_fallthru
      _
  $region6: #{bottleneck_forward.4} parent=0 // loop_footer
    %s18 = sadd.s32 1, %s14
  $region7: #{bottleneck_forward.4} parent=0 // loop_footer_branch
    %13 = sbr.rel target = $region3
  $region8: #{bottleneck_forward.4} parent=0 // loop_exit
    _

</llo_original>
